<compile_context>
chip_gen: v7x
topology: tpu7x:2x2x1
jax: 0.10.0
libtpu: 0.0.40
codegen_flags: <defaults>
</compile_context>

<pallas_src>
import functools

import jax
import jax.numpy as jnp
from jax import lax
from jax.experimental import pallas as pl
from jax.experimental.pallas import tpu as pltpu

_LANE = 128


def _round_up(x, m):
    return ((x + m - 1) // m) * m


def _zero_halo(ref, h, w, c):
    """Zero only the 1-pixel border of a (h+2, w+2, c) padded scratch buffer."""
    z_row = jnp.zeros((1, w + 2, c), jnp.float32)
    z_col = jnp.zeros((h + 2, 1, c), jnp.float32)
    ref[0:1, :, :] = z_row
    ref[h + 1:h + 2, :, :] = z_row
    ref[:, 0:1, :] = z_col
    ref[:, w + 1:w + 2, :] = z_col


def _downconv_kernel(x_ref, w1_ref, b1_ref, w2_ref, b2_ref,
                     pool_ref, bp_ref, xpad_sc, ypad_sc):
    # x_ref  : (1, H, W, Cip)        input tile (channels pre-padded to 128k)
    # w1_ref : (3, 3*Cip, Cop)       conv1 weights, K rows ordered (dw, cin)
    # b1_ref : (1, Cop)
    # w2_ref : (3, 3*Cop, Cop)       conv2 weights
    # b2_ref : (1, Cop)
    # pool_ref: (1, H//2, W//2, Cop) pooled output
    # bp_ref : (1, H, W, Cop)        before_pool output
    # xpad_sc: (H+2, W+2, Cip)       VMEM scratch: zero halo + conv1 input
    # ypad_sc: (H+2, W+2, Cop)       VMEM scratch: zero halo + conv1 output
    H = bp_ref.shape[1]
    W = bp_ref.shape[2]
    Cip = x_ref.shape[3]
    Cop = bp_ref.shape[3]

    # Only the halo border is zeroed (cheap), and it is done unconditionally so
    # correctness does not depend on how the "parallel" batch axis is sharded
    # across TensorCores.  The interior is overwritten every step.
    _zero_halo(xpad_sc, H, W, Cip)
    _zero_halo(ypad_sc, H, W, Cop)

    xpad_sc[1:H + 1, 1:W + 1, :] = x_ref[0]

    def conv3x3_relu(pad_ref, w_ref, b_ref, cin):
        # Fold the three dw taps into the contraction dimension:
        #   xcat[i', j, dw*cin + c] = pad_ref[i', j + dw, c]
        # so each of the 3 dh taps is one (H*W, 3*cin) @ (3*cin, Cop) MXU call
        # (3 matmuls of K = 3*cin instead of 9 matmuls of K = cin).
        xcat = jnp.concatenate(
            [pad_ref[:, dw:dw + W, :] for dw in range(3)], axis=-1)
        xflat = xcat.reshape((H + 2) * W, 3 * cin)
        acc = jnp.zeros((H * W, Cop), jnp.float32)
        for dh in range(3):
            acc = acc + jnp.dot(xflat[dh * W:(dh + H) * W, :], w_ref[dh],
                                preferred_element_type=jnp.float32)
        return jnp.maximum(acc + b_ref[0], 0.0).reshape(H, W, Cop)

    # --- conv1 + ReLU, then write the interior of the conv2 halo buffer ---
    y1 = conv3x3_relu(xpad_sc, w1_ref, b1_ref, Cip)
    ypad_sc[1:H + 1, 1:W + 1, :] = y1

    # --- conv2 + ReLU (reads padded input directly from the scratch ref) ---
    y2 = conv3x3_relu(ypad_sc, w2_ref, b2_ref, Cop)
    bp_ref[0] = y2.astype(bp_ref.dtype)

    # --- 2x2 stride-2 max pool: elementwise maxes of the four phases ---
    y2r = y2.reshape(H // 2, 2, W, Cop)
    rmax = jnp.maximum(y2r[:, 0], y2r[:, 1])          # (H//2, W, Cop)
    rr = rmax.reshape(H // 2, W // 2, 2, Cop)
    pool_ref[0] = jnp.maximum(rr[:, :, 0, :], rr[:, :, 1, :]).astype(pool_ref.dtype)


def down_conv_nhwc(x_nhwc, w1, b1, w2, b2):
    """Core NHWC entry point (skips NCHW<->NHWC transposes for channels-last
    callers).  Returns (pooled, before_pool) in NHWC."""
    N, H, W, Cin = x_nhwc.shape
    Cout = w1.shape[0]
    assert H % 2 == 0 and W % 2 == 0, "MaxPool2d(2,2) needs even H and W"

    # Pad channels to a lane multiple: lane-dense stores, aligned in-kernel
    # concat, and dense MXU tiles.  No-op when already a 128-multiple.
    Cip = _round_up(Cin, _LANE)
    Cop = _round_up(Cout, _LANE)

    xk = x_nhwc if Cip == Cin else jnp.pad(
        x_nhwc, ((0, 0), (0, 0), (0, 0), (0, Cip - Cin)))

    def prep_w(w, cin, cin_p):
        wt = jnp.transpose(w, (2, 3, 1, 0))                       # (3,3,cin,cout)
        wt = jnp.pad(wt, ((0, 0), (0, 0), (0, cin_p - cin), (0, Cop - Cout)))
        return wt.reshape(3, 3 * cin_p, Cop)                      # row = dw*cin_p + c

    w1k = prep_w(w1, Cin, Cip)
    w2k = prep_w(w2, Cout, Cop)
    b1k = jnp.pad(b1, (0, Cop - Cout)).reshape(1, Cop)
    b2k = jnp.pad(b2, (0, Cop - Cout)).reshape(1, Cop)

    # VMEM budget: double-buffered I/O tiles + weights + halo scratches +
    # im2col / accumulator temporaries, with ~2x headroom.
    est_words = (
        2 * H * W * Cip                                  # input tile (x2 buf)
        + 2 * H * W * Cop                                # before_pool tile
        + 2 * (H // 2) * (W // 2) * Cop                  # pooled tile
        + 2 * (9 * Cip * Cop + 9 * Cop * Cop + 2 * Cop)  # weights + biases
        + (H + 2) * (W + 2) * (Cip + Cop)                # halo scratches
        + 3 * (H + 2) * W * max(Cip, Cop)                # im2col concat temp
        + 3 * H * W * Cop                                # acc / y1 / y2 values
    )
    vmem_limit = int(min(64 * 1024 * 1024, max(32 * 1024 * 1024, 8 * est_words)))

    # TODO(synk): for large feature maps (e.g. 256x256 UNet stages) add a
    # row-block grid axis with a 1-row halo (manual DMA double-buffer) so the
    # working set fits v7x's 64 MiB VMEM and both TensorCores stay busy even at
    # batch size 1; optionally run the MXU in bf16 on v6e/v7x.
    pooled, before = pl.pallas_call(
        _downconv_kernel,
        out_shape=(
            jax.ShapeDtypeStruct((N, H // 2, W // 2, Cop), x_nhwc.dtype),
            jax.ShapeDtypeStruct((N, H, W, Cop), x_nhwc.dtype),
        ),
        grid_spec=pltpu.PrefetchScalarGridSpec(
            num_scalar_prefetch=0,
            grid=(N,),
            in_specs=[
                pl.BlockSpec((1, H, W, Cip), lambda b: (b, 0, 0, 0)),
                pl.BlockSpec((3, 3 * Cip, Cop), lambda b: (0, 0, 0)),
                pl.BlockSpec((1, Cop), lambda b: (0, 0)),
                pl.BlockSpec((3, 3 * Cop, Cop), lambda b: (0, 0, 0)),
                pl.BlockSpec((1, Cop), lambda b: (0, 0)),
            ],
            out_specs=[
                pl.BlockSpec((1, H // 2, W // 2, Cop), lambda b: (b, 0, 0, 0)),
                pl.BlockSpec((1, H, W, Cop), lambda b: (b, 0, 0, 0)),
            ],
            scratch_shapes=[
                pltpu.VMEM((H + 2, W + 2, Cip), jnp.float32),
                pltpu.VMEM((H + 2, W + 2, Cop), jnp.float32),
            ],
        ),
        compiler_params=pltpu.CompilerParams(
            dimension_semantics=("parallel",),
            vmem_limit_bytes=vmem_limit,
        ),
    )(xk, w1k, b1k, w2k, b2k)

    if Cop != Cout:
        pooled = pooled[..., :Cout]
        before = before[..., :Cout]
    return pooled, before


@functools.partial(jax.jit, static_argnames=("pooling",))
def down_conv(x_nchw, w1, b1, w2, b2, pooling=True):
    """Pallas equivalent of DownConv.forward with the PyTorch NCHW interface.

    x_nchw: (N, Cin, H, W); w1: (Cout, Cin, 3, 3); b1: (Cout,)
    w2: (Cout, Cout, 3, 3); b2: (Cout,).  Returns (x, before_pool) in NCHW.
    """
    pooled, before = down_conv_nhwc(
        jnp.transpose(x_nchw, (0, 2, 3, 1)), w1, b1, w2, b2)
    before_nchw = jnp.transpose(before, (0, 3, 1, 2))
    if not pooling:
        # PyTorch returns (x, before_pool) with x is before_pool.
        return before_nchw, before_nchw
    return jnp.transpose(pooled, (0, 3, 1, 2)), before_nchw


def _reference(x, w1, b1, w2, b2):
    """Pure-JAX reference (lax.conv / reduce_window) for correctness check."""
    dn = lax.conv_dimension_numbers(x.shape, w1.shape, ("NCHW", "OIHW", "NCHW"))
    y = lax.conv_general_dilated(x, w1, (1, 1), ((1, 1), (1, 1)),
                                 dimension_numbers=dn)
    y = jnp.maximum(y + b1[None, :, None, None], 0.0)
    y = lax.conv_general_dilated(y, w2, (1, 1), ((1, 1), (1, 1)),
                                 dimension_numbers=dn)
    before = jnp.maximum(y + b2[None, :, None, None], 0.0)
    pooled = lax.reduce_window(before, -jnp.inf, lax.max,
                               (1, 1, 2, 2), (1, 1, 2, 2), "VALID")
    return pooled, before


if __name__ == "__main__":
    key = jax.random.PRNGKey(0)
    k_x, k_w1, k_b1, k_w2, k_b2 = jax.random.split(key, 5)

    N, Cin, Cout, H, W = 2, 4, 8, 16, 16
    x = jax.random.normal(k_x, (N, Cin, H, W), dtype=jnp.float32)
    w1 = jax.random.normal(k_w1, (Cout, Cin, 3, 3), dtype=jnp.float32) * 0.1
    b1 = jax.random.normal(k_b1, (Cout,), dtype=jnp.float32) * 0.1
    w2 = jax.random.normal(k_w2, (Cout, Cout, 3, 3), dtype=jnp.float32) * 0.1
    b2 = jax.random.normal(k_b2, (Cout,), dtype=jnp.float32) * 0.1

    pooled, before = jax.block_until_ready(
        down_conv(x, w1, b1, w2, b2, pooling=True))

    ref_pooled, ref_before = _reference(x, w1, b1, w2, b2)
    assert pooled.shape == (N, Cout, H // 2, W // 2)
    assert before.shape == (N, Cout, H, W)
    assert jnp.allclose(before, ref_before, atol=1e-4, rtol=1e-4)
    assert jnp.allclose(pooled, ref_pooled, atol=1e-4, rtol=1e-4)

    print("KERNEL_OK")
</pallas_src>

<mosaic_0001>
module attributes {stable_mosaic.version = 11 : i64} {
  func.func @_downconv_kernel(%arg0: i32, %arg1: memref<1x16x16x128xf32, #tpu.memory_space<vmem>>, %arg2: memref<3x384x128xf32, #tpu.memory_space<vmem>>, %arg3: memref<1x128xf32, #tpu.memory_space<vmem>>, %arg4: memref<3x384x128xf32, #tpu.memory_space<vmem>>, %arg5: memref<1x128xf32, #tpu.memory_space<vmem>>, %arg6: memref<1x8x8x128xf32, #tpu.memory_space<vmem>>, %arg7: memref<1x16x16x128xf32, #tpu.memory_space<vmem>>, %arg8: memref<18x18x128xf32, #tpu.memory_space<vmem>>, %arg9: memref<18x18x128xf32, #tpu.memory_space<vmem>>) attributes {dimension_semantics = [#tpu.dimension_semantics<parallel>], iteration_bounds = array<i64: 2>, scalar_prefetch = 0 : i64, scratch_operands = 2 : i64, tpu.core_type = #tpu.core_type<tc>, window_params = [{transform_indices = @transform_0, window_bounds = array<i64: 1, 16, 16, 128>}, {pipeline_mode = #tpu.pipeline_mode<synchronous>, transform_indices = @transform_1, window_bounds = array<i64: 3, 384, 128>}, {pipeline_mode = #tpu.pipeline_mode<synchronous>, transform_indices = @transform_2, window_bounds = array<i64: 1, 128>}, {pipeline_mode = #tpu.pipeline_mode<synchronous>, transform_indices = @transform_3, window_bounds = array<i64: 3, 384, 128>}, {pipeline_mode = #tpu.pipeline_mode<synchronous>, transform_indices = @transform_4, window_bounds = array<i64: 1, 128>}, {transform_indices = @transform_5, window_bounds = array<i64: 1, 8, 8, 128>}, {transform_indices = @transform_6, window_bounds = array<i64: 1, 16, 16, 128>}]} {
    %cst = arith.constant 0.000000e+00 : f32
    %0 = vector.broadcast %cst : f32 to vector<1x18x128xf32>
    %cst_0 = arith.constant 0.000000e+00 : f32
    %1 = vector.broadcast %cst_0 : f32 to vector<18x1x128xf32>
    %c0 = arith.constant 0 : index
    %c0_1 = arith.constant 0 : index
    %c0_2 = arith.constant 0 : index
    %2 = vector.load %arg8[%c0, %c0_1, %c0_2] : memref<18x18x128xf32, #tpu.memory_space<vmem>>, vector<1x18x128xf32>
    tpu.vector_store %arg8[%c0, %c0_1, %c0_2], %0 {strides = array<i32>} : memref<18x18x128xf32, #tpu.memory_space<vmem>>, vector<1x18x128xf32>,
    %c17 = arith.constant 17 : index
    %c0_3 = arith.constant 0 : index
    %c0_4 = arith.constant 0 : index
    %3 = vector.load %arg8[%c17, %c0_3, %c0_4] : memref<18x18x128xf32, #tpu.memory_space<vmem>>, vector<1x18x128xf32>
    tpu.vector_store %arg8[%c17, %c0_3, %c0_4], %0 {strides = array<i32>} : memref<18x18x128xf32, #tpu.memory_space<vmem>>, vector<1x18x128xf32>,
    %c0_5 = arith.constant 0 : index
    %c0_6 = arith.constant 0 : index
    %c0_7 = arith.constant 0 : index
    %4 = vector.load %arg8[%c0_5, %c0_6, %c0_7] : memref<18x18x128xf32, #tpu.memory_space<vmem>>, vector<18x1x128xf32>
    tpu.vector_store %arg8[%c0_5, %c0_6, %c0_7], %1 {strides = array<i32>} : memref<18x18x128xf32, #tpu.memory_space<vmem>>, vector<18x1x128xf32>,
    %c0_8 = arith.constant 0 : index
    %c17_9 = arith.constant 17 : index
    %c0_10 = arith.constant 0 : index
    %5 = vector.load %arg8[%c0_8, %c17_9, %c0_10] : memref<18x18x128xf32, #tpu.memory_space<vmem>>, vector<18x1x128xf32>
    tpu.vector_store %arg8[%c0_8, %c17_9, %c0_10], %1 {strides = array<i32>} : memref<18x18x128xf32, #tpu.memory_space<vmem>>, vector<18x1x128xf32>,
    %cst_11 = arith.constant 0.000000e+00 : f32
    %6 = vector.broadcast %cst_11 : f32 to vector<1x18x128xf32>
    %cst_12 = arith.constant 0.000000e+00 : f32
    %7 = vector.broadcast %cst_12 : f32 to vector<18x1x128xf32>
    %c0_13 = arith.constant 0 : index
    %c0_14 = arith.constant 0 : index
    %c0_15 = arith.constant 0 : index
    %8 = vector.load %arg9[%c0_13, %c0_14, %c0_15] : memref<18x18x128xf32, #tpu.memory_space<vmem>>, vector<1x18x128xf32>
    tpu.vector_store %arg9[%c0_13, %c0_14, %c0_15], %6 {strides = array<i32>} : memref<18x18x128xf32, #tpu.memory_space<vmem>>, vector<1x18x128xf32>,
    %c17_16 = arith.constant 17 : index
    %c0_17 = arith.constant 0 : index
    %c0_18 = arith.constant 0 : index
    %9 = vector.load %arg9[%c17_16, %c0_17, %c0_18] : memref<18x18x128xf32, #tpu.memory_space<vmem>>, vector<1x18x128xf32>
    tpu.vector_store %arg9[%c17_16, %c0_17, %c0_18], %6 {strides = array<i32>} : memref<18x18x128xf32, #tpu.memory_space<vmem>>, vector<1x18x128xf32>,
    %c0_19 = arith.constant 0 : index
    %c0_20 = arith.constant 0 : index
    %c0_21 = arith.constant 0 : index
    %10 = vector.load %arg9[%c0_19, %c0_20, %c0_21] : memref<18x18x128xf32, #tpu.memory_space<vmem>>, vector<18x1x128xf32>
    tpu.vector_store %arg9[%c0_19, %c0_20, %c0_21], %7 {strides = array<i32>} : memref<18x18x128xf32, #tpu.memory_space<vmem>>, vector<18x1x128xf32>,
    %c0_22 = arith.constant 0 : index
    %c17_23 = arith.constant 17 : index
    %c0_24 = arith.constant 0 : index
    %11 = vector.load %arg9[%c0_22, %c17_23, %c0_24] : memref<18x18x128xf32, #tpu.memory_space<vmem>>, vector<18x1x128xf32>
    tpu.vector_store %arg9[%c0_22, %c17_23, %c0_24], %7 {strides = array<i32>} : memref<18x18x128xf32, #tpu.memory_space<vmem>>, vector<18x1x128xf32>,
    %c0_25 = arith.constant 0 : index
    %c0_26 = arith.constant 0 : index
    %c0_27 = arith.constant 0 : index
    %c0_28 = arith.constant 0 : index
    %12 = vector.load %arg1[%c0_25, %c0_26, %c0_27, %c0_28] : memref<1x16x16x128xf32, #tpu.memory_space<vmem>>, vector<1x16x16x128xf32>
    %13 = vector.shape_cast %12 : vector<1x16x16x128xf32> to vector<16x16x128xf32>
    %c1 = arith.constant 1 : index
    %c1_29 = arith.constant 1 : index
    %c0_30 = arith.constant 0 : index
    %14 = vector.load %arg8[%c1, %c1_29, %c0_30] : memref<18x18x128xf32, #tpu.memory_space<vmem>>, vector<16x16x128xf32>
    tpu.vector_store %arg8[%c1, %c1_29, %c0_30], %13 {strides = array<i32>} : memref<18x18x128xf32, #tpu.memory_space<vmem>>, vector<16x16x128xf32>,
    %c0_31 = arith.constant 0 : index
    %c0_32 = arith.constant 0 : index
    %c0_33 = arith.constant 0 : index
    %15 = vector.load %arg8[%c0_31, %c0_32, %c0_33] : memref<18x18x128xf32, #tpu.memory_space<vmem>>, vector<18x16x128xf32>
    %c0_34 = arith.constant 0 : index
    %c1_35 = arith.constant 1 : index
    %c0_36 = arith.constant 0 : index
    %16 = vector.load %arg8[%c0_34, %c1_35, %c0_36] : memref<18x18x128xf32, #tpu.memory_space<vmem>>, vector<18x16x128xf32>
    %c0_37 = arith.constant 0 : index
    %c2 = arith.constant 2 : index
    %c0_38 = arith.constant 0 : index
    %17 = vector.load %arg8[%c0_37, %c2, %c0_38] : memref<18x18x128xf32, #tpu.memory_space<vmem>>, vector<18x16x128xf32>
    %18 = tpu.concatenate %15, %16, %17 in 2 : vector<18x16x128xf32>, vector<18x16x128xf32>, vector<18x16x128xf32> -> vector<18x16x384xf32>
    %19 = vector.shape_cast %18 : vector<18x16x384xf32> to vector<288x384xf32>
    %cst_39 = arith.constant 0.000000e+00 : f32
    %20 = vector.broadcast %cst_39 : f32 to vector<256x128xf32>
    %21 = vector.extract_strided_slice %19 {offsets = [0, 0], sizes = [256, 384], strides = [1, 1]} : vector<288x384xf32> to vector<256x384xf32>
    %c0_40 = arith.constant 0 : index
    %c0_41 = arith.constant 0 : index
    %c0_42 = arith.constant 0 : index
    %22 = vector.load %arg2[%c0_40, %c0_41, %c0_42] : memref<3x384x128xf32, #tpu.memory_space<vmem>>, vector<1x384x128xf32>
    %23 = vector.shape_cast %22 : vector<1x384x128xf32> to vector<384x128xf32>
    %cst_43 = arith.constant dense<0.000000e+00> : vector<256x128xf32>
    %24 = tpu.matmul %21, %23, %cst_43 {dimension_numbers = #tpu.dot_dimension_numbers<[1], [0], [0], [1], [0, 0, 1, 1], [], []>} : vector<256x384xf32>, vector<384x128xf32>, vector<256x128xf32> -> vector<256x128xf32>
    %25 = arith.addf %20, %24 : vector<256x128xf32>
    %26 = vector.extract_strided_slice %19 {offsets = [16, 0], sizes = [256, 384], strides = [1, 1]} : vector<288x384xf32> to vector<256x384xf32>
    %c1_44 = arith.constant 1 : index
    %c0_45 = arith.constant 0 : index
    %c0_46 = arith.constant 0 : index
    %27 = vector.load %arg2[%c1_44, %c0_45, %c0_46] : memref<3x384x128xf32, #tpu.memory_space<vmem>>, vector<1x384x128xf32>
    %28 = vector.shape_cast %27 : vector<1x384x128xf32> to vector<384x128xf32>
    %cst_47 = arith.constant dense<0.000000e+00> : vector<256x128xf32>
    %29 = tpu.matmul %26, %28, %cst_47 {dimension_numbers = #tpu.dot_dimension_numbers<[1], [0], [0], [1], [0, 0, 1, 1], [], []>} : vector<256x384xf32>, vector<384x128xf32>, vector<256x128xf32> -> vector<256x128xf32>
    %30 = arith.addf %25, %29 : vector<256x128xf32>
    %31 = vector.extract_strided_slice %19 {offsets = [32, 0], sizes = [256, 384], strides = [1, 1]} : vector<288x384xf32> to vector<256x384xf32>
    %c2_48 = arith.constant 2 : index
    %c0_49 = arith.constant 0 : index
    %c0_50 = arith.constant 0 : index
    %32 = vector.load %arg2[%c2_48, %c0_49, %c0_50] : memref<3x384x128xf32, #tpu.memory_space<vmem>>, vector<1x384x128xf32>
    %33 = vector.shape_cast %32 : vector<1x384x128xf32> to vector<384x128xf32>
    %cst_51 = arith.constant dense<0.000000e+00> : vector<256x128xf32>
    %34 = tpu.matmul %31, %33, %cst_51 {dimension_numbers = #tpu.dot_dimension_numbers<[1], [0], [0], [1], [0, 0, 1, 1], [], []>} : vector<256x384xf32>, vector<384x128xf32>, vector<256x128xf32> -> vector<256x128xf32>
    %35 = arith.addf %30, %34 : vector<256x128xf32>
    %c0_52 = arith.constant 0 : index
    %c0_53 = arith.constant 0 : index
    %36 = vector.load %arg3[%c0_52, %c0_53] : memref<1x128xf32, #tpu.memory_space<vmem>>, vector<1x128xf32>
    %37 = vector.shape_cast %36 : vector<1x128xf32> to vector<128xf32>
    %38 = vector.shape_cast %37 : vector<128xf32> to vector<1x128xf32>
    %39 = vector.broadcast %38 : vector<1x128xf32> to vector<256x128xf32>
    %40 = arith.addf %35, %39 : vector<256x128xf32>
    %cst_54 = arith.constant 0.000000e+00 : f32
    %41 = vector.broadcast %cst_54 : f32 to vector<256x128xf32>
    %42 = arith.maximumf %40, %41 : vector<256x128xf32>
    %43 = vector.shape_cast %42 : vector<256x128xf32> to vector<16x16x128xf32>
    %c1_55 = arith.constant 1 : index
    %c1_56 = arith.constant 1 : index
    %c0_57 = arith.constant 0 : index
    %44 = vector.load %arg9[%c1_55, %c1_56, %c0_57] : memref<18x18x128xf32, #tpu.memory_space<vmem>>, vector<16x16x128xf32>
    tpu.vector_store %arg9[%c1_55, %c1_56, %c0_57], %43 {strides = array<i32>} : memref<18x18x128xf32, #tpu.memory_space<vmem>>, vector<16x16x128xf32>,
    %c0_58 = arith.constant 0 : index
    %c0_59 = arith.constant 0 : index
    %c0_60 = arith.constant 0 : index
    %45 = vector.load %arg9[%c0_58, %c0_59, %c0_60] : memref<18x18x128xf32, #tpu.memory_space<vmem>>, vector<18x16x128xf32>
    %c0_61 = arith.constant 0 : index
    %c1_62 = arith.constant 1 : index
    %c0_63 = arith.constant 0 : index
    %46 = vector.load %arg9[%c0_61, %c1_62, %c0_63] : memref<18x18x128xf32, #tpu.memory_space<vmem>>, vector<18x16x128xf32>
    %c0_64 = arith.constant 0 : index
    %c2_65 = arith.constant 2 : index
    %c0_66 = arith.constant 0 : index
    %47 = vector.load %arg9[%c0_64, %c2_65, %c0_66] : memref<18x18x128xf32, #tpu.memory_space<vmem>>, vector<18x16x128xf32>
    %48 = tpu.concatenate %45, %46, %47 in 2 : vector<18x16x128xf32>, vector<18x16x128xf32>, vector<18x16x128xf32> -> vector<18x16x384xf32>
    %49 = vector.shape_cast %48 : vector<18x16x384xf32> to vector<288x384xf32>
    %cst_67 = arith.constant 0.000000e+00 : f32
    %50 = vector.broadcast %cst_67 : f32 to vector<256x128xf32>
    %51 = vector.extract_strided_slice %49 {offsets = [0, 0], sizes = [256, 384], strides = [1, 1]} : vector<288x384xf32> to vector<256x384xf32>
    %c0_68 = arith.constant 0 : index
    %c0_69 = arith.constant 0 : index
    %c0_70 = arith.constant 0 : index
    %52 = vector.load %arg4[%c0_68, %c0_69, %c0_70] : memref<3x384x128xf32, #tpu.memory_space<vmem>>, vector<1x384x128xf32>
    %53 = vector.shape_cast %52 : vector<1x384x128xf32> to vector<384x128xf32>
    %cst_71 = arith.constant dense<0.000000e+00> : vector<256x128xf32>
    %54 = tpu.matmul %51, %53, %cst_71 {dimension_numbers = #tpu.dot_dimension_numbers<[1], [0], [0], [1], [0, 0, 1, 1], [], []>} : vector<256x384xf32>, vector<384x128xf32>, vector<256x128xf32> -> vector<256x128xf32>
    %55 = arith.addf %50, %54 : vector<256x128xf32>
    %56 = vector.extract_strided_slice %49 {offsets = [16, 0], sizes = [256, 384], strides = [1, 1]} : vector<288x384xf32> to vector<256x384xf32>
    %c1_72 = arith.constant 1 : index
    %c0_73 = arith.constant 0 : index
    %c0_74 = arith.constant 0 : index
    %57 = vector.load %arg4[%c1_72, %c0_73, %c0_74] : memref<3x384x128xf32, #tpu.memory_space<vmem>>, vector<1x384x128xf32>
    %58 = vector.shape_cast %57 : vector<1x384x128xf32> to vector<384x128xf32>
    %cst_75 = arith.constant dense<0.000000e+00> : vector<256x128xf32>
    %59 = tpu.matmul %56, %58, %cst_75 {dimension_numbers = #tpu.dot_dimension_numbers<[1], [0], [0], [1], [0, 0, 1, 1], [], []>} : vector<256x384xf32>, vector<384x128xf32>, vector<256x128xf32> -> vector<256x128xf32>
    %60 = arith.addf %55, %59 : vector<256x128xf32>
    %61 = vector.extract_strided_slice %49 {offsets = [32, 0], sizes = [256, 384], strides = [1, 1]} : vector<288x384xf32> to vector<256x384xf32>
    %c2_76 = arith.constant 2 : index
    %c0_77 = arith.constant 0 : index
    %c0_78 = arith.constant 0 : index
    %62 = vector.load %arg4[%c2_76, %c0_77, %c0_78] : memref<3x384x128xf32, #tpu.memory_space<vmem>>, vector<1x384x128xf32>
    %63 = vector.shape_cast %62 : vector<1x384x128xf32> to vector<384x128xf32>
    %cst_79 = arith.constant dense<0.000000e+00> : vector<256x128xf32>
    %64 = tpu.matmul %61, %63, %cst_79 {dimension_numbers = #tpu.dot_dimension_numbers<[1], [0], [0], [1], [0, 0, 1, 1], [], []>} : vector<256x384xf32>, vector<384x128xf32>, vector<256x128xf32> -> vector<256x128xf32>
    %65 = arith.addf %60, %64 : vector<256x128xf32>
    %c0_80 = arith.constant 0 : index
    %c0_81 = arith.constant 0 : index
    %66 = vector.load %arg5[%c0_80, %c0_81] : memref<1x128xf32, #tpu.memory_space<vmem>>, vector<1x128xf32>
    %67 = vector.shape_cast %66 : vector<1x128xf32> to vector<128xf32>
    %68 = vector.shape_cast %67 : vector<128xf32> to vector<1x128xf32>
    %69 = vector.broadcast %68 : vector<1x128xf32> to vector<256x128xf32>
    %70 = arith.addf %65, %69 : vector<256x128xf32>
    %cst_82 = arith.constant 0.000000e+00 : f32
    %71 = vector.broadcast %cst_82 : f32 to vector<256x128xf32>
    %72 = arith.maximumf %70, %71 : vector<256x128xf32>
    %73 = vector.shape_cast %72 : vector<256x128xf32> to vector<16x16x128xf32>
    %c0_83 = arith.constant 0 : index
    %c0_84 = arith.constant 0 : index
    %c0_85 = arith.constant 0 : index
    %c0_86 = arith.constant 0 : index
    %74 = vector.load %arg7[%c0_83, %c0_84, %c0_85, %c0_86] : memref<1x16x16x128xf32, #tpu.memory_space<vmem>>, vector<1x16x16x128xf32>
    %75 = vector.shape_cast %74 : vector<1x16x16x128xf32> to vector<16x16x128xf32>
    %76 = vector.shape_cast %73 : vector<16x16x128xf32> to vector<1x16x16x128xf32>
    tpu.vector_store %arg7[%c0_83, %c0_84, %c0_85, %c0_86], %76 {strides = array<i32>} : memref<1x16x16x128xf32, #tpu.memory_space<vmem>>, vector<1x16x16x128xf32>,
    %77 = vector.shape_cast %73 : vector<16x16x128xf32> to vector<8x2x16x128xf32>
    %78 = vector.extract_strided_slice %77 {offsets = [0, 0, 0, 0], sizes = [8, 1, 16, 128], strides = [1, 1, 1, 1]} : vector<8x2x16x128xf32> to vector<8x1x16x128xf32>
    %79 = vector.shape_cast %78 : vector<8x1x16x128xf32> to vector<8x16x128xf32>
    %80 = vector.extract_strided_slice %77 {offsets = [0, 1, 0, 0], sizes = [8, 1, 16, 128], strides = [1, 1, 1, 1]} : vector<8x2x16x128xf32> to vector<8x1x16x128xf32>
    %81 = vector.shape_cast %80 : vector<8x1x16x128xf32> to vector<8x16x128xf32>
    %82 = arith.maximumf %79, %81 : vector<8x16x128xf32>
    %83 = vector.shape_cast %82 : vector<8x16x128xf32> to vector<8x8x2x128xf32>
    %84 = vector.extract_strided_slice %83 {offsets = [0, 0, 0, 0], sizes = [8, 8, 1, 128], strides = [1, 1, 1, 1]} : vector<8x8x2x128xf32> to vector<8x8x1x128xf32>
    %85 = vector.shape_cast %84 : vector<8x8x1x128xf32> to vector<8x8x128xf32>
    %86 = vector.extract_strided_slice %83 {offsets = [0, 0, 1, 0], sizes = [8, 8, 1, 128], strides = [1, 1, 1, 1]} : vector<8x8x2x128xf32> to vector<8x8x1x128xf32>
    %87 = vector.shape_cast %86 : vector<8x8x1x128xf32> to vector<8x8x128xf32>
    %88 = arith.maximumf %85, %87 : vector<8x8x128xf32>
    %c0_87 = arith.constant 0 : index
    %c0_88 = arith.constant 0 : index
    %c0_89 = arith.constant 0 : index
    %c0_90 = arith.constant 0 : index
    %89 = vector.load %arg6[%c0_87, %c0_88, %c0_89, %c0_90] : memref<1x8x8x128xf32, #tpu.memory_space<vmem>>, vector<1x8x8x128xf32>
    %90 = vector.shape_cast %89 : vector<1x8x8x128xf32> to vector<8x8x128xf32>
    %91 = vector.shape_cast %88 : vector<8x8x128xf32> to vector<1x8x8x128xf32>
    tpu.vector_store %arg6[%c0_87, %c0_88, %c0_89, %c0_90], %91 {strides = array<i32>} : memref<1x8x8x128xf32, #tpu.memory_space<vmem>>, vector<1x8x8x128xf32>,
    return
  }
  func.func @transform_0(%arg0: i32) -> (i32, i32, i32, i32) {
    %c0_i32 = arith.constant 0 : i32
    %c0_i32_0 = arith.constant 0 : i32
    %c0_i32_1 = arith.constant 0 : i32
    %c0_i32_2 = arith.constant 0 : i32
    return %arg0, %c0_i32, %c0_i32_0, %c0_i32_1 : i32, i32, i32, i32
  }
  func.func @transform_1(%arg0: i32) -> (i32, i32, i32) {
    %c0_i32 = arith.constant 0 : i32
    %c0_i32_0 = arith.constant 0 : i32
    %c0_i32_1 = arith.constant 0 : i32
    %c0_i32_2 = arith.constant 0 : i32
    return %c0_i32, %c0_i32_0, %c0_i32_1 : i32, i32, i32
  }
  func.func @transform_2(%arg0: i32) -> (i32, i32) {
    %c0_i32 = arith.constant 0 : i32
    %c0_i32_0 = arith.constant 0 : i32
    %c0_i32_1 = arith.constant 0 : i32
    return %c0_i32, %c0_i32_0 : i32, i32
  }
  func.func @transform_3(%arg0: i32) -> (i32, i32, i32) {
    %c0_i32 = arith.constant 0 : i32
    %c0_i32_0 = arith.constant 0 : i32
    %c0_i32_1 = arith.constant 0 : i32
    %c0_i32_2 = arith.constant 0 : i32
    return %c0_i32, %c0_i32_0, %c0_i32_1 : i32, i32, i32
  }
  func.func @transform_4(%arg0: i32) -> (i32, i32) {
    %c0_i32 = arith.constant 0 : i32
    %c0_i32_0 = arith.constant 0 : i32
    %c0_i32_1 = arith.constant 0 : i32
    return %c0_i32, %c0_i32_0 : i32, i32
  }
  func.func @transform_5(%arg0: i32) -> (i32, i32, i32, i32) {
    %c0_i32 = arith.constant 0 : i32
    %c0_i32_0 = arith.constant 0 : i32
    %c0_i32_1 = arith.constant 0 : i32
    %c0_i32_2 = arith.constant 0 : i32
    return %arg0, %c0_i32, %c0_i32_0, %c0_i32_1 : i32, i32, i32, i32
  }
  func.func @transform_6(%arg0: i32) -> (i32, i32, i32, i32) {
    %c0_i32 = arith.constant 0 : i32
    %c0_i32_0 = arith.constant 0 : i32
    %c0_i32_1 = arith.constant 0 : i32
    %c0_i32_2 = arith.constant 0 : i32
    return %arg0, %c0_i32, %c0_i32_0, %c0_i32_1 : i32, i32, i32, i32
  }
}

</mosaic_0001>

<llo_original>
// kernel: down_conv.1
$region0: #{down_conv.1}
  #allocation0 [shape = 'u32[]', space=smem, size = 0x4, offset = 0x4, fixed_abs, tag = 'smem constant byte address 0x4 - core index']
  #allocation1 [shape = 'u32[144,128]{1,0:T(1,128)}', space=vmem, size = 0x12000, scoped, tag = 'internal scratch']
  #allocation2 [shape = 'f32[18,18,128]{2,1,0:T(8,128)}', space=vmem, size = 0x36000, scoped, tag = 'scratch operand']
  #allocation3 [shape = 'f32[18,18,128]{2,1,0:T(8,128)}', space=vmem, size = 0x36000, scoped, tag = 'scratch operand']
  %s0 = inlined_call_operand.vmem [shape: f32[2,16,16,128], index: 0, kind: input, shape index: {}]
  %s1 = inlined_call_operand.vmem [shape: f32[3,384,128], index: 1, kind: input, shape index: {}]
  %s2 = inlined_call_operand.vmem [shape: f32[1,128], index: 2, kind: input, shape index: {}]
  %s3 = inlined_call_operand.vmem [shape: f32[3,384,128], index: 3, kind: input, shape index: {}]
  %s4 = inlined_call_operand.vmem [shape: f32[1,128], index: 4, kind: input, shape index: {}]
  %s5 = inlined_call_operand.vmem [shape: f32[2,8,8,128], index: 5, kind: output, shape index: {0}]
  %s6 = inlined_call_operand.vmem [shape: f32[2,16,16,128], index: 6, kind: output, shape index: {1}]
  %7 = xla_tuple %s5, %s6
  %s8 = sld [smem:[#allocation0]]
  $region61: #{down_conv.1} parent=0
    _
  %s10 = ssub.s32 1, %s8
  %s11 = scalar_select 0, %s10, %s8
  loop: start=0, step=1, limit=4
  $region2: #{down_conv.1} parent=0 // loop_pre_header
    _
  $region3: #{down_conv.1} parent=0 // loop_header
    %s13 = sphi 0, %s17
    %p14 = scmp.ge.s32.totalorder %s13, 4
    %s23 = sphi 0, %s25
    %s26 = sphi 0, %s23
    %s27 = sphi 0, %s26
    %s43 = sphi 0, %s27
    %s47 = sphi 0, %s47
    %s49 = sphi 0, %s47
    %s50 = sphi 0, %s49
    %s64 = sphi 0, %s50
    %s68 = sphi 0, %s68
    %s70 = sphi 0, %s68
    %s71 = sphi 0, %s70
    %s85 = sphi 0, %s71
    %s89 = sphi 0, %s89
    %s91 = sphi 0, %s89
    %s92 = sphi 0, %s91
    %s106 = sphi 0, %s92
    %s110 = sphi 0, %s110
    %s112 = sphi 0, %s110
    %s113 = sphi 0, %s112
    %s127 = sphi 0, %s113
    %s133 = sphi 0, %s135
    %s136 = sphi 0, %s133
    %s137 = sphi 0, %s136
    %s153 = sphi 0, %s137
    %s159 = sphi 0, %s161
    %s162 = sphi 0, %s159
    %s163 = sphi 0, %s162
    %s179 = sphi 0, %s163
  $region4: #{down_conv.1} parent=0 // loop_header_branch
    %16 = sbr.rel (%p14) target = $region8
  $region5: #{down_conv.1} parent=0 // loop_body
    %s18 = ssub.s32 %s13, 1
    %s19 = ssub.s32 %s13, 2
    %s20 = sadd.s32 %s13, 1
    %s21 = ssub.s32 %s13, %s20
    %p22 = scmp.eq.s32.totalorder %s21, 0
    %s24 = sadd.s32 %s23, 1
    %s25 = scalar_select %p22, %s23, %s24
    %p28 = pneg %p22
    %p29 = scmp.eq.s32.totalorder %s13, 1
    %p30 = por %p28, %p29
    %p31 = scmp.ne.s32.totalorder %s23, %s26
    %p32 = scmp.eq.s32.totalorder %s13, 0
    %p33 = por %p31, %p32
    %p34 = scmp.ne.s32.totalorder %s23, %s26
    %p35 = scmp.eq.s32.totalorder %s18, 1
    %p36 = por %p34, %p35
    %p37 = scmp.ne.s32.totalorder %s26, %s27
    %p38 = scmp.eq.s32.totalorder %s18, 0
    %p39 = por %p37, %p38
    %p40 = scmp.ne.s32.totalorder %s26, %s27
    %p41 = scmp.eq.s32.totalorder %s19, 1
    %p42 = por %p40, %p41
    %p44 = scmp.ne.s32.totalorder %s27, %s43
    %p45 = scmp.eq.s32.totalorder %s19, 0
    %p46 = por %p44, %p45
    %s48 = sadd.s32 %s47, 1
    %p51 = scmp.eq.s32.totalorder %s13, 1
    %p52 = scmp.ne.s32.totalorder %s47, %s49
    %p53 = scmp.eq.s32.totalorder %s13, 0
    %p54 = por %p52, %p53
    %p55 = scmp.ne.s32.totalorder %s47, %s49
    %p56 = scmp.eq.s32.totalorder %s18, 1
    %p57 = por %p55, %p56
    %p58 = scmp.ne.s32.totalorder %s49, %s50
    %p59 = scmp.eq.s32.totalorder %s18, 0
    %p60 = por %p58, %p59
    %p61 = scmp.ne.s32.totalorder %s49, %s50
    %p62 = scmp.eq.s32.totalorder %s19, 1
    %p63 = por %p61, %p62
    %p65 = scmp.ne.s32.totalorder %s50, %s64
    %p66 = scmp.eq.s32.totalorder %s19, 0
    %p67 = por %p65, %p66
    %s69 = sadd.s32 %s68, 1
    %p72 = scmp.eq.s32.totalorder %s13, 1
    %p73 = scmp.ne.s32.totalorder %s68, %s70
    %p74 = scmp.eq.s32.totalorder %s13, 0
    %p75 = por %p73, %p74
    %p76 = scmp.ne.s32.totalorder %s68, %s70
    %p77 = scmp.eq.s32.totalorder %s18, 1
    %p78 = por %p76, %p77
    %p79 = scmp.ne.s32.totalorder %s70, %s71
    %p80 = scmp.eq.s32.totalorder %s18, 0
    %p81 = por %p79, %p80
    %p82 = scmp.ne.s32.totalorder %s70, %s71
    %p83 = scmp.eq.s32.totalorder %s19, 1
    %p84 = por %p82, %p83
    %p86 = scmp.ne.s32.totalorder %s71, %s85
    %p87 = scmp.eq.s32.totalorder %s19, 0
    %p88 = por %p86, %p87
    %s90 = sadd.s32 %s89, 1
    %p93 = scmp.eq.s32.totalorder %s13, 1
    %p94 = scmp.ne.s32.totalorder %s89, %s91
    %p95 = scmp.eq.s32.totalorder %s13, 0
    %p96 = por %p94, %p95
    %p97 = scmp.ne.s32.totalorder %s89, %s91
    %p98 = scmp.eq.s32.totalorder %s18, 1
    %p99 = por %p97, %p98
    %p100 = scmp.ne.s32.totalorder %s91, %s92
    %p101 = scmp.eq.s32.totalorder %s18, 0
    %p102 = por %p100, %p101
    %p103 = scmp.ne.s32.totalorder %s91, %s92
    %p104 = scmp.eq.s32.totalorder %s19, 1
    %p105 = por %p103, %p104
    %p107 = scmp.ne.s32.totalorder %s92, %s106
    %p108 = scmp.eq.s32.totalorder %s19, 0
    %p109 = por %p107, %p108
    %s111 = sadd.s32 %s110, 1
    %p114 = scmp.eq.s32.totalorder %s13, 1
    %p115 = scmp.ne.s32.totalorder %s110, %s112
    %p116 = scmp.eq.s32.totalorder %s13, 0
    %p117 = por %p115, %p116
    %p118 = scmp.ne.s32.totalorder %s110, %s112
    %p119 = scmp.eq.s32.totalorder %s18, 1
    %p120 = por %p118, %p119
    %p121 = scmp.ne.s32.totalorder %s112, %s113
    %p122 = scmp.eq.s32.totalorder %s18, 0
    %p123 = por %p121, %p122
    %p124 = scmp.ne.s32.totalorder %s112, %s113
    %p125 = scmp.eq.s32.totalorder %s19, 1
    %p126 = por %p124, %p125
    %p128 = scmp.ne.s32.totalorder %s113, %s127
    %p129 = scmp.eq.s32.totalorder %s19, 0
    %p130 = por %p128, %p129
    %s131 = ssub.s32 %s13, %s20
    %p132 = scmp.eq.s32.totalorder %s131, 0
    %s134 = sadd.s32 %s133, 1
    %s135 = scalar_select %p132, %s133, %s134
    %p138 = pneg %p132
    %p139 = scmp.eq.s32.totalorder %s13, 1
    %p140 = por %p138, %p139
    %p141 = scmp.ne.s32.totalorder %s133, %s136
    %p142 = scmp.eq.s32.totalorder %s13, 0
    %p143 = por %p141, %p142
    %p144 = scmp.ne.s32.totalorder %s133, %s136
    %p145 = scmp.eq.s32.totalorder %s18, 1
    %p146 = por %p144, %p145
    %p147 = scmp.ne.s32.totalorder %s136, %s137
    %p148 = scmp.eq.s32.totalorder %s18, 0
    %p149 = por %p147, %p148
    %p150 = scmp.ne.s32.totalorder %s136, %s137
    %p151 = scmp.eq.s32.totalorder %s19, 1
    %p152 = por %p150, %p151
    %p154 = scmp.ne.s32.totalorder %s137, %s153
    %p155 = scmp.eq.s32.totalorder %s19, 0
    %p156 = por %p154, %p155
    %s157 = ssub.s32 %s13, %s20
    %p158 = scmp.eq.s32.totalorder %s157, 0
    %s160 = sadd.s32 %s159, 1
    %s161 = scalar_select %p158, %s159, %s160
    %p164 = pneg %p158
    %p165 = scmp.eq.s32.totalorder %s13, 1
    %p166 = por %p164, %p165
    %p167 = scmp.ne.s32.totalorder %s159, %s162
    %p168 = scmp.eq.s32.totalorder %s13, 0
    %p169 = por %p167, %p168
    %p170 = scmp.ne.s32.totalorder %s159, %s162
    %p171 = scmp.eq.s32.totalorder %s18, 1
    %p172 = por %p170, %p171
    %p173 = scmp.ne.s32.totalorder %s162, %s163
    %p174 = scmp.eq.s32.totalorder %s18, 0
    %p175 = por %p173, %p174
    %p176 = scmp.ne.s32.totalorder %s162, %s163
    %p177 = scmp.eq.s32.totalorder %s19, 1
    %p178 = por %p176, %p177
    %p180 = scmp.ne.s32.totalorder %s163, %s179
    %p181 = scmp.eq.s32.totalorder %s19, 0
    %p182 = por %p180, %p181
    %p183 = scmp.le.s32.totalorder 1, %s13
    %p184 = scmp.lt.s32.totalorder %s13, 3
    %p185 = pnand %p183, %p184
    %p186 = pneg %p185
    // Predicated region
    $region9: #{down_conv.1} parent=5 // pred_check
      _
    $region10: #{down_conv.1} parent=5 // pred_check_branch
      %188 = sbr.rel (%p185) target = $region12
    $region11: #{down_conv.1} parent=5 // pred_region
      %s189 = ssub.s32 %s13, 1
      // Predicated region
      $region13: #{down_conv.1} parent=11 // pred_check
        %p190 = pneg %p60
      $region14: #{down_conv.1} parent=11 // pred_check_branch
        %192 = sbr.rel (%p190) target = $region16
      $region15: #{down_conv.1} parent=11 // pred_region
        _
      $region16: #{down_conv.1} parent=11 // pred_fallthru
        _
      // Predicated region
      $region17: #{down_conv.1} parent=11 // pred_check
        %p193 = pneg %p81
      $region18: #{down_conv.1} parent=11 // pred_check_branch
        %195 = sbr.rel (%p193) target = $region20
      $region19: #{down_conv.1} parent=11 // pred_region
        _
      $region20: #{down_conv.1} parent=11 // pred_fallthru
        _
      // Predicated region
      $region21: #{down_conv.1} parent=11 // pred_check
        %p196 = pneg %p102
      $region22: #{down_conv.1} parent=11 // pred_check_branch
        %198 = sbr.rel (%p196) target = $region24
      $region23: #{down_conv.1} parent=11 // pred_region
        _
      $region24: #{down_conv.1} parent=11 // pred_fallthru
        _
      // Predicated region
      $region25: #{down_conv.1} parent=11 // pred_check
        %p199 = pneg %p123
      $region26: #{down_conv.1} parent=11 // pred_check_branch
        %201 = sbr.rel (%p199) target = $region28
      $region27: #{down_conv.1} parent=11 // pred_region
        _
      $region28: #{down_conv.1} parent=11 // pred_fallthru
        _
    $region12: #{down_conv.1} parent=5 // pred_fallthru
      _
    %p202 = scmp.lt.s32.totalorder %s13, 2
    // Predicated region
    $region29: #{down_conv.1} parent=5 // pred_check
      %p203 = pneg %p202
    $region30: #{down_conv.1} parent=5 // pred_check_branch
      %205 = sbr.rel (%p203) target = $region32
    $region31: #{down_conv.1} parent=5 // pred_region
      // Predicated region
      $region33: #{down_conv.1} parent=31 // pred_check
        %p206 = pneg %p33
      $region34: #{down_conv.1} parent=31 // pred_check_branch
        %208 = sbr.rel (%p206) target = $region36
      $region35: #{down_conv.1} parent=31 // pred_region
        %p209 = scmp.lt.s32.totalorder %s13, 1
        %s210 = scalar_select %p209, %s13, 1
        %s211 = smul.addr %s210, 32
        %s212 = smul.addr %s211, 8
        %s213 = scalar_lea.vmem %s0, %s212
      $region36: #{down_conv.1} parent=31 // pred_fallthru
        _
    $region32: #{down_conv.1} parent=5 // pred_fallthru
      _
    %p214 = scmp.le.s32.totalorder 1, %s13
    %p215 = scmp.lt.s32.totalorder %s13, 3
    %p216 = pnand %p214, %p215
    %p217 = pneg %p216
    // Predicated region
    $region37: #{down_conv.1} parent=5 // pred_check
      _
    $region38: #{down_conv.1} parent=5 // pred_check_branch
      %219 = sbr.rel (%p216) target = $region40
    $region39: #{down_conv.1} parent=5 // pred_region
      %s220 = ssub.s32 %s13, 1
      %p221 = scmp.lt.s32.totalorder %s18, 1
      %s222 = scalar_select %p221, %s18, 1
      %s223 = smul.addr %s222, 32
      %s224 = smul.addr %s223, 8
      %s225 = scalar_lea.vmem %s0, %s224
      %p226 = pneg %p39
      %p227 = pneg %p36
      %p228 = pneg %p60
      %p229 = pneg %p57
      %p230 = pneg %p81
      %p231 = pneg %p78
      %p232 = pneg %p102
      %p233 = pneg %p99
      %p234 = pneg %p123
      %p235 = pneg %p120
      %p236 = pneg %p149
      %p237 = pneg %p146
      %p238 = scmp.lt.s32.totalorder %s18, 1
      %s239 = scalar_select %p238, %s18, 1
      %s240 = smul.addr %s239, 8
      %s241 = smul.addr %s240, 8
      %s242 = scalar_lea.vmem %s5, %s241
      %p243 = pneg %p175
      %p244 = pneg %p172
      %p245 = scmp.lt.s32.totalorder %s18, 1
      %s246 = scalar_select %p245, %s18, 1
      %s247 = smul.addr %s246, 32
      %s248 = smul.addr %s247, 8
      %s249 = scalar_lea.vmem %s6, %s248
      %p250 = scmp.lt.s32.totalorder %s18, 1
      %s251 = scalar_select %p250, %s18, 1
      %s252 = smul.addr %s251, 32
      %s253 = smul.addr %s252, 8
      %s254 = scalar_lea.vmem %s0, %s253
      %p255 = scmp.lt.s32.totalorder %s18, 1
      %s256 = scalar_select %p255, %s18, 1
      %s257 = smul.addr %s256, 8
      %s258 = smul.addr %s257, 8
      %s259 = scalar_lea.vmem %s5, %s258
      %p260 = scmp.lt.s32.totalorder %s18, 1
      %s261 = scalar_select %p260, %s18, 1
      %s262 = smul.addr %s261, 32
      %s263 = smul.addr %s262, 8
      %s264 = scalar_lea.vmem %s6, %s263
      %265 = vst [vmem:[#allocation2] sm:$0xff] 0.0
      %266 = vst [vmem:[#allocation2 + $0x8] sm:$0xff] 0.0
      %267 = vst [vmem:[#allocation2 + $0x10] sm:$0x3] 0.0
      %s268 = scalar_lea.vmem [#allocation2], 408
      %269 = vst [vmem:[%s268] sm:$0xff] 0.0
      %270 = vst [vmem:[%s268 + $0x8] sm:$0xff] 0.0
      %271 = vst [vmem:[%s268 + $0x10] sm:$0x3] 0.0
      %272 = vst [vmem:[#allocation2] sm:$0x1] 0.0
      %273 = vst [vmem:[#allocation2 + $0x18] sm:$0x1] 0.0
      %274 = vst [vmem:[#allocation2 + $0x30] sm:$0x1] 0.0
      %275 = vst [vmem:[#allocation2 + $0x48] sm:$0x1] 0.0
      %276 = vst [vmem:[#allocation2 + $0x60] sm:$0x1] 0.0
      %277 = vst [vmem:[#allocation2 + $0x78] sm:$0x1] 0.0
      %278 = vst [vmem:[#allocation2 + $0x90] sm:$0x1] 0.0
      %279 = vst [vmem:[#allocation2 + $0xa8] sm:$0x1] 0.0
      %280 = vst [vmem:[#allocation2 + $0xc0] sm:$0x1] 0.0
      %281 = vst [vmem:[#allocation2 + $0xd8] sm:$0x1] 0.0
      %282 = vst [vmem:[#allocation2 + $0xf0] sm:$0x1] 0.0
      %283 = vst [vmem:[#allocation2 + $0x108] sm:$0x1] 0.0
      %284 = vst [vmem:[#allocation2 + $0x120] sm:$0x1] 0.0
      %285 = vst [vmem:[#allocation2 + $0x138] sm:$0x1] 0.0
      %286 = vst [vmem:[#allocation2 + $0x150] sm:$0x1] 0.0
      %287 = vst [vmem:[#allocation2 + $0x168] sm:$0x1] 0.0
      %288 = vst [vmem:[#allocation2 + $0x180] sm:$0x1] 0.0
      %289 = vst [vmem:[#allocation2 + $0x198] sm:$0x1] 0.0
      %290 = vst [vmem:[#allocation2 + $0x11] sm:$0x1] 0.0
      %291 = vst [vmem:[#allocation2 + $0x29] sm:$0x1] 0.0
      %292 = vst [vmem:[#allocation2 + $0x41] sm:$0x1] 0.0
      %293 = vst [vmem:[#allocation2 + $0x59] sm:$0x1] 0.0
      %294 = vst [vmem:[#allocation2 + $0x71] sm:$0x1] 0.0
      %295 = vst [vmem:[#allocation2 + $0x89] sm:$0x1] 0.0
      %296 = vst [vmem:[#allocation2 + $0xa1] sm:$0x1] 0.0
      %297 = vst [vmem:[#allocation2 + $0xb9] sm:$0x1] 0.0
      %298 = vst [vmem:[#allocation2 + $0xd1] sm:$0x1] 0.0
      %299 = vst [vmem:[#allocation2 + $0xe9] sm:$0x1] 0.0
      %300 = vst [vmem:[#allocation2 + $0x101] sm:$0x1] 0.0
      %301 = vst [vmem:[#allocation2 + $0x119] sm:$0x1] 0.0
      %302 = vst [vmem:[#allocation2 + $0x131] sm:$0x1] 0.0
      %303 = vst [vmem:[#allocation2 + $0x149] sm:$0x1] 0.0
      %304 = vst [vmem:[#allocation2 + $0x161] sm:$0x1] 0.0
      %305 = vst [vmem:[#allocation2 + $0x179] sm:$0x1] 0.0
      %306 = vst [vmem:[#allocation2 + $0x191] sm:$0x1] 0.0
      %307 = vst [vmem:[#allocation2 + $0x1a9] sm:$0x1] 0.0
      %308 = vst [vmem:[#allocation3] sm:$0xff] 0.0
      %309 = vst [vmem:[#allocation3 + $0x8] sm:$0xff] 0.0
      %310 = vst [vmem:[#allocation3 + $0x10] sm:$0x3] 0.0
      %s311 = scalar_lea.vmem [#allocation3], 408
      %312 = vst [vmem:[%s311] sm:$0xff] 0.0
      %313 = vst [vmem:[%s311 + $0x8] sm:$0xff] 0.0
      %314 = vst [vmem:[%s311 + $0x10] sm:$0x3] 0.0
      %315 = vst [vmem:[#allocation3] sm:$0x1] 0.0
      %316 = vst [vmem:[#allocation3 + $0x18] sm:$0x1] 0.0
      %317 = vst [vmem:[#allocation3 + $0x30] sm:$0x1] 0.0
      %318 = vst [vmem:[#allocation3 + $0x48] sm:$0x1] 0.0
      %319 = vst [vmem:[#allocation3 + $0x60] sm:$0x1] 0.0
      %320 = vst [vmem:[#allocation3 + $0x78] sm:$0x1] 0.0
      %321 = vst [vmem:[#allocation3 + $0x90] sm:$0x1] 0.0
      %322 = vst [vmem:[#allocation3 + $0xa8] sm:$0x1] 0.0
      %323 = vst [vmem:[#allocation3 + $0xc0] sm:$0x1] 0.0
      %324 = vst [vmem:[#allocation3 + $0xd8] sm:$0x1] 0.0
      %325 = vst [vmem:[#allocation3 + $0xf0] sm:$0x1] 0.0
      %326 = vst [vmem:[#allocation3 + $0x108] sm:$0x1] 0.0
      %327 = vst [vmem:[#allocation3 + $0x120] sm:$0x1] 0.0
      %328 = vst [vmem:[#allocation3 + $0x138] sm:$0x1] 0.0
      %329 = vst [vmem:[#allocation3 + $0x150] sm:$0x1] 0.0
      %330 = vst [vmem:[#allocation3 + $0x168] sm:$0x1] 0.0
      %331 = vst [vmem:[#allocation3 + $0x180] sm:$0x1] 0.0
      %332 = vst [vmem:[#allocation3 + $0x198] sm:$0x1] 0.0
      %333 = vst [vmem:[#allocation3 + $0x11] sm:$0x1] 0.0
      %334 = vst [vmem:[#allocation3 + $0x29] sm:$0x1] 0.0
      %335 = vst [vmem:[#allocation3 + $0x41] sm:$0x1] 0.0
      %336 = vst [vmem:[#allocation3 + $0x59] sm:$0x1] 0.0
      %337 = vst [vmem:[#allocation3 + $0x71] sm:$0x1] 0.0
      %338 = vst [vmem:[#allocation3 + $0x89] sm:$0x1] 0.0
      %339 = vst [vmem:[#allocation3 + $0xa1] sm:$0x1] 0.0
      %340 = vst [vmem:[#allocation3 + $0xb9] sm:$0x1] 0.0
      %341 = vst [vmem:[#allocation3 + $0xd1] sm:$0x1] 0.0
      %342 = vst [vmem:[#allocation3 + $0xe9] sm:$0x1] 0.0
      %343 = vst [vmem:[#allocation3 + $0x101] sm:$0x1] 0.0
      %344 = vst [vmem:[#allocation3 + $0x119] sm:$0x1] 0.0
      %345 = vst [vmem:[#allocation3 + $0x131] sm:$0x1] 0.0
      %346 = vst [vmem:[#allocation3 + $0x149] sm:$0x1] 0.0
      %347 = vst [vmem:[#allocation3 + $0x161] sm:$0x1] 0.0
      %348 = vst [vmem:[#allocation3 + $0x179] sm:$0x1] 0.0
      %349 = vst [vmem:[#allocation3 + $0x191] sm:$0x1] 0.0
      %350 = vst [vmem:[#allocation3 + $0x1a9] sm:$0x1] 0.0
      %v351 = vld [vmem:[%s254] sm:$0xff]
      %v352 = vld [vmem:[%s254 + $0x8] sm:$0xff]
      %v353 = vld [vmem:[%s254 + $0x10] sm:$0xff]
      %v354 = vld [vmem:[%s254 + $0x18] sm:$0xff]
      %v355 = vld [vmem:[%s254 + $0x20] sm:$0xff]
      %v356 = vld [vmem:[%s254 + $0x28] sm:$0xff]
      %v357 = vld [vmem:[%s254 + $0x30] sm:$0xff]
      %v358 = vld [vmem:[%s254 + $0x38] sm:$0xff]
      %v359 = vld [vmem:[%s254 + $0x40] sm:$0xff]
      %v360 = vld [vmem:[%s254 + $0x48] sm:$0xff]
      %v361 = vld [vmem:[%s254 + $0x50] sm:$0xff]
      %v362 = vld [vmem:[%s254 + $0x58] sm:$0xff]
      %v363 = vld [vmem:[%s254 + $0x60] sm:$0xff]
      %v364 = vld [vmem:[%s254 + $0x68] sm:$0xff]
      %v365 = vld [vmem:[%s254 + $0x70] sm:$0xff]
      %v366 = vld [vmem:[%s254 + $0x78] sm:$0xff]
      %v367 = vld [vmem:[%s254 + $0x80] sm:$0xff]
      %v368 = vld [vmem:[%s254 + $0x88] sm:$0xff]
      %v369 = vld [vmem:[%s254 + $0x90] sm:$0xff]
      %v370 = vld [vmem:[%s254 + $0x98] sm:$0xff]
      %v371 = vld [vmem:[%s254 + $0xa0] sm:$0xff]
      %v372 = vld [vmem:[%s254 + $0xa8] sm:$0xff]
      %v373 = vld [vmem:[%s254 + $0xb0] sm:$0xff]
      %v374 = vld [vmem:[%s254 + $0xb8] sm:$0xff]
      %v375 = vld [vmem:[%s254 + $0xc0] sm:$0xff]
      %v376 = vld [vmem:[%s254 + $0xc8] sm:$0xff]
      %v377 = vld [vmem:[%s254 + $0xd0] sm:$0xff]
      %v378 = vld [vmem:[%s254 + $0xd8] sm:$0xff]
      %v379 = vld [vmem:[%s254 + $0xe0] sm:$0xff]
      %v380 = vld [vmem:[%s254 + $0xe8] sm:$0xff]
      %v381 = vld [vmem:[%s254 + $0xf0] sm:$0xff]
      %v382 = vld [vmem:[%s254 + $0xf8] sm:$0xff]
      %s383 = scalar_lea.vmem [#allocation2], 24
      %384 = vst [vmem:[%s383 + $0x1] sm:$0xff] %v351
      %385 = vst [vmem:[%s383 + $0x9] sm:$0xff] %v352
      %386 = vst [vmem:[%s383 + $0x19] sm:$0xff] %v353
      %387 = vst [vmem:[%s383 + $0x21] sm:$0xff] %v354
      %388 = vst [vmem:[%s383 + $0x31] sm:$0xff] %v355
      %389 = vst [vmem:[%s383 + $0x39] sm:$0xff] %v356
      %390 = vst [vmem:[%s383 + $0x49] sm:$0xff] %v357
      %391 = vst [vmem:[%s383 + $0x51] sm:$0xff] %v358
      %392 = vst [vmem:[%s383 + $0x61] sm:$0xff] %v359
      %393 = vst [vmem:[%s383 + $0x69] sm:$0xff] %v360
      %394 = vst [vmem:[%s383 + $0x79] sm:$0xff] %v361
      %395 = vst [vmem:[%s383 + $0x81] sm:$0xff] %v362
      %396 = vst [vmem:[%s383 + $0x91] sm:$0xff] %v363
      %397 = vst [vmem:[%s383 + $0x99] sm:$0xff] %v364
      %398 = vst [vmem:[%s383 + $0xa9] sm:$0xff] %v365
      %399 = vst [vmem:[%s383 + $0xb1] sm:$0xff] %v366
      %400 = vst [vmem:[%s383 + $0xc1] sm:$0xff] %v367
      %401 = vst [vmem:[%s383 + $0xc9] sm:$0xff] %v368
      %402 = vst [vmem:[%s383 + $0xd9] sm:$0xff] %v369
      %403 = vst [vmem:[%s383 + $0xe1] sm:$0xff] %v370
      %404 = vst [vmem:[%s383 + $0xf1] sm:$0xff] %v371
      %405 = vst [vmem:[%s383 + $0xf9] sm:$0xff] %v372
      %406 = vst [vmem:[%s383 + $0x109] sm:$0xff] %v373
      %407 = vst [vmem:[%s383 + $0x111] sm:$0xff] %v374
      %408 = vst [vmem:[%s383 + $0x121] sm:$0xff] %v375
      %409 = vst [vmem:[%s383 + $0x129] sm:$0xff] %v376
      %410 = vst [vmem:[%s383 + $0x139] sm:$0xff] %v377
      %411 = vst [vmem:[%s383 + $0x141] sm:$0xff] %v378
      %412 = vst [vmem:[%s383 + $0x151] sm:$0xff] %v379
      %413 = vst [vmem:[%s383 + $0x159] sm:$0xff] %v380
      %414 = vst [vmem:[%s383 + $0x169] sm:$0xff] %v381
      %415 = vst [vmem:[%s383 + $0x171] sm:$0xff] %v382
      %v416 = vld [vmem:[#allocation2] sm:$0xff]
      %v417 = vld [vmem:[#allocation2 + $0x8] sm:$0xff]
      %v418 = vld [vmem:[#allocation2 + $0x18] sm:$0xff]
      %v419 = vld [vmem:[#allocation2 + $0x20] sm:$0xff]
      %v420 = vld [vmem:[#allocation2 + $0x30] sm:$0xff]
      %v421 = vld [vmem:[#allocation2 + $0x38] sm:$0xff]
      %v422 = vld [vmem:[#allocation2 + $0x48] sm:$0xff]
      %v423 = vld [vmem:[#allocation2 + $0x50] sm:$0xff]
      %v424 = vld [vmem:[#allocation2 + $0x60] sm:$0xff]
      %v425 = vld [vmem:[#allocation2 + $0x68] sm:$0xff]
      %v426 = vld [vmem:[#allocation2 + $0x78] sm:$0xff]
      %v427 = vld [vmem:[#allocation2 + $0x80] sm:$0xff]
      %v428 = vld [vmem:[#allocation2 + $0x90] sm:$0xff]
      %v429 = vld [vmem:[#allocation2 + $0x98] sm:$0xff]
      %v430 = vld [vmem:[#allocation2 + $0xa8] sm:$0xff]
      %v431 = vld [vmem:[#allocation2 + $0xb0] sm:$0xff]
      %v432 = vld [vmem:[#allocation2 + $0xc0] sm:$0xff]
      %v433 = vld [vmem:[#allocation2 + $0xc8] sm:$0xff]
      %v434 = vld [vmem:[#allocation2 + $0xd8] sm:$0xff]
      %v435 = vld [vmem:[#allocation2 + $0xe0] sm:$0xff]
      %v436 = vld [vmem:[#allocation2 + $0xf0] sm:$0xff]
      %v437 = vld [vmem:[#allocation2 + $0xf8] sm:$0xff]
      %v438 = vld [vmem:[#allocation2 + $0x108] sm:$0xff]
      %v439 = vld [vmem:[#allocation2 + $0x110] sm:$0xff]
      %v440 = vld [vmem:[#allocation2 + $0x120] sm:$0xff]
      %v441 = vld [vmem:[#allocation2 + $0x128] sm:$0xff]
      %v442 = vld [vmem:[#allocation2 + $0x138] sm:$0xff]
      %v443 = vld [vmem:[#allocation2 + $0x140] sm:$0xff]
      %v444 = vld [vmem:[#allocation2 + $0x150] sm:$0xff]
      %v445 = vld [vmem:[#allocation2 + $0x158] sm:$0xff]
      %v446 = vld [vmem:[#allocation2 + $0x168] sm:$0xff]
      %v447 = vld [vmem:[#allocation2 + $0x170] sm:$0xff]
      %v448 = vld [vmem:[#allocation2 + $0x180] sm:$0xff]
      %v449 = vld [vmem:[#allocation2 + $0x188] sm:$0xff]
      %v450 = vld [vmem:[#allocation2 + $0x198] sm:$0xff]
      %v451 = vld [vmem:[#allocation2 + $0x1a0] sm:$0xff]
      %v452 = vld [vmem:[#allocation2 + $0x1] sm:$0xff]
      %v453 = vld [vmem:[#allocation2 + $0x9] sm:$0xff]
      %v454 = vld [vmem:[#allocation2 + $0x19] sm:$0xff]
      %v455 = vld [vmem:[#allocation2 + $0x21] sm:$0xff]
      %v456 = vld [vmem:[#allocation2 + $0x31] sm:$0xff]
      %v457 = vld [vmem:[#allocation2 + $0x39] sm:$0xff]
      %v458 = vld [vmem:[#allocation2 + $0x49] sm:$0xff]
      %v459 = vld [vmem:[#allocation2 + $0x51] sm:$0xff]
      %v460 = vld [vmem:[#allocation2 + $0x61] sm:$0xff]
      %v461 = vld [vmem:[#allocation2 + $0x69] sm:$0xff]
      %v462 = vld [vmem:[#allocation2 + $0x79] sm:$0xff]
      %v463 = vld [vmem:[#allocation2 + $0x81] sm:$0xff]
      %v464 = vld [vmem:[#allocation2 + $0x91] sm:$0xff]
      %v465 = vld [vmem:[#allocation2 + $0x99] sm:$0xff]
      %v466 = vld [vmem:[#allocation2 + $0xa9] sm:$0xff]
      %v467 = vld [vmem:[#allocation2 + $0xb1] sm:$0xff]
      %v468 = vld [vmem:[#allocation2 + $0xc1] sm:$0xff]
      %v469 = vld [vmem:[#allocation2 + $0xc9] sm:$0xff]
      %v470 = vld [vmem:[#allocation2 + $0xd9] sm:$0xff]
      %v471 = vld [vmem:[#allocation2 + $0xe1] sm:$0xff]
      %v472 = vld [vmem:[#allocation2 + $0xf1] sm:$0xff]
      %v473 = vld [vmem:[#allocation2 + $0xf9] sm:$0xff]
      %v474 = vld [vmem:[#allocation2 + $0x109] sm:$0xff]
      %v475 = vld [vmem:[#allocation2 + $0x111] sm:$0xff]
      %v476 = vld [vmem:[#allocation2 + $0x121] sm:$0xff]
      %v477 = vld [vmem:[#allocation2 + $0x129] sm:$0xff]
      %v478 = vld [vmem:[#allocation2 + $0x139] sm:$0xff]
      %v479 = vld [vmem:[#allocation2 + $0x141] sm:$0xff]
      %v480 = vld [vmem:[#allocation2 + $0x151] sm:$0xff]
      %v481 = vld [vmem:[#allocation2 + $0x159] sm:$0xff]
      %v482 = vld [vmem:[#allocation2 + $0x169] sm:$0xff]
      %v483 = vld [vmem:[#allocation2 + $0x171] sm:$0xff]
      %v484 = vld [vmem:[#allocation2 + $0x181] sm:$0xff]
      %v485 = vld [vmem:[#allocation2 + $0x189] sm:$0xff]
      %v486 = vld [vmem:[#allocation2 + $0x199] sm:$0xff]
      %v487 = vld [vmem:[#allocation2 + $0x1a1] sm:$0xff]
      %v488 = vld [vmem:[#allocation2 + $0x2] sm:$0xff]
      %v489 = vld [vmem:[#allocation2 + $0xa] sm:$0xff]
      %v490 = vld [vmem:[#allocation2 + $0x1a] sm:$0xff]
      %v491 = vld [vmem:[#allocation2 + $0x22] sm:$0xff]
      %v492 = vld [vmem:[#allocation2 + $0x32] sm:$0xff]
      %v493 = vld [vmem:[#allocation2 + $0x3a] sm:$0xff]
      %v494 = vld [vmem:[#allocation2 + $0x4a] sm:$0xff]
      %v495 = vld [vmem:[#allocation2 + $0x52] sm:$0xff]
      %v496 = vld [vmem:[#allocation2 + $0x62] sm:$0xff]
      %v497 = vld [vmem:[#allocation2 + $0x6a] sm:$0xff]
      %v498 = vld [vmem:[#allocation2 + $0x7a] sm:$0xff]
      %v499 = vld [vmem:[#allocation2 + $0x82] sm:$0xff]
      %v500 = vld [vmem:[#allocation2 + $0x92] sm:$0xff]
      %v501 = vld [vmem:[#allocation2 + $0x9a] sm:$0xff]
      %v502 = vld [vmem:[#allocation2 + $0xaa] sm:$0xff]
      %v503 = vld [vmem:[#allocation2 + $0xb2] sm:$0xff]
      %v504 = vld [vmem:[#allocation2 + $0xc2] sm:$0xff]
      %v505 = vld [vmem:[#allocation2 + $0xca] sm:$0xff]
      %v506 = vld [vmem:[#allocation2 + $0xda] sm:$0xff]
      %v507 = vld [vmem:[#allocation2 + $0xe2] sm:$0xff]
      %v508 = vld [vmem:[#allocation2 + $0xf2] sm:$0xff]
      %v509 = vld [vmem:[#allocation2 + $0xfa] sm:$0xff]
      %v510 = vld [vmem:[#allocation2 + $0x10a] sm:$0xff]
      %v511 = vld [vmem:[#allocation2 + $0x112] sm:$0xff]
      %v512 = vld [vmem:[#allocation2 + $0x122] sm:$0xff]
      %v513 = vld [vmem:[#allocation2 + $0x12a] sm:$0xff]
      %v514 = vld [vmem:[#allocation2 + $0x13a] sm:$0xff]
      %v515 = vld [vmem:[#allocation2 + $0x142] sm:$0xff]
      %v516 = vld [vmem:[#allocation2 + $0x152] sm:$0xff]
      %v517 = vld [vmem:[#allocation2 + $0x15a] sm:$0xff]
      %v518 = vld [vmem:[#allocation2 + $0x16a] sm:$0xff]
      %v519 = vld [vmem:[#allocation2 + $0x172] sm:$0xff]
      %v520 = vld [vmem:[#allocation2 + $0x182] sm:$0xff]
      %v521 = vld [vmem:[#allocation2 + $0x18a] sm:$0xff]
      %v522 = vld [vmem:[#allocation2 + $0x19a] sm:$0xff]
      %v523 = vld [vmem:[#allocation2 + $0x1a2] sm:$0xff]
      %v524 = vld [vmem:[%s1] sm:$0xff]
      %v525 = vld [vmem:[%s1 + $0x8] sm:$0xff]
      %v526 = vld [vmem:[%s1 + $0x10] sm:$0xff]
      %v527 = vld [vmem:[%s1 + $0x18] sm:$0xff]
      %v528 = vld [vmem:[%s1 + $0x20] sm:$0xff]
      %v529 = vld [vmem:[%s1 + $0x28] sm:$0xff]
      %v530 = vld [vmem:[%s1 + $0x30] sm:$0xff]
      %v531 = vld [vmem:[%s1 + $0x38] sm:$0xff]
      %v532 = vld [vmem:[%s1 + $0x40] sm:$0xff]
      %v533 = vld [vmem:[%s1 + $0x48] sm:$0xff]
      %v534 = vld [vmem:[%s1 + $0x50] sm:$0xff]
      %v535 = vld [vmem:[%s1 + $0x58] sm:$0xff]
      %v536 = vld [vmem:[%s1 + $0x60] sm:$0xff]
      %v537 = vld [vmem:[%s1 + $0x68] sm:$0xff]
      %v538 = vld [vmem:[%s1 + $0x70] sm:$0xff]
      %v539 = vld [vmem:[%s1 + $0x78] sm:$0xff]
      %v540 = vld [vmem:[%s1 + $0x80] sm:$0xff]
      %v541 = vld [vmem:[%s1 + $0x88] sm:$0xff]
      %v542 = vld [vmem:[%s1 + $0x90] sm:$0xff]
      %v543 = vld [vmem:[%s1 + $0x98] sm:$0xff]
      %v544 = vld [vmem:[%s1 + $0xa0] sm:$0xff]
      %v545 = vld [vmem:[%s1 + $0xa8] sm:$0xff]
      %v546 = vld [vmem:[%s1 + $0xb0] sm:$0xff]
      %v547 = vld [vmem:[%s1 + $0xb8] sm:$0xff]
      %v548 = vld [vmem:[%s1 + $0xc0] sm:$0xff]
      %v549 = vld [vmem:[%s1 + $0xc8] sm:$0xff]
      %v550 = vld [vmem:[%s1 + $0xd0] sm:$0xff]
      %v551 = vld [vmem:[%s1 + $0xd8] sm:$0xff]
      %v552 = vld [vmem:[%s1 + $0xe0] sm:$0xff]
      %v553 = vld [vmem:[%s1 + $0xe8] sm:$0xff]
      %v554 = vld [vmem:[%s1 + $0xf0] sm:$0xff]
      %v555 = vld [vmem:[%s1 + $0xf8] sm:$0xff]
      %v556 = vld [vmem:[%s1 + $0x100] sm:$0xff]
      %v557 = vld [vmem:[%s1 + $0x108] sm:$0xff]
      %v558 = vld [vmem:[%s1 + $0x110] sm:$0xff]
      %v559 = vld [vmem:[%s1 + $0x118] sm:$0xff]
      %v560 = vld [vmem:[%s1 + $0x120] sm:$0xff]
      %v561 = vld [vmem:[%s1 + $0x128] sm:$0xff]
      %v562 = vld [vmem:[%s1 + $0x130] sm:$0xff]
      %v563 = vld [vmem:[%s1 + $0x138] sm:$0xff]
      %v564 = vld [vmem:[%s1 + $0x140] sm:$0xff]
      %v565 = vld [vmem:[%s1 + $0x148] sm:$0xff]
      %v566 = vld [vmem:[%s1 + $0x150] sm:$0xff]
      %v567 = vld [vmem:[%s1 + $0x158] sm:$0xff]
      %v568 = vld [vmem:[%s1 + $0x160] sm:$0xff]
      %v569 = vld [vmem:[%s1 + $0x168] sm:$0xff]
      %v570 = vld [vmem:[%s1 + $0x170] sm:$0xff]
      %v571 = vld [vmem:[%s1 + $0x178] sm:$0xff]
      %s572 = scalar_lea.vmem %s1, 384
      %v573 = vld [vmem:[%s572] sm:$0xff]
      %v574 = vld [vmem:[%s572 + $0x8] sm:$0xff]
      %v575 = vld [vmem:[%s572 + $0x10] sm:$0xff]
      %v576 = vld [vmem:[%s572 + $0x18] sm:$0xff]
      %v577 = vld [vmem:[%s572 + $0x20] sm:$0xff]
      %v578 = vld [vmem:[%s572 + $0x28] sm:$0xff]
      %v579 = vld [vmem:[%s572 + $0x30] sm:$0xff]
      %v580 = vld [vmem:[%s572 + $0x38] sm:$0xff]
      %v581 = vld [vmem:[%s572 + $0x40] sm:$0xff]
      %v582 = vld [vmem:[%s572 + $0x48] sm:$0xff]
      %v583 = vld [vmem:[%s572 + $0x50] sm:$0xff]
      %v584 = vld [vmem:[%s572 + $0x58] sm:$0xff]
      %v585 = vld [vmem:[%s572 + $0x60] sm:$0xff]
      %v586 = vld [vmem:[%s572 + $0x68] sm:$0xff]
      %v587 = vld [vmem:[%s572 + $0x70] sm:$0xff]
      %v588 = vld [vmem:[%s572 + $0x78] sm:$0xff]
      %v589 = vld [vmem:[%s572 + $0x80] sm:$0xff]
      %v590 = vld [vmem:[%s572 + $0x88] sm:$0xff]
      %v591 = vld [vmem:[%s572 + $0x90] sm:$0xff]
      %v592 = vld [vmem:[%s572 + $0x98] sm:$0xff]
      %v593 = vld [vmem:[%s572 + $0xa0] sm:$0xff]
      %v594 = vld [vmem:[%s572 + $0xa8] sm:$0xff]
      %v595 = vld [vmem:[%s572 + $0xb0] sm:$0xff]
      %v596 = vld [vmem:[%s572 + $0xb8] sm:$0xff]
      %v597 = vld [vmem:[%s572 + $0xc0] sm:$0xff]
      %v598 = vld [vmem:[%s572 + $0xc8] sm:$0xff]
      %v599 = vld [vmem:[%s572 + $0xd0] sm:$0xff]
      %v600 = vld [vmem:[%s572 + $0xd8] sm:$0xff]
      %v601 = vld [vmem:[%s572 + $0xe0] sm:$0xff]
      %v602 = vld [vmem:[%s572 + $0xe8] sm:$0xff]
      %v603 = vld [vmem:[%s572 + $0xf0] sm:$0xff]
      %v604 = vld [vmem:[%s572 + $0xf8] sm:$0xff]
      %v605 = vld [vmem:[%s572 + $0x100] sm:$0xff]
      %v606 = vld [vmem:[%s572 + $0x108] sm:$0xff]
      %v607 = vld [vmem:[%s572 + $0x110] sm:$0xff]
      %v608 = vld [vmem:[%s572 + $0x118] sm:$0xff]
      %v609 = vld [vmem:[%s572 + $0x120] sm:$0xff]
      %v610 = vld [vmem:[%s572 + $0x128] sm:$0xff]
      %v611 = vld [vmem:[%s572 + $0x130] sm:$0xff]
      %v612 = vld [vmem:[%s572 + $0x138] sm:$0xff]
      %v613 = vld [vmem:[%s572 + $0x140] sm:$0xff]
      %v614 = vld [vmem:[%s572 + $0x148] sm:$0xff]
      %v615 = vld [vmem:[%s572 + $0x150] sm:$0xff]
      %v616 = vld [vmem:[%s572 + $0x158] sm:$0xff]
      %v617 = vld [vmem:[%s572 + $0x160] sm:$0xff]
      %v618 = vld [vmem:[%s572 + $0x168] sm:$0xff]
      %v619 = vld [vmem:[%s572 + $0x170] sm:$0xff]
      %v620 = vld [vmem:[%s572 + $0x178] sm:$0xff]
      %621 = vmatprep.subr.mxu0 0.0
      %622 = vmatpush1.msra.mxu0 %v573
      %623 = vmatprep.subr.mxu0 0.0
      %624 = vmatpush1.msra.mxu0 %v574
      %625 = vmatprep.subr.mxu0 0.0
      %626 = vmatpush1.msra.mxu0 %v575
      %627 = vmatprep.subr.mxu0 0.0
      %628 = vmatpush1.msra.mxu0 %v576
      %629 = vmatprep.subr.mxu0 0.0
      %630 = vmatpush1.msra.mxu0 %v577
      %631 = vmatprep.subr.mxu0 0.0
      %632 = vmatpush1.msra.mxu0 %v578
      %633 = vmatprep.subr.mxu0 0.0
      %634 = vmatpush1.msra.mxu0 %v579
      %635 = vmatprep.subr.mxu0 0.0
      %636 = vmatpush1.msra.mxu0 %v580
      %637 = vmatprep.subr.mxu0 0.0
      %638 = vmatpush1.msra.mxu0 %v581
      %639 = vmatprep.subr.mxu0 0.0
      %640 = vmatpush1.msra.mxu0 %v582
      %641 = vmatprep.subr.mxu0 0.0
      %642 = vmatpush1.msra.mxu0 %v583
      %643 = vmatprep.subr.mxu0 0.0
      %644 = vmatpush1.msra.mxu0 %v584
      %645 = vmatprep.subr.mxu0 0.0
      %646 = vmatpush1.msra.mxu0 %v585
      %647 = vmatprep.subr.mxu0 0.0
      %648 = vmatpush1.msra.mxu0 %v586
      %649 = vmatprep.subr.mxu0 0.0
      %650 = vmatpush1.msra.mxu0 %v587
      %651 = vmatprep.subr.mxu0 0.0
      %652 = vmatpush1.msra.mxu0 %v588
      %653 = vmatprep.subr.mxu0 0.0
      %654 = vmatpush1.msra.mxu0 %v589
      %655 = vmatprep.subr.mxu0 0.0
      %656 = vmatpush1.msra.mxu0 %v590
      %657 = vmatprep.subr.mxu0 0.0
      %658 = vmatpush1.msra.mxu0 %v591
      %659 = vmatprep.subr.mxu0 0.0
      %660 = vmatpush1.msra.mxu0 %v592
      %661 = vmatprep.subr.mxu0 0.0
      %662 = vmatpush1.msra.mxu0 %v593
      %663 = vmatprep.subr.mxu0 0.0
      %664 = vmatpush1.msra.mxu0 %v594
      %665 = vmatprep.subr.mxu0 0.0
      %666 = vmatpush1.msra.mxu0 %v595
      %667 = vmatprep.subr.mxu0 0.0
      %668 = vmatpush1.msra.mxu0 %v596
      %669 = vmatprep.subr.mxu0 0.0
      %670 = vmatpush1.msra.mxu0 %v597
      %671 = vmatprep.subr.mxu0 0.0
      %672 = vmatpush1.msra.mxu0 %v598
      %673 = vmatprep.subr.mxu0 0.0
      %674 = vmatpush1.msra.mxu0 %v599
      %675 = vmatprep.subr.mxu0 0.0
      %676 = vmatpush1.msra.mxu0 %v600
      %677 = vmatprep.subr.mxu0 0.0
      %678 = vmatpush1.msra.mxu0 %v601
      %679 = vmatprep.subr.mxu0 0.0
      %680 = vmatpush1.msra.mxu0 %v602
      %681 = vmatprep.subr.mxu0 0.0
      %682 = vmatpush1.msra.mxu0 %v603
      %683 = vmatprep.subr.mxu0 0.0
      %684 = vmatpush1.msra.mxu0 %v604
      %685 = vmatprep.mubr.f32.mxu0 %v454
      %686 = vmatmul.mubr.f32.gmra.mrb[0].mxu0 %v418
      %v687 = vpop.f32.mrb[0].mxu0
      %v688 = vadd.f32 0.0, %v687
      %v689 = vpop.f32.mrb[0].mxu0
      %690 = vmatprep.mubr.f32.mxu0 %v455
      %691 = vmatmul.mubr.f32.gmra.mrb[0].mxu0 %v419
      %v692 = vpop.f32.mrb[0].mxu0
      %v693 = vadd.f32 0.0, %v692
      %v694 = vpop.f32.mrb[0].mxu0
      %695 = vmatprep.mubr.f32.mxu0 %v456
      %696 = vmatmul.mubr.f32.gmra.mrb[0].mxu0 %v420
      %v697 = vpop.f32.mrb[0].mxu0
      %v698 = vadd.f32 0.0, %v697
      %v699 = vpop.f32.mrb[0].mxu0
      %700 = vmatprep.mubr.f32.mxu0 %v457
      %701 = vmatmul.mubr.f32.gmra.mrb[0].mxu0 %v421
      %v702 = vpop.f32.mrb[0].mxu0
      %v703 = vadd.f32 0.0, %v702
      %v704 = vpop.f32.mrb[0].mxu0
      %705 = vmatprep.mubr.f32.mxu0 %v458
      %706 = vmatmul.mubr.f32.gmra.mrb[0].mxu0 %v422
      %v707 = vpop.f32.mrb[0].mxu0
      %v708 = vadd.f32 0.0, %v707
      %v709 = vpop.f32.mrb[0].mxu0
      %710 = vmatprep.mubr.f32.mxu0 %v459
      %711 = vmatmul.mubr.f32.gmra.mrb[0].mxu0 %v423
      %v712 = vpop.f32.mrb[0].mxu0
      %v713 = vadd.f32 0.0, %v712
      %v714 = vpop.f32.mrb[0].mxu0
      %715 = vmatprep.mubr.f32.mxu0 %v460
      %716 = vmatmul.mubr.f32.gmra.mrb[0].mxu0 %v424
      %v717 = vpop.f32.mrb[0].mxu0
      %v718 = vadd.f32 0.0, %v717
      %v719 = vpop.f32.mrb[0].mxu0
      %720 = vmatprep.mubr.f32.mxu0 %v461
      %721 = vmatmul.mubr.f32.gmra.mrb[0].mxu0 %v425
      %v722 = vpop.f32.mrb[0].mxu0
      %v723 = vadd.f32 0.0, %v722
      %v724 = vpop.f32.mrb[0].mxu0
      %725 = vmatprep.mubr.f32.mxu0 %v462
      %726 = vmatmul.mubr.f32.gmra.mrb[0].mxu0 %v426
      %v727 = vpop.f32.mrb[0].mxu0
      %v728 = vadd.f32 0.0, %v727
      %v729 = vpop.f32.mrb[0].mxu0
      %730 = vmatprep.mubr.f32.mxu0 %v463
      %731 = vmatmul.mubr.f32.gmra.mrb[0].mxu0 %v427
      %v732 = vpop.f32.mrb[0].mxu0
      %v733 = vadd.f32 0.0, %v732
      %v734 = vpop.f32.mrb[0].mxu0
      %735 = vmatprep.mubr.f32.mxu0 %v464
      %736 = vmatmul.mubr.f32.gmra.mrb[0].mxu0 %v428
      %v737 = vpop.f32.mrb[0].mxu0
      %v738 = vadd.f32 0.0, %v737
      %v739 = vpop.f32.mrb[0].mxu0
      %740 = vmatprep.mubr.f32.mxu0 %v465
      %741 = vmatmul.mubr.f32.gmra.mrb[0].mxu0 %v429
      %v742 = vpop.f32.mrb[0].mxu0
      %v743 = vadd.f32 0.0, %v742
      %v744 = vpop.f32.mrb[0].mxu0
      %745 = vmatprep.mubr.f32.mxu0 %v466
      %746 = vmatmul.mubr.f32.gmra.mrb[0].mxu0 %v430
      %v747 = vpop.f32.mrb[0].mxu0
      %v748 = vadd.f32 0.0, %v747
      %v749 = vpop.f32.mrb[0].mxu0
      %750 = vmatprep.mubr.f32.mxu0 %v467
      %751 = vmatmul.mubr.f32.gmra.mrb[0].mxu0 %v431
      %v752 = vpop.f32.mrb[0].mxu0
      %v753 = vadd.f32 0.0, %v752
      %v754 = vpop.f32.mrb[0].mxu0
      %755 = vmatprep.mubr.f32.mxu0 %v468
      %756 = vmatmul.mubr.f32.gmra.mrb[0].mxu0 %v432
      %v757 = vpop.f32.mrb[0].mxu0
      %v758 = vadd.f32 0.0, %v757
      %v759 = vpop.f32.mrb[0].mxu0
      %760 = vmatprep.mubr.f32.mxu0 %v469
      %761 = vmatmul.mubr.f32.gmra.mrb[0].mxu0 %v433
      %v762 = vpop.f32.mrb[0].mxu0
      %v763 = vadd.f32 0.0, %v762
      %v764 = vpop.f32.mrb[0].mxu0
      %765 = vmatprep.mubr.f32.mxu0 %v470
      %766 = vmatmul.mubr.f32.gmra.mrb[0].mxu0 %v434
      %v767 = vpop.f32.mrb[0].mxu0
      %v768 = vadd.f32 0.0, %v767
      %v769 = vpop.f32.mrb[0].mxu0
      %770 = vmatprep.mubr.f32.mxu0 %v471
      %771 = vmatmul.mubr.f32.gmra.mrb[0].mxu0 %v435
      %v772 = vpop.f32.mrb[0].mxu0
      %v773 = vadd.f32 0.0, %v772
      %v774 = vpop.f32.mrb[0].mxu0
      %775 = vmatprep.mubr.f32.mxu0 %v472
      %776 = vmatmul.mubr.f32.gmra.mrb[0].mxu0 %v436
      %v777 = vpop.f32.mrb[0].mxu0
      %v778 = vadd.f32 0.0, %v777
      %v779 = vpop.f32.mrb[0].mxu0
      %780 = vmatprep.mubr.f32.mxu0 %v473
      %781 = vmatmul.mubr.f32.gmra.mrb[0].mxu0 %v437
      %v782 = vpop.f32.mrb[0].mxu0
      %v783 = vadd.f32 0.0, %v782
      %v784 = vpop.f32.mrb[0].mxu0
      %785 = vmatprep.mubr.f32.mxu0 %v474
      %786 = vmatmul.mubr.f32.gmra.mrb[0].mxu0 %v438
      %v787 = vpop.f32.mrb[0].mxu0
      %v788 = vadd.f32 0.0, %v787
      %v789 = vpop.f32.mrb[0].mxu0
      %790 = vmatprep.mubr.f32.mxu0 %v475
      %791 = vmatmul.mubr.f32.gmra.mrb[0].mxu0 %v439
      %v792 = vpop.f32.mrb[0].mxu0
      %v793 = vadd.f32 0.0, %v792
      %v794 = vpop.f32.mrb[0].mxu0
      %795 = vmatprep.mubr.f32.mxu0 %v476
      %796 = vmatmul.mubr.f32.gmra.mrb[0].mxu0 %v440
      %v797 = vpop.f32.mrb[0].mxu0
      %v798 = vadd.f32 0.0, %v797
      %v799 = vpop.f32.mrb[0].mxu0
      %800 = vmatprep.mubr.f32.mxu0 %v477
      %801 = vmatmul.mubr.f32.gmra.mrb[0].mxu0 %v441
      %v802 = vpop.f32.mrb[0].mxu0
      %v803 = vadd.f32 0.0, %v802
      %v804 = vpop.f32.mrb[0].mxu0
      %805 = vmatprep.mubr.f32.mxu0 %v478
      %806 = vmatmul.mubr.f32.gmra.mrb[0].mxu0 %v442
      %v807 = vpop.f32.mrb[0].mxu0
      %v808 = vadd.f32 0.0, %v807
      %v809 = vpop.f32.mrb[0].mxu0
      %810 = vmatprep.mubr.f32.mxu0 %v479
      %811 = vmatmul.mubr.f32.gmra.mrb[0].mxu0 %v443
      %v812 = vpop.f32.mrb[0].mxu0
      %v813 = vadd.f32 0.0, %v812
      %v814 = vpop.f32.mrb[0].mxu0
      %815 = vmatprep.mubr.f32.mxu0 %v480
      %816 = vmatmul.mubr.f32.gmra.mrb[0].mxu0 %v444
      %v817 = vpop.f32.mrb[0].mxu0
      %v818 = vadd.f32 0.0, %v817
      %v819 = vpop.f32.mrb[0].mxu0
      %820 = vmatprep.mubr.f32.mxu0 %v481
      %821 = vmatmul.mubr.f32.gmra.mrb[0].mxu0 %v445
      %v822 = vpop.f32.mrb[0].mxu0
      %v823 = vadd.f32 0.0, %v822
      %v824 = vpop.f32.mrb[0].mxu0
      %825 = vmatprep.mubr.f32.mxu0 %v482
      %826 = vmatmul.mubr.f32.gmra.mrb[0].mxu0 %v446
      %v827 = vpop.f32.mrb[0].mxu0
      %v828 = vadd.f32 0.0, %v827
      %v829 = vpop.f32.mrb[0].mxu0
      %830 = vmatprep.mubr.f32.mxu0 %v483
      %831 = vmatmul.mubr.f32.gmra.mrb[0].mxu0 %v447
      %v832 = vpop.f32.mrb[0].mxu0
      %v833 = vadd.f32 0.0, %v832
      %v834 = vpop.f32.mrb[0].mxu0
      %835 = vmatprep.mubr.f32.mxu0 %v484
      %836 = vmatmul.mubr.f32.gmra.mrb[0].mxu0 %v448
      %v837 = vpop.f32.mrb[0].mxu0
      %v838 = vadd.f32 0.0, %v837
      %v839 = vpop.f32.mrb[0].mxu0
      %840 = vmatprep.mubr.f32.mxu0 %v485
      %841 = vmatmul.mubr.f32.gmra.mrb[0].mxu0 %v449
      %v842 = vpop.f32.mrb[0].mxu0
      %v843 = vadd.f32 0.0, %v842
      %v844 = vpop.f32.mrb[0].mxu0
      %845 = vdwg.mxu0
      %846 = vmatprep.subr.mxu0 0.0
      %847 = vmatpush1.msra.mxu0 %v605
      %848 = vmatprep.subr.mxu0 0.0
      %849 = vmatpush1.msra.mxu0 %v606
      %850 = vmatprep.subr.mxu0 0.0
      %851 = vmatpush1.msra.mxu0 %v607
      %852 = vmatprep.subr.mxu0 0.0
      %853 = vmatpush1.msra.mxu0 %v608
      %854 = vmatprep.subr.mxu0 0.0
      %855 = vmatpush1.msra.mxu0 %v609
      %856 = vmatprep.subr.mxu0 0.0
      %857 = vmatpush1.msra.mxu0 %v610
      %858 = vmatprep.subr.mxu0 0.0
      %859 = vmatpush1.msra.mxu0 %v611
      %860 = vmatprep.subr.mxu0 0.0
      %861 = vmatpush1.msra.mxu0 %v612
      %862 = vmatprep.subr.mxu0 0.0
      %863 = vmatpush1.msra.mxu0 %v613
      %864 = vmatprep.subr.mxu0 0.0
      %865 = vmatpush1.msra.mxu0 %v614
      %866 = vmatprep.subr.mxu0 0.0
      %867 = vmatpush1.msra.mxu0 %v615
      %868 = vmatprep.subr.mxu0 0.0
      %869 = vmatpush1.msra.mxu0 %v616
      %870 = vmatprep.subr.mxu0 0.0
      %871 = vmatpush1.msra.mxu0 %v617
      %872 = vmatprep.subr.mxu0 0.0
      %873 = vmatpush1.msra.mxu0 %v618
      %874 = vmatprep.subr.mxu0 0.0
      %875 = vmatpush1.msra.mxu0 %v619
      %876 = vmatprep.subr.mxu0 0.0
      %877 = vmatpush1.msra.mxu0 %v620
      %878 = vmatprep.subr.mxu0 0.0
      %879 = vmatpush1.msra.mxu0 0.0
      %880 = vmatprep.subr.mxu0 0.0
      %881 = vmatpush1.msra.mxu0 0.0
      %882 = vmatprep.subr.mxu0 0.0
      %883 = vmatpush1.msra.mxu0 0.0
      %884 = vmatprep.subr.mxu0 0.0
      %885 = vmatpush1.msra.mxu0 0.0
      %886 = vmatprep.subr.mxu0 0.0
      %887 = vmatpush1.msra.mxu0 0.0
      %888 = vmatprep.subr.mxu0 0.0
      %889 = vmatpush1.msra.mxu0 0.0
      %890 = vmatprep.subr.mxu0 0.0
      %891 = vmatpush1.msra.mxu0 0.0
      %892 = vmatprep.subr.mxu0 0.0
      %893 = vmatpush1.msra.mxu0 0.0
      %894 = vmatprep.subr.mxu0 0.0
      %895 = vmatpush1.msra.mxu0 0.0
      %896 = vmatprep.subr.mxu0 0.0
      %897 = vmatpush1.msra.mxu0 0.0
      %898 = vmatprep.subr.mxu0 0.0
      %899 = vmatpush1.msra.mxu0 0.0
      %900 = vmatprep.subr.mxu0 0.0
      %901 = vmatpush1.msra.mxu0 0.0
      %902 = vmatprep.subr.mxu0 0.0
      %903 = vmatpush1.msra.mxu0 0.0
      %904 = vmatprep.subr.mxu0 0.0
      %905 = vmatpush1.msra.mxu0 0.0
      %906 = vmatprep.subr.mxu0 0.0
      %907 = vmatpush1.msra.mxu0 0.0
      %908 = vmatprep.subr.mxu0 0.0
      %909 = vmatpush1.msra.mxu0 0.0
      %910 = vmatprep.mubr.f32.mxu0 0.0
      %911 = vmatmul.mubr.f32.gmra.mrb[0].mxu0 %v490
      %v912 = vpop.f32.mrb[0].mxu0
      %v913 = vadd.f32 %v688, %v912
      %v914 = vpop.f32.mrb[0].mxu0
      %915 = vmatprep.mubr.f32.mxu0 0.0
      %916 = vmatmul.mubr.f32.gmra.mrb[0].mxu0 %v491
      %v917 = vpop.f32.mrb[0].mxu0
      %v918 = vadd.f32 %v693, %v917
      %v919 = vpop.f32.mrb[0].mxu0
      %920 = vmatprep.mubr.f32.mxu0 0.0
      %921 = vmatmul.mubr.f32.gmra.mrb[0].mxu0 %v492
      %v922 = vpop.f32.mrb[0].mxu0
      %v923 = vadd.f32 %v698, %v922
      %v924 = vpop.f32.mrb[0].mxu0
      %925 = vmatprep.mubr.f32.mxu0 0.0
      %926 = vmatmul.mubr.f32.gmra.mrb[0].mxu0 %v493
      %v927 = vpop.f32.mrb[0].mxu0
      %v928 = vadd.f32 %v703, %v927
      %v929 = vpop.f32.mrb[0].mxu0
      %930 = vmatprep.mubr.f32.mxu0 0.0
      %931 = vmatmul.mubr.f32.gmra.mrb[0].mxu0 %v494
      %v932 = vpop.f32.mrb[0].mxu0
      %v933 = vadd.f32 %v708, %v932
      %v934 = vpop.f32.mrb[0].mxu0
      %935 = vmatprep.mubr.f32.mxu0 0.0
      %936 = vmatmul.mubr.f32.gmra.mrb[0].mxu0 %v495
      %v937 = vpop.f32.mrb[0].mxu0
      %v938 = vadd.f32 %v713, %v937
      %v939 = vpop.f32.mrb[0].mxu0
      %940 = vmatprep.mubr.f32.mxu0 0.0
      %941 = vmatmul.mubr.f32.gmra.mrb[0].mxu0 %v496
      %v942 = vpop.f32.mrb[0].mxu0
      %v943 = vadd.f32 %v718, %v942
      %v944 = vpop.f32.mrb[0].mxu0
      %945 = vmatprep.mubr.f32.mxu0 0.0
      %946 = vmatmul.mubr.f32.gmra.mrb[0].mxu0 %v497
      %v947 = vpop.f32.mrb[0].mxu0
      %v948 = vadd.f32 %v723, %v947
      %v949 = vpop.f32.mrb[0].mxu0
      %950 = vmatprep.mubr.f32.mxu0 0.0
      %951 = vmatmul.mubr.f32.gmra.mrb[0].mxu0 %v498
      %v952 = vpop.f32.mrb[0].mxu0
      %v953 = vadd.f32 %v728, %v952
      %v954 = vpop.f32.mrb[0].mxu0
      %955 = vmatprep.mubr.f32.mxu0 0.0
      %956 = vmatmul.mubr.f32.gmra.mrb[0].mxu0 %v499
      %v957 = vpop.f32.mrb[0].mxu0
      %v958 = vadd.f32 %v733, %v957
      %v959 = vpop.f32.mrb[0].mxu0
      %960 = vmatprep.mubr.f32.mxu0 0.0
      %961 = vmatmul.mubr.f32.gmra.mrb[0].mxu0 %v500
      %v962 = vpop.f32.mrb[0].mxu0
      %v963 = vadd.f32 %v738, %v962
      %v964 = vpop.f32.mrb[0].mxu0
      %965 = vmatprep.mubr.f32.mxu0 0.0
      %966 = vmatmul.mubr.f32.gmra.mrb[0].mxu0 %v501
      %v967 = vpop.f32.mrb[0].mxu0
      %v968 = vadd.f32 %v743, %v967
      %v969 = vpop.f32.mrb[0].mxu0
      %970 = vmatprep.mubr.f32.mxu0 0.0
      %971 = vmatmul.mubr.f32.gmra.mrb[0].mxu0 %v502
      %v972 = vpop.f32.mrb[0].mxu0
      %v973 = vadd.f32 %v748, %v972
      %v974 = vpop.f32.mrb[0].mxu0
      %975 = vmatprep.mubr.f32.mxu0 0.0
      %976 = vmatmul.mubr.f32.gmra.mrb[0].mxu0 %v503
      %v977 = vpop.f32.mrb[0].mxu0
      %v978 = vadd.f32 %v753, %v977
      %v979 = vpop.f32.mrb[0].mxu0
      %980 = vmatprep.mubr.f32.mxu0 0.0
      %981 = vmatmul.mubr.f32.gmra.mrb[0].mxu0 %v504
      %v982 = vpop.f32.mrb[0].mxu0
      %v983 = vadd.f32 %v758, %v982
      %v984 = vpop.f32.mrb[0].mxu0
      %985 = vmatprep.mubr.f32.mxu0 0.0
      %986 = vmatmul.mubr.f32.gmra.mrb[0].mxu0 %v505
      %v987 = vpop.f32.mrb[0].mxu0
      %v988 = vadd.f32 %v763, %v987
      %v989 = vpop.f32.mrb[0].mxu0
      %990 = vmatprep.mubr.f32.mxu0 0.0
      %991 = vmatmul.mubr.f32.gmra.mrb[0].mxu0 %v506
      %v992 = vpop.f32.mrb[0].mxu0
      %v993 = vadd.f32 %v768, %v992
      %v994 = vpop.f32.mrb[0].mxu0
      %995 = vmatprep.mubr.f32.mxu0 0.0
      %996 = vmatmul.mubr.f32.gmra.mrb[0].mxu0 %v507
      %v997 = vpop.f32.mrb[0].mxu0
      %v998 = vadd.f32 %v773, %v997
      %v999 = vpop.f32.mrb[0].mxu0
      %1000 = vmatprep.mubr.f32.mxu0 0.0
      %1001 = vmatmul.mubr.f32.gmra.mrb[0].mxu0 %v508
      %v1002 = vpop.f32.mrb[0].mxu0
      %v1003 = vadd.f32 %v778, %v1002
      %v1004 = vpop.f32.mrb[0].mxu0
      %1005 = vmatprep.mubr.f32.mxu0 0.0
      %1006 = vmatmul.mubr.f32.gmra.mrb[0].mxu0 %v509
      %v1007 = vpop.f32.mrb[0].mxu0
      %v1008 = vadd.f32 %v783, %v1007
      %v1009 = vpop.f32.mrb[0].mxu0
      %1010 = vmatprep.mubr.f32.mxu0 0.0
      %1011 = vmatmul.mubr.f32.gmra.mrb[0].mxu0 %v510
      %v1012 = vpop.f32.mrb[0].mxu0
      %v1013 = vadd.f32 %v788, %v1012
      %v1014 = vpop.f32.mrb[0].mxu0
      %1015 = vmatprep.mubr.f32.mxu0 0.0
      %1016 = vmatmul.mubr.f32.gmra.mrb[0].mxu0 %v511
      %v1017 = vpop.f32.mrb[0].mxu0
      %v1018 = vadd.f32 %v793, %v1017
      %v1019 = vpop.f32.mrb[0].mxu0
      %1020 = vmatprep.mubr.f32.mxu0 0.0
      %1021 = vmatmul.mubr.f32.gmra.mrb[0].mxu0 %v512
      %v1022 = vpop.f32.mrb[0].mxu0
      %v1023 = vadd.f32 %v798, %v1022
      %v1024 = vpop.f32.mrb[0].mxu0
      %1025 = vmatprep.mubr.f32.mxu0 0.0
      %1026 = vmatmul.mubr.f32.gmra.mrb[0].mxu0 %v513
      %v1027 = vpop.f32.mrb[0].mxu0
      %v1028 = vadd.f32 %v803, %v1027
      %v1029 = vpop.f32.mrb[0].mxu0
      %1030 = vmatprep.mubr.f32.mxu0 0.0
      %1031 = vmatmul.mubr.f32.gmra.mrb[0].mxu0 %v514
      %v1032 = vpop.f32.mrb[0].mxu0
      %v1033 = vadd.f32 %v808, %v1032
      %v1034 = vpop.f32.mrb[0].mxu0
      %1035 = vmatprep.mubr.f32.mxu0 0.0
      %1036 = vmatmul.mubr.f32.gmra.mrb[0].mxu0 %v515
      %v1037 = vpop.f32.mrb[0].mxu0
      %v1038 = vadd.f32 %v813, %v1037
      %v1039 = vpop.f32.mrb[0].mxu0
      %1040 = vmatprep.mubr.f32.mxu0 0.0
      %1041 = vmatmul.mubr.f32.gmra.mrb[0].mxu0 %v516
      %v1042 = vpop.f32.mrb[0].mxu0
      %v1043 = vadd.f32 %v818, %v1042
      %v1044 = vpop.f32.mrb[0].mxu0
      %1045 = vmatprep.mubr.f32.mxu0 0.0
      %1046 = vmatmul.mubr.f32.gmra.mrb[0].mxu0 %v517
      %v1047 = vpop.f32.mrb[0].mxu0
      %v1048 = vadd.f32 %v823, %v1047
      %v1049 = vpop.f32.mrb[0].mxu0
      %1050 = vmatprep.mubr.f32.mxu0 0.0
      %1051 = vmatmul.mubr.f32.gmra.mrb[0].mxu0 %v518
      %v1052 = vpop.f32.mrb[0].mxu0
      %v1053 = vadd.f32 %v828, %v1052
      %v1054 = vpop.f32.mrb[0].mxu0
      %1055 = vmatprep.mubr.f32.mxu0 0.0
      %1056 = vmatmul.mubr.f32.gmra.mrb[0].mxu0 %v519
      %v1057 = vpop.f32.mrb[0].mxu0
      %v1058 = vadd.f32 %v833, %v1057
      %v1059 = vpop.f32.mrb[0].mxu0
      %1060 = vmatprep.mubr.f32.mxu0 0.0
      %1061 = vmatmul.mubr.f32.gmra.mrb[0].mxu0 %v520
      %v1062 = vpop.f32.mrb[0].mxu0
      %v1063 = vadd.f32 %v838, %v1062
      %v1064 = vpop.f32.mrb[0].mxu0
      %1065 = vmatprep.mubr.f32.mxu0 0.0
      %1066 = vmatmul.mubr.f32.gmra.mrb[0].mxu0 %v521
      %v1067 = vpop.f32.mrb[0].mxu0
      %v1068 = vadd.f32 %v843, %v1067
      %v1069 = vpop.f32.mrb[0].mxu0
      %1070 = vdwg.mxu0
      %1071 = vmatprep.subr.mxu0 0.0
      %1072 = vmatpush1.msra.mxu0 %v524
      %1073 = vmatprep.subr.mxu0 0.0
      %1074 = vmatpush1.msra.mxu0 %v525
      %1075 = vmatprep.subr.mxu0 0.0
      %1076 = vmatpush1.msra.mxu0 %v526
      %1077 = vmatprep.subr.mxu0 0.0
      %1078 = vmatpush1.msra.mxu0 %v527
      %1079 = vmatprep.subr.mxu0 0.0
      %1080 = vmatpush1.msra.mxu0 %v528
      %1081 = vmatprep.subr.mxu0 0.0
      %1082 = vmatpush1.msra.mxu0 %v529
      %1083 = vmatprep.subr.mxu0 0.0
      %1084 = vmatpush1.msra.mxu0 %v530
      %1085 = vmatprep.subr.mxu0 0.0
      %1086 = vmatpush1.msra.mxu0 %v531
      %1087 = vmatprep.subr.mxu0 0.0
      %1088 = vmatpush1.msra.mxu0 %v532
      %1089 = vmatprep.subr.mxu0 0.0
      %1090 = vmatpush1.msra.mxu0 %v533
      %1091 = vmatprep.subr.mxu0 0.0
      %1092 = vmatpush1.msra.mxu0 %v534
      %1093 = vmatprep.subr.mxu0 0.0
      %1094 = vmatpush1.msra.mxu0 %v535
      %1095 = vmatprep.subr.mxu0 0.0
      %1096 = vmatpush1.msra.mxu0 %v536
      %1097 = vmatprep.subr.mxu0 0.0
      %1098 = vmatpush1.msra.mxu0 %v537
      %1099 = vmatprep.subr.mxu0 0.0
      %1100 = vmatpush1.msra.mxu0 %v538
      %1101 = vmatprep.subr.mxu0 0.0
      %1102 = vmatpush1.msra.mxu0 %v539
      %1103 = vmatprep.subr.mxu0 0.0
      %1104 = vmatpush1.msra.mxu0 %v540
      %1105 = vmatprep.subr.mxu0 0.0
      %1106 = vmatpush1.msra.mxu0 %v541
      %1107 = vmatprep.subr.mxu0 0.0
      %1108 = vmatpush1.msra.mxu0 %v542
      %1109 = vmatprep.subr.mxu0 0.0
      %1110 = vmatpush1.msra.mxu0 %v543
      %1111 = vmatprep.subr.mxu0 0.0
      %1112 = vmatpush1.msra.mxu0 %v544
      %1113 = vmatprep.subr.mxu0 0.0
      %1114 = vmatpush1.msra.mxu0 %v545
      %1115 = vmatprep.subr.mxu0 0.0
      %1116 = vmatpush1.msra.mxu0 %v546
      %1117 = vmatprep.subr.mxu0 0.0
      %1118 = vmatpush1.msra.mxu0 %v547
      %1119 = vmatprep.subr.mxu0 0.0
      %1120 = vmatpush1.msra.mxu0 %v548
      %1121 = vmatprep.subr.mxu0 0.0
      %1122 = vmatpush1.msra.mxu0 %v549
      %1123 = vmatprep.subr.mxu0 0.0
      %1124 = vmatpush1.msra.mxu0 %v550
      %1125 = vmatprep.subr.mxu0 0.0
      %1126 = vmatpush1.msra.mxu0 %v551
      %1127 = vmatprep.subr.mxu0 0.0
      %1128 = vmatpush1.msra.mxu0 %v552
      %1129 = vmatprep.subr.mxu0 0.0
      %1130 = vmatpush1.msra.mxu0 %v553
      %1131 = vmatprep.subr.mxu0 0.0
      %1132 = vmatpush1.msra.mxu0 %v554
      %1133 = vmatprep.subr.mxu0 0.0
      %1134 = vmatpush1.msra.mxu0 %v555
      %1135 = vmatprep.mubr.f32.mxu0 %v452
      %1136 = vmatmul.mubr.f32.gmra.mrb[0].mxu0 %v416
      %v1137 = vpop.f32.mrb[0].mxu0
      %v1138 = vadd.f32 %v913, %v1137
      %v1139 = vpop.f32.mrb[0].mxu0
      %1140 = vmatprep.mubr.f32.mxu0 %v453
      %1141 = vmatmul.mubr.f32.gmra.mrb[0].mxu0 %v417
      %v1142 = vpop.f32.mrb[0].mxu0
      %v1143 = vadd.f32 %v918, %v1142
      %v1144 = vpop.f32.mrb[0].mxu0
      %1145 = vmatprep.mubr.f32.mxu0 %v454
      %1146 = vmatmul.mubr.f32.gmra.mrb[0].mxu0 %v418
      %v1147 = vpop.f32.mrb[0].mxu0
      %v1148 = vadd.f32 %v923, %v1147
      %v1149 = vpop.f32.mrb[0].mxu0
      %1150 = vmatprep.mubr.f32.mxu0 %v455
      %1151 = vmatmul.mubr.f32.gmra.mrb[0].mxu0 %v419
      %v1152 = vpop.f32.mrb[0].mxu0
      %v1153 = vadd.f32 %v928, %v1152
      %v1154 = vpop.f32.mrb[0].mxu0
      %1155 = vmatprep.mubr.f32.mxu0 %v456
      %1156 = vmatmul.mubr.f32.gmra.mrb[0].mxu0 %v420
      %v1157 = vpop.f32.mrb[0].mxu0
      %v1158 = vadd.f32 %v933, %v1157
      %v1159 = vpop.f32.mrb[0].mxu0
      %1160 = vmatprep.mubr.f32.mxu0 %v457
      %1161 = vmatmul.mubr.f32.gmra.mrb[0].mxu0 %v421
      %v1162 = vpop.f32.mrb[0].mxu0
      %v1163 = vadd.f32 %v938, %v1162
      %v1164 = vpop.f32.mrb[0].mxu0
      %1165 = vmatprep.mubr.f32.mxu0 %v458
      %1166 = vmatmul.mubr.f32.gmra.mrb[0].mxu0 %v422
      %v1167 = vpop.f32.mrb[0].mxu0
      %v1168 = vadd.f32 %v943, %v1167
      %v1169 = vpop.f32.mrb[0].mxu0
      %1170 = vmatprep.mubr.f32.mxu0 %v459
      %1171 = vmatmul.mubr.f32.gmra.mrb[0].mxu0 %v423
      %v1172 = vpop.f32.mrb[0].mxu0
      %v1173 = vadd.f32 %v948, %v1172
      %v1174 = vpop.f32.mrb[0].mxu0
      %1175 = vmatprep.mubr.f32.mxu0 %v460
      %1176 = vmatmul.mubr.f32.gmra.mrb[0].mxu0 %v424
      %v1177 = vpop.f32.mrb[0].mxu0
      %v1178 = vadd.f32 %v953, %v1177
      %v1179 = vpop.f32.mrb[0].mxu0
      %1180 = vmatprep.mubr.f32.mxu0 %v461
      %1181 = vmatmul.mubr.f32.gmra.mrb[0].mxu0 %v425
      %v1182 = vpop.f32.mrb[0].mxu0
      %v1183 = vadd.f32 %v958, %v1182
      %v1184 = vpop.f32.mrb[0].mxu0
      %1185 = vmatprep.mubr.f32.mxu0 %v462
      %1186 = vmatmul.mubr.f32.gmra.mrb[0].mxu0 %v426
      %v1187 = vpop.f32.mrb[0].mxu0
      %v1188 = vadd.f32 %v963, %v1187
      %v1189 = vpop.f32.mrb[0].mxu0
      %1190 = vmatprep.mubr.f32.mxu0 %v463
      %1191 = vmatmul.mubr.f32.gmra.mrb[0].mxu0 %v427
      %v1192 = vpop.f32.mrb[0].mxu0
      %v1193 = vadd.f32 %v968, %v1192
      %v1194 = vpop.f32.mrb[0].mxu0
      %1195 = vmatprep.mubr.f32.mxu0 %v464
      %1196 = vmatmul.mubr.f32.gmra.mrb[0].mxu0 %v428
      %v1197 = vpop.f32.mrb[0].mxu0
      %v1198 = vadd.f32 %v973, %v1197
      %v1199 = vpop.f32.mrb[0].mxu0
      %1200 = vmatprep.mubr.f32.mxu0 %v465
      %1201 = vmatmul.mubr.f32.gmra.mrb[0].mxu0 %v429
      %v1202 = vpop.f32.mrb[0].mxu0
      %v1203 = vadd.f32 %v978, %v1202
      %v1204 = vpop.f32.mrb[0].mxu0
      %1205 = vmatprep.mubr.f32.mxu0 %v466
      %1206 = vmatmul.mubr.f32.gmra.mrb[0].mxu0 %v430
      %v1207 = vpop.f32.mrb[0].mxu0
      %v1208 = vadd.f32 %v983, %v1207
      %v1209 = vpop.f32.mrb[0].mxu0
      %1210 = vmatprep.mubr.f32.mxu0 %v467
      %1211 = vmatmul.mubr.f32.gmra.mrb[0].mxu0 %v431
      %v1212 = vpop.f32.mrb[0].mxu0
      %v1213 = vadd.f32 %v988, %v1212
      %v1214 = vpop.f32.mrb[0].mxu0
      %1215 = vmatprep.mubr.f32.mxu0 %v468
      %1216 = vmatmul.mubr.f32.gmra.mrb[0].mxu0 %v432
      %v1217 = vpop.f32.mrb[0].mxu0
      %v1218 = vadd.f32 %v993, %v1217
      %v1219 = vpop.f32.mrb[0].mxu0
      %1220 = vmatprep.mubr.f32.mxu0 %v469
      %1221 = vmatmul.mubr.f32.gmra.mrb[0].mxu0 %v433
      %v1222 = vpop.f32.mrb[0].mxu0
      %v1223 = vadd.f32 %v998, %v1222
      %v1224 = vpop.f32.mrb[0].mxu0
      %1225 = vmatprep.mubr.f32.mxu0 %v470
      %1226 = vmatmul.mubr.f32.gmra.mrb[0].mxu0 %v434
      %v1227 = vpop.f32.mrb[0].mxu0
      %v1228 = vadd.f32 %v1003, %v1227
      %v1229 = vpop.f32.mrb[0].mxu0
      %1230 = vmatprep.mubr.f32.mxu0 %v471
      %1231 = vmatmul.mubr.f32.gmra.mrb[0].mxu0 %v435
      %v1232 = vpop.f32.mrb[0].mxu0
      %v1233 = vadd.f32 %v1008, %v1232
      %v1234 = vpop.f32.mrb[0].mxu0
      %1235 = vmatprep.mubr.f32.mxu0 %v472
      %1236 = vmatmul.mubr.f32.gmra.mrb[0].mxu0 %v436
      %v1237 = vpop.f32.mrb[0].mxu0
      %v1238 = vadd.f32 %v1013, %v1237
      %v1239 = vpop.f32.mrb[0].mxu0
      %1240 = vmatprep.mubr.f32.mxu0 %v473
      %1241 = vmatmul.mubr.f32.gmra.mrb[0].mxu0 %v437
      %v1242 = vpop.f32.mrb[0].mxu0
      %v1243 = vadd.f32 %v1018, %v1242
      %v1244 = vpop.f32.mrb[0].mxu0
      %1245 = vmatprep.mubr.f32.mxu0 %v474
      %1246 = vmatmul.mubr.f32.gmra.mrb[0].mxu0 %v438
      %v1247 = vpop.f32.mrb[0].mxu0
      %v1248 = vadd.f32 %v1023, %v1247
      %v1249 = vpop.f32.mrb[0].mxu0
      %1250 = vmatprep.mubr.f32.mxu0 %v475
      %1251 = vmatmul.mubr.f32.gmra.mrb[0].mxu0 %v439
      %v1252 = vpop.f32.mrb[0].mxu0
      %v1253 = vadd.f32 %v1028, %v1252
      %v1254 = vpop.f32.mrb[0].mxu0
      %1255 = vmatprep.mubr.f32.mxu0 %v476
      %1256 = vmatmul.mubr.f32.gmra.mrb[0].mxu0 %v440
      %v1257 = vpop.f32.mrb[0].mxu0
      %v1258 = vadd.f32 %v1033, %v1257
      %v1259 = vpop.f32.mrb[0].mxu0
      %1260 = vmatprep.mubr.f32.mxu0 %v477
      %1261 = vmatmul.mubr.f32.gmra.mrb[0].mxu0 %v441
      %v1262 = vpop.f32.mrb[0].mxu0
      %v1263 = vadd.f32 %v1038, %v1262
      %v1264 = vpop.f32.mrb[0].mxu0
      %1265 = vmatprep.mubr.f32.mxu0 %v478
      %1266 = vmatmul.mubr.f32.gmra.mrb[0].mxu0 %v442
      %v1267 = vpop.f32.mrb[0].mxu0
      %v1268 = vadd.f32 %v1043, %v1267
      %v1269 = vpop.f32.mrb[0].mxu0
      %1270 = vmatprep.mubr.f32.mxu0 %v479
      %1271 = vmatmul.mubr.f32.gmra.mrb[0].mxu0 %v443
      %v1272 = vpop.f32.mrb[0].mxu0
      %v1273 = vadd.f32 %v1048, %v1272
      %v1274 = vpop.f32.mrb[0].mxu0
      %1275 = vmatprep.mubr.f32.mxu0 %v480
      %1276 = vmatmul.mubr.f32.gmra.mrb[0].mxu0 %v444
      %v1277 = vpop.f32.mrb[0].mxu0
      %v1278 = vadd.f32 %v1053, %v1277
      %v1279 = vpop.f32.mrb[0].mxu0
      %1280 = vmatprep.mubr.f32.mxu0 %v481
      %1281 = vmatmul.mubr.f32.gmra.mrb[0].mxu0 %v445
      %v1282 = vpop.f32.mrb[0].mxu0
      %v1283 = vadd.f32 %v1058, %v1282
      %v1284 = vpop.f32.mrb[0].mxu0
      %1285 = vmatprep.mubr.f32.mxu0 %v482
      %1286 = vmatmul.mubr.f32.gmra.mrb[0].mxu0 %v446
      %v1287 = vpop.f32.mrb[0].mxu0
      %v1288 = vadd.f32 %v1063, %v1287
      %v1289 = vpop.f32.mrb[0].mxu0
      %1290 = vmatprep.mubr.f32.mxu0 %v483
      %1291 = vmatmul.mubr.f32.gmra.mrb[0].mxu0 %v447
      %v1292 = vpop.f32.mrb[0].mxu0
      %v1293 = vadd.f32 %v1068, %v1292
      %v1294 = vpop.f32.mrb[0].mxu0
      %1295 = vdwg.mxu0
      %1296 = vmatprep.subr.mxu0 0.0
      %1297 = vmatpush1.msra.mxu0 %v556
      %1298 = vmatprep.subr.mxu0 0.0
      %1299 = vmatpush1.msra.mxu0 %v557
      %1300 = vmatprep.subr.mxu0 0.0
      %1301 = vmatpush1.msra.mxu0 %v558
      %1302 = vmatprep.subr.mxu0 0.0
      %1303 = vmatpush1.msra.mxu0 %v559
      %1304 = vmatprep.subr.mxu0 0.0
      %1305 = vmatpush1.msra.mxu0 %v560
      %1306 = vmatprep.subr.mxu0 0.0
      %1307 = vmatpush1.msra.mxu0 %v561
      %1308 = vmatprep.subr.mxu0 0.0
      %1309 = vmatpush1.msra.mxu0 %v562
      %1310 = vmatprep.subr.mxu0 0.0
      %1311 = vmatpush1.msra.mxu0 %v563
      %1312 = vmatprep.subr.mxu0 0.0
      %1313 = vmatpush1.msra.mxu0 %v564
      %1314 = vmatprep.subr.mxu0 0.0
      %1315 = vmatpush1.msra.mxu0 %v565
      %1316 = vmatprep.subr.mxu0 0.0
      %1317 = vmatpush1.msra.mxu0 %v566
      %1318 = vmatprep.subr.mxu0 0.0
      %1319 = vmatpush1.msra.mxu0 %v567
      %1320 = vmatprep.subr.mxu0 0.0
      %1321 = vmatpush1.msra.mxu0 %v568
      %1322 = vmatprep.subr.mxu0 0.0
      %1323 = vmatpush1.msra.mxu0 %v569
      %1324 = vmatprep.subr.mxu0 0.0
      %1325 = vmatpush1.msra.mxu0 %v570
      %1326 = vmatprep.subr.mxu0 0.0
      %1327 = vmatpush1.msra.mxu0 %v571
      %1328 = vmatprep.subr.mxu0 0.0
      %1329 = vmatpush1.msra.mxu0 0.0
      %1330 = vmatprep.subr.mxu0 0.0
      %1331 = vmatpush1.msra.mxu0 0.0
      %1332 = vmatprep.subr.mxu0 0.0
      %1333 = vmatpush1.msra.mxu0 0.0
      %1334 = vmatprep.subr.mxu0 0.0
      %1335 = vmatpush1.msra.mxu0 0.0
      %1336 = vmatprep.subr.mxu0 0.0
      %1337 = vmatpush1.msra.mxu0 0.0
      %1338 = vmatprep.subr.mxu0 0.0
      %1339 = vmatpush1.msra.mxu0 0.0
      %1340 = vmatprep.subr.mxu0 0.0
      %1341 = vmatpush1.msra.mxu0 0.0
      %1342 = vmatprep.subr.mxu0 0.0
      %1343 = vmatpush1.msra.mxu0 0.0
      %1344 = vmatprep.subr.mxu0 0.0
      %1345 = vmatpush1.msra.mxu0 0.0
      %1346 = vmatprep.subr.mxu0 0.0
      %1347 = vmatpush1.msra.mxu0 0.0
      %1348 = vmatprep.subr.mxu0 0.0
      %1349 = vmatpush1.msra.mxu0 0.0
      %1350 = vmatprep.subr.mxu0 0.0
      %1351 = vmatpush1.msra.mxu0 0.0
      %1352 = vmatprep.subr.mxu0 0.0
      %1353 = vmatpush1.msra.mxu0 0.0
      %1354 = vmatprep.subr.mxu0 0.0
      %1355 = vmatpush1.msra.mxu0 0.0
      %1356 = vmatprep.subr.mxu0 0.0
      %1357 = vmatpush1.msra.mxu0 0.0
      %1358 = vmatprep.subr.mxu0 0.0
      %1359 = vmatpush1.msra.mxu0 0.0
      %1360 = vmatprep.mubr.f32.mxu0 0.0
      %1361 = vmatmul.mubr.f32.gmra.mrb[0].mxu0 %v488
      %v1362 = vpop.f32.mrb[0].mxu0
      %v1363 = vadd.f32 %v1138, %v1362
      %v1364 = vpop.f32.mrb[0].mxu0
      %1365 = vmatprep.mubr.f32.mxu0 0.0
      %1366 = vmatmul.mubr.f32.gmra.mrb[0].mxu0 %v489
      %v1367 = vpop.f32.mrb[0].mxu0
      %v1368 = vadd.f32 %v1143, %v1367
      %v1369 = vpop.f32.mrb[0].mxu0
      %1370 = vmatprep.mubr.f32.mxu0 0.0
      %1371 = vmatmul.mubr.f32.gmra.mrb[0].mxu0 %v490
      %v1372 = vpop.f32.mrb[0].mxu0
      %v1373 = vadd.f32 %v1148, %v1372
      %v1374 = vpop.f32.mrb[0].mxu0
      %1375 = vmatprep.mubr.f32.mxu0 0.0
      %1376 = vmatmul.mubr.f32.gmra.mrb[0].mxu0 %v491
      %v1377 = vpop.f32.mrb[0].mxu0
      %v1378 = vadd.f32 %v1153, %v1377
      %v1379 = vpop.f32.mrb[0].mxu0
      %1380 = vmatprep.mubr.f32.mxu0 0.0
      %1381 = vmatmul.mubr.f32.gmra.mrb[0].mxu0 %v492
      %v1382 = vpop.f32.mrb[0].mxu0
      %v1383 = vadd.f32 %v1158, %v1382
      %v1384 = vpop.f32.mrb[0].mxu0
      %1385 = vmatprep.mubr.f32.mxu0 0.0
      %1386 = vmatmul.mubr.f32.gmra.mrb[0].mxu0 %v493
      %v1387 = vpop.f32.mrb[0].mxu0
      %v1388 = vadd.f32 %v1163, %v1387
      %v1389 = vpop.f32.mrb[0].mxu0
      %1390 = vmatprep.mubr.f32.mxu0 0.0
      %1391 = vmatmul.mubr.f32.gmra.mrb[0].mxu0 %v494
      %v1392 = vpop.f32.mrb[0].mxu0
      %v1393 = vadd.f32 %v1168, %v1392
      %v1394 = vpop.f32.mrb[0].mxu0
      %1395 = vmatprep.mubr.f32.mxu0 0.0
      %1396 = vmatmul.mubr.f32.gmra.mrb[0].mxu0 %v495
      %v1397 = vpop.f32.mrb[0].mxu0
      %v1398 = vadd.f32 %v1173, %v1397
      %v1399 = vpop.f32.mrb[0].mxu0
      %1400 = vmatprep.mubr.f32.mxu0 0.0
      %1401 = vmatmul.mubr.f32.gmra.mrb[0].mxu0 %v496
      %v1402 = vpop.f32.mrb[0].mxu0
      %v1403 = vadd.f32 %v1178, %v1402
      %v1404 = vpop.f32.mrb[0].mxu0
      %1405 = vmatprep.mubr.f32.mxu0 0.0
      %1406 = vmatmul.mubr.f32.gmra.mrb[0].mxu0 %v497
      %v1407 = vpop.f32.mrb[0].mxu0
      %v1408 = vadd.f32 %v1183, %v1407
      %v1409 = vpop.f32.mrb[0].mxu0
      %1410 = vmatprep.mubr.f32.mxu0 0.0
      %1411 = vmatmul.mubr.f32.gmra.mrb[0].mxu0 %v498
      %v1412 = vpop.f32.mrb[0].mxu0
      %v1413 = vadd.f32 %v1188, %v1412
      %v1414 = vpop.f32.mrb[0].mxu0
      %1415 = vmatprep.mubr.f32.mxu0 0.0
      %1416 = vmatmul.mubr.f32.gmra.mrb[0].mxu0 %v499
      %v1417 = vpop.f32.mrb[0].mxu0
      %v1418 = vadd.f32 %v1193, %v1417
      %v1419 = vpop.f32.mrb[0].mxu0
      %1420 = vmatprep.mubr.f32.mxu0 0.0
      %1421 = vmatmul.mubr.f32.gmra.mrb[0].mxu0 %v500
      %v1422 = vpop.f32.mrb[0].mxu0
      %v1423 = vadd.f32 %v1198, %v1422
      %v1424 = vpop.f32.mrb[0].mxu0
      %1425 = vmatprep.mubr.f32.mxu0 0.0
      %1426 = vmatmul.mubr.f32.gmra.mrb[0].mxu0 %v501
      %v1427 = vpop.f32.mrb[0].mxu0
      %v1428 = vadd.f32 %v1203, %v1427
      %v1429 = vpop.f32.mrb[0].mxu0
      %1430 = vmatprep.mubr.f32.mxu0 0.0
      %1431 = vmatmul.mubr.f32.gmra.mrb[0].mxu0 %v502
      %v1432 = vpop.f32.mrb[0].mxu0
      %v1433 = vadd.f32 %v1208, %v1432
      %v1434 = vpop.f32.mrb[0].mxu0
      %1435 = vmatprep.mubr.f32.mxu0 0.0
      %1436 = vmatmul.mubr.f32.gmra.mrb[0].mxu0 %v503
      %v1437 = vpop.f32.mrb[0].mxu0
      %v1438 = vadd.f32 %v1213, %v1437
      %v1439 = vpop.f32.mrb[0].mxu0
      %1440 = vmatprep.mubr.f32.mxu0 0.0
      %1441 = vmatmul.mubr.f32.gmra.mrb[0].mxu0 %v504
      %v1442 = vpop.f32.mrb[0].mxu0
      %v1443 = vadd.f32 %v1218, %v1442
      %v1444 = vpop.f32.mrb[0].mxu0
      %1445 = vmatprep.mubr.f32.mxu0 0.0
      %1446 = vmatmul.mubr.f32.gmra.mrb[0].mxu0 %v505
      %v1447 = vpop.f32.mrb[0].mxu0
      %v1448 = vadd.f32 %v1223, %v1447
      %v1449 = vpop.f32.mrb[0].mxu0
      %1450 = vmatprep.mubr.f32.mxu0 0.0
      %1451 = vmatmul.mubr.f32.gmra.mrb[0].mxu0 %v506
      %v1452 = vpop.f32.mrb[0].mxu0
      %v1453 = vadd.f32 %v1228, %v1452
      %v1454 = vpop.f32.mrb[0].mxu0
      %1455 = vmatprep.mubr.f32.mxu0 0.0
      %1456 = vmatmul.mubr.f32.gmra.mrb[0].mxu0 %v507
      %v1457 = vpop.f32.mrb[0].mxu0
      %v1458 = vadd.f32 %v1233, %v1457
      %v1459 = vpop.f32.mrb[0].mxu0
      %1460 = vmatprep.mubr.f32.mxu0 0.0
      %1461 = vmatmul.mubr.f32.gmra.mrb[0].mxu0 %v508
      %v1462 = vpop.f32.mrb[0].mxu0
      %v1463 = vadd.f32 %v1238, %v1462
      %v1464 = vpop.f32.mrb[0].mxu0
      %1465 = vmatprep.mubr.f32.mxu0 0.0
      %1466 = vmatmul.mubr.f32.gmra.mrb[0].mxu0 %v509
      %v1467 = vpop.f32.mrb[0].mxu0
      %v1468 = vadd.f32 %v1243, %v1467
      %v1469 = vpop.f32.mrb[0].mxu0
      %1470 = vmatprep.mubr.f32.mxu0 0.0
      %1471 = vmatmul.mubr.f32.gmra.mrb[0].mxu0 %v510
      %v1472 = vpop.f32.mrb[0].mxu0
      %v1473 = vadd.f32 %v1248, %v1472
      %v1474 = vpop.f32.mrb[0].mxu0
      %1475 = vmatprep.mubr.f32.mxu0 0.0
      %1476 = vmatmul.mubr.f32.gmra.mrb[0].mxu0 %v511
      %v1477 = vpop.f32.mrb[0].mxu0
      %v1478 = vadd.f32 %v1253, %v1477
      %v1479 = vpop.f32.mrb[0].mxu0
      %1480 = vmatprep.mubr.f32.mxu0 0.0
      %1481 = vmatmul.mubr.f32.gmra.mrb[0].mxu0 %v512
      %v1482 = vpop.f32.mrb[0].mxu0
      %v1483 = vadd.f32 %v1258, %v1482
      %v1484 = vpop.f32.mrb[0].mxu0
      %1485 = vmatprep.mubr.f32.mxu0 0.0
      %1486 = vmatmul.mubr.f32.gmra.mrb[0].mxu0 %v513
      %v1487 = vpop.f32.mrb[0].mxu0
      %v1488 = vadd.f32 %v1263, %v1487
      %v1489 = vpop.f32.mrb[0].mxu0
      %1490 = vmatprep.mubr.f32.mxu0 0.0
      %1491 = vmatmul.mubr.f32.gmra.mrb[0].mxu0 %v514
      %v1492 = vpop.f32.mrb[0].mxu0
      %v1493 = vadd.f32 %v1268, %v1492
      %v1494 = vpop.f32.mrb[0].mxu0
      %1495 = vmatprep.mubr.f32.mxu0 0.0
      %1496 = vmatmul.mubr.f32.gmra.mrb[0].mxu0 %v515
      %v1497 = vpop.f32.mrb[0].mxu0
      %v1498 = vadd.f32 %v1273, %v1497
      %v1499 = vpop.f32.mrb[0].mxu0
      %1500 = vmatprep.mubr.f32.mxu0 0.0
      %1501 = vmatmul.mubr.f32.gmra.mrb[0].mxu0 %v516
      %v1502 = vpop.f32.mrb[0].mxu0
      %v1503 = vadd.f32 %v1278, %v1502
      %v1504 = vpop.f32.mrb[0].mxu0
      %1505 = vmatprep.mubr.f32.mxu0 0.0
      %1506 = vmatmul.mubr.f32.gmra.mrb[0].mxu0 %v517
      %v1507 = vpop.f32.mrb[0].mxu0
      %v1508 = vadd.f32 %v1283, %v1507
      %v1509 = vpop.f32.mrb[0].mxu0
      %1510 = vmatprep.mubr.f32.mxu0 0.0
      %1511 = vmatmul.mubr.f32.gmra.mrb[0].mxu0 %v518
      %v1512 = vpop.f32.mrb[0].mxu0
      %v1513 = vadd.f32 %v1288, %v1512
      %v1514 = vpop.f32.mrb[0].mxu0
      %1515 = vmatprep.mubr.f32.mxu0 0.0
      %1516 = vmatmul.mubr.f32.gmra.mrb[0].mxu0 %v519
      %v1517 = vpop.f32.mrb[0].mxu0
      %v1518 = vadd.f32 %v1293, %v1517
      %v1519 = vpop.f32.mrb[0].mxu0
      %1520 = vdwg.mxu0
      %s1521 = scalar_lea.vmem %s1, 768
      %v1522 = vld [vmem:[%s1521] sm:$0xff]
      %v1523 = vld [vmem:[%s1521 + $0x8] sm:$0xff]
      %v1524 = vld [vmem:[%s1521 + $0x10] sm:$0xff]
      %v1525 = vld [vmem:[%s1521 + $0x18] sm:$0xff]
      %v1526 = vld [vmem:[%s1521 + $0x20] sm:$0xff]
      %v1527 = vld [vmem:[%s1521 + $0x28] sm:$0xff]
      %v1528 = vld [vmem:[%s1521 + $0x30] sm:$0xff]
      %v1529 = vld [vmem:[%s1521 + $0x38] sm:$0xff]
      %v1530 = vld [vmem:[%s1521 + $0x40] sm:$0xff]
      %v1531 = vld [vmem:[%s1521 + $0x48] sm:$0xff]
      %v1532 = vld [vmem:[%s1521 + $0x50] sm:$0xff]
      %v1533 = vld [vmem:[%s1521 + $0x58] sm:$0xff]
      %v1534 = vld [vmem:[%s1521 + $0x60] sm:$0xff]
      %v1535 = vld [vmem:[%s1521 + $0x68] sm:$0xff]
      %v1536 = vld [vmem:[%s1521 + $0x70] sm:$0xff]
      %v1537 = vld [vmem:[%s1521 + $0x78] sm:$0xff]
      %v1538 = vld [vmem:[%s1521 + $0x80] sm:$0xff]
      %v1539 = vld [vmem:[%s1521 + $0x88] sm:$0xff]
      %v1540 = vld [vmem:[%s1521 + $0x90] sm:$0xff]
      %v1541 = vld [vmem:[%s1521 + $0x98] sm:$0xff]
      %v1542 = vld [vmem:[%s1521 + $0xa0] sm:$0xff]
      %v1543 = vld [vmem:[%s1521 + $0xa8] sm:$0xff]
      %v1544 = vld [vmem:[%s1521 + $0xb0] sm:$0xff]
      %v1545 = vld [vmem:[%s1521 + $0xb8] sm:$0xff]
      %v1546 = vld [vmem:[%s1521 + $0xc0] sm:$0xff]
      %v1547 = vld [vmem:[%s1521 + $0xc8] sm:$0xff]
      %v1548 = vld [vmem:[%s1521 + $0xd0] sm:$0xff]
      %v1549 = vld [vmem:[%s1521 + $0xd8] sm:$0xff]
      %v1550 = vld [vmem:[%s1521 + $0xe0] sm:$0xff]
      %v1551 = vld [vmem:[%s1521 + $0xe8] sm:$0xff]
      %v1552 = vld [vmem:[%s1521 + $0xf0] sm:$0xff]
      %v1553 = vld [vmem:[%s1521 + $0xf8] sm:$0xff]
      %v1554 = vld [vmem:[%s1521 + $0x100] sm:$0xff]
      %v1555 = vld [vmem:[%s1521 + $0x108] sm:$0xff]
      %v1556 = vld [vmem:[%s1521 + $0x110] sm:$0xff]
      %v1557 = vld [vmem:[%s1521 + $0x118] sm:$0xff]
      %v1558 = vld [vmem:[%s1521 + $0x120] sm:$0xff]
      %v1559 = vld [vmem:[%s1521 + $0x128] sm:$0xff]
      %v1560 = vld [vmem:[%s1521 + $0x130] sm:$0xff]
      %v1561 = vld [vmem:[%s1521 + $0x138] sm:$0xff]
      %v1562 = vld [vmem:[%s1521 + $0x140] sm:$0xff]
      %v1563 = vld [vmem:[%s1521 + $0x148] sm:$0xff]
      %v1564 = vld [vmem:[%s1521 + $0x150] sm:$0xff]
      %v1565 = vld [vmem:[%s1521 + $0x158] sm:$0xff]
      %v1566 = vld [vmem:[%s1521 + $0x160] sm:$0xff]
      %v1567 = vld [vmem:[%s1521 + $0x168] sm:$0xff]
      %v1568 = vld [vmem:[%s1521 + $0x170] sm:$0xff]
      %v1569 = vld [vmem:[%s1521 + $0x178] sm:$0xff]
      %1570 = vmatprep.subr.mxu0 0.0
      %1571 = vmatpush1.msra.mxu0 %v1522
      %1572 = vmatprep.subr.mxu0 0.0
      %1573 = vmatpush1.msra.mxu0 %v1523
      %1574 = vmatprep.subr.mxu0 0.0
      %1575 = vmatpush1.msra.mxu0 %v1524
      %1576 = vmatprep.subr.mxu0 0.0
      %1577 = vmatpush1.msra.mxu0 %v1525
      %1578 = vmatprep.subr.mxu0 0.0
      %1579 = vmatpush1.msra.mxu0 %v1526
      %1580 = vmatprep.subr.mxu0 0.0
      %1581 = vmatpush1.msra.mxu0 %v1527
      %1582 = vmatprep.subr.mxu0 0.0
      %1583 = vmatpush1.msra.mxu0 %v1528
      %1584 = vmatprep.subr.mxu0 0.0
      %1585 = vmatpush1.msra.mxu0 %v1529
      %1586 = vmatprep.subr.mxu0 0.0
      %1587 = vmatpush1.msra.mxu0 %v1530
      %1588 = vmatprep.subr.mxu0 0.0
      %1589 = vmatpush1.msra.mxu0 %v1531
      %1590 = vmatprep.subr.mxu0 0.0
      %1591 = vmatpush1.msra.mxu0 %v1532
      %1592 = vmatprep.subr.mxu0 0.0
      %1593 = vmatpush1.msra.mxu0 %v1533
      %1594 = vmatprep.subr.mxu0 0.0
      %1595 = vmatpush1.msra.mxu0 %v1534
      %1596 = vmatprep.subr.mxu0 0.0
      %1597 = vmatpush1.msra.mxu0 %v1535
      %1598 = vmatprep.subr.mxu0 0.0
      %1599 = vmatpush1.msra.mxu0 %v1536
      %1600 = vmatprep.subr.mxu0 0.0
      %1601 = vmatpush1.msra.mxu0 %v1537
      %1602 = vmatprep.subr.mxu0 0.0
      %1603 = vmatpush1.msra.mxu0 %v1538
      %1604 = vmatprep.subr.mxu0 0.0
      %1605 = vmatpush1.msra.mxu0 %v1539
      %1606 = vmatprep.subr.mxu0 0.0
      %1607 = vmatpush1.msra.mxu0 %v1540
      %1608 = vmatprep.subr.mxu0 0.0
      %1609 = vmatpush1.msra.mxu0 %v1541
      %1610 = vmatprep.subr.mxu0 0.0
      %1611 = vmatpush1.msra.mxu0 %v1542
      %1612 = vmatprep.subr.mxu0 0.0
      %1613 = vmatpush1.msra.mxu0 %v1543
      %1614 = vmatprep.subr.mxu0 0.0
      %1615 = vmatpush1.msra.mxu0 %v1544
      %1616 = vmatprep.subr.mxu0 0.0
      %1617 = vmatpush1.msra.mxu0 %v1545
      %1618 = vmatprep.subr.mxu0 0.0
      %1619 = vmatpush1.msra.mxu0 %v1546
      %1620 = vmatprep.subr.mxu0 0.0
      %1621 = vmatpush1.msra.mxu0 %v1547
      %1622 = vmatprep.subr.mxu0 0.0
      %1623 = vmatpush1.msra.mxu0 %v1548
      %1624 = vmatprep.subr.mxu0 0.0
      %1625 = vmatpush1.msra.mxu0 %v1549
      %1626 = vmatprep.subr.mxu0 0.0
      %1627 = vmatpush1.msra.mxu0 %v1550
      %1628 = vmatprep.subr.mxu0 0.0
      %1629 = vmatpush1.msra.mxu0 %v1551
      %1630 = vmatprep.subr.mxu0 0.0
      %1631 = vmatpush1.msra.mxu0 %v1552
      %1632 = vmatprep.subr.mxu0 0.0
      %1633 = vmatpush1.msra.mxu0 %v1553
      %1634 = vmatprep.mubr.f32.mxu0 %v456
      %1635 = vmatmul.mubr.f32.gmra.mrb[0].mxu0 %v420
      %v1636 = vpop.f32.mrb[0].mxu0
      %v1637 = vadd.f32 0.0, %v1636
      %v1638 = vpop.f32.mrb[0].mxu0
      %1639 = vmatprep.mubr.f32.mxu0 %v457
      %1640 = vmatmul.mubr.f32.gmra.mrb[0].mxu0 %v421
      %v1641 = vpop.f32.mrb[0].mxu0
      %v1642 = vadd.f32 0.0, %v1641
      %v1643 = vpop.f32.mrb[0].mxu0
      %1644 = vmatprep.mubr.f32.mxu0 %v458
      %1645 = vmatmul.mubr.f32.gmra.mrb[0].mxu0 %v422
      %v1646 = vpop.f32.mrb[0].mxu0
      %v1647 = vadd.f32 0.0, %v1646
      %v1648 = vpop.f32.mrb[0].mxu0
      %1649 = vmatprep.mubr.f32.mxu0 %v459
      %1650 = vmatmul.mubr.f32.gmra.mrb[0].mxu0 %v423
      %v1651 = vpop.f32.mrb[0].mxu0
      %v1652 = vadd.f32 0.0, %v1651
      %v1653 = vpop.f32.mrb[0].mxu0
      %1654 = vmatprep.mubr.f32.mxu0 %v460
      %1655 = vmatmul.mubr.f32.gmra.mrb[0].mxu0 %v424
      %v1656 = vpop.f32.mrb[0].mxu0
      %v1657 = vadd.f32 0.0, %v1656
      %v1658 = vpop.f32.mrb[0].mxu0
      %1659 = vmatprep.mubr.f32.mxu0 %v461
      %1660 = vmatmul.mubr.f32.gmra.mrb[0].mxu0 %v425
      %v1661 = vpop.f32.mrb[0].mxu0
      %v1662 = vadd.f32 0.0, %v1661
      %v1663 = vpop.f32.mrb[0].mxu0
      %1664 = vmatprep.mubr.f32.mxu0 %v462
      %1665 = vmatmul.mubr.f32.gmra.mrb[0].mxu0 %v426
      %v1666 = vpop.f32.mrb[0].mxu0
      %v1667 = vadd.f32 0.0, %v1666
      %v1668 = vpop.f32.mrb[0].mxu0
      %1669 = vmatprep.mubr.f32.mxu0 %v463
      %1670 = vmatmul.mubr.f32.gmra.mrb[0].mxu0 %v427
      %v1671 = vpop.f32.mrb[0].mxu0
      %v1672 = vadd.f32 0.0, %v1671
      %v1673 = vpop.f32.mrb[0].mxu0
      %1674 = vmatprep.mubr.f32.mxu0 %v464
      %1675 = vmatmul.mubr.f32.gmra.mrb[0].mxu0 %v428
      %v1676 = vpop.f32.mrb[0].mxu0
      %v1677 = vadd.f32 0.0, %v1676
      %v1678 = vpop.f32.mrb[0].mxu0
      %1679 = vmatprep.mubr.f32.mxu0 %v465
      %1680 = vmatmul.mubr.f32.gmra.mrb[0].mxu0 %v429
      %v1681 = vpop.f32.mrb[0].mxu0
      %v1682 = vadd.f32 0.0, %v1681
      %v1683 = vpop.f32.mrb[0].mxu0
      %1684 = vmatprep.mubr.f32.mxu0 %v466
      %1685 = vmatmul.mubr.f32.gmra.mrb[0].mxu0 %v430
      %v1686 = vpop.f32.mrb[0].mxu0
      %v1687 = vadd.f32 0.0, %v1686
      %v1688 = vpop.f32.mrb[0].mxu0
      %1689 = vmatprep.mubr.f32.mxu0 %v467
      %1690 = vmatmul.mubr.f32.gmra.mrb[0].mxu0 %v431
      %v1691 = vpop.f32.mrb[0].mxu0
      %v1692 = vadd.f32 0.0, %v1691
      %v1693 = vpop.f32.mrb[0].mxu0
      %1694 = vmatprep.mubr.f32.mxu0 %v468
      %1695 = vmatmul.mubr.f32.gmra.mrb[0].mxu0 %v432
      %v1696 = vpop.f32.mrb[0].mxu0
      %v1697 = vadd.f32 0.0, %v1696
      %v1698 = vpop.f32.mrb[0].mxu0
      %1699 = vmatprep.mubr.f32.mxu0 %v469
      %1700 = vmatmul.mubr.f32.gmra.mrb[0].mxu0 %v433
      %v1701 = vpop.f32.mrb[0].mxu0
      %v1702 = vadd.f32 0.0, %v1701
      %v1703 = vpop.f32.mrb[0].mxu0
      %1704 = vmatprep.mubr.f32.mxu0 %v470
      %1705 = vmatmul.mubr.f32.gmra.mrb[0].mxu0 %v434
      %v1706 = vpop.f32.mrb[0].mxu0
      %v1707 = vadd.f32 0.0, %v1706
      %v1708 = vpop.f32.mrb[0].mxu0
      %1709 = vmatprep.mubr.f32.mxu0 %v471
      %1710 = vmatmul.mubr.f32.gmra.mrb[0].mxu0 %v435
      %v1711 = vpop.f32.mrb[0].mxu0
      %v1712 = vadd.f32 0.0, %v1711
      %v1713 = vpop.f32.mrb[0].mxu0
      %1714 = vmatprep.mubr.f32.mxu0 %v472
      %1715 = vmatmul.mubr.f32.gmra.mrb[0].mxu0 %v436
      %v1716 = vpop.f32.mrb[0].mxu0
      %v1717 = vadd.f32 0.0, %v1716
      %v1718 = vpop.f32.mrb[0].mxu0
      %1719 = vmatprep.mubr.f32.mxu0 %v473
      %1720 = vmatmul.mubr.f32.gmra.mrb[0].mxu0 %v437
      %v1721 = vpop.f32.mrb[0].mxu0
      %v1722 = vadd.f32 0.0, %v1721
      %v1723 = vpop.f32.mrb[0].mxu0
      %1724 = vmatprep.mubr.f32.mxu0 %v474
      %1725 = vmatmul.mubr.f32.gmra.mrb[0].mxu0 %v438
      %v1726 = vpop.f32.mrb[0].mxu0
      %v1727 = vadd.f32 0.0, %v1726
      %v1728 = vpop.f32.mrb[0].mxu0
      %1729 = vmatprep.mubr.f32.mxu0 %v475
      %1730 = vmatmul.mubr.f32.gmra.mrb[0].mxu0 %v439
      %v1731 = vpop.f32.mrb[0].mxu0
      %v1732 = vadd.f32 0.0, %v1731
      %v1733 = vpop.f32.mrb[0].mxu0
      %1734 = vmatprep.mubr.f32.mxu0 %v476
      %1735 = vmatmul.mubr.f32.gmra.mrb[0].mxu0 %v440
      %v1736 = vpop.f32.mrb[0].mxu0
      %v1737 = vadd.f32 0.0, %v1736
      %v1738 = vpop.f32.mrb[0].mxu0
      %1739 = vmatprep.mubr.f32.mxu0 %v477
      %1740 = vmatmul.mubr.f32.gmra.mrb[0].mxu0 %v441
      %v1741 = vpop.f32.mrb[0].mxu0
      %v1742 = vadd.f32 0.0, %v1741
      %v1743 = vpop.f32.mrb[0].mxu0
      %1744 = vmatprep.mubr.f32.mxu0 %v478
      %1745 = vmatmul.mubr.f32.gmra.mrb[0].mxu0 %v442
      %v1746 = vpop.f32.mrb[0].mxu0
      %v1747 = vadd.f32 0.0, %v1746
      %v1748 = vpop.f32.mrb[0].mxu0
      %1749 = vmatprep.mubr.f32.mxu0 %v479
      %1750 = vmatmul.mubr.f32.gmra.mrb[0].mxu0 %v443
      %v1751 = vpop.f32.mrb[0].mxu0
      %v1752 = vadd.f32 0.0, %v1751
      %v1753 = vpop.f32.mrb[0].mxu0
      %1754 = vmatprep.mubr.f32.mxu0 %v480
      %1755 = vmatmul.mubr.f32.gmra.mrb[0].mxu0 %v444
      %v1756 = vpop.f32.mrb[0].mxu0
      %v1757 = vadd.f32 0.0, %v1756
      %v1758 = vpop.f32.mrb[0].mxu0
      %1759 = vmatprep.mubr.f32.mxu0 %v481
      %1760 = vmatmul.mubr.f32.gmra.mrb[0].mxu0 %v445
      %v1761 = vpop.f32.mrb[0].mxu0
      %v1762 = vadd.f32 0.0, %v1761
      %v1763 = vpop.f32.mrb[0].mxu0
      %1764 = vmatprep.mubr.f32.mxu0 %v482
      %1765 = vmatmul.mubr.f32.gmra.mrb[0].mxu0 %v446
      %v1766 = vpop.f32.mrb[0].mxu0
      %v1767 = vadd.f32 0.0, %v1766
      %v1768 = vpop.f32.mrb[0].mxu0
      %1769 = vmatprep.mubr.f32.mxu0 %v483
      %1770 = vmatmul.mubr.f32.gmra.mrb[0].mxu0 %v447
      %v1771 = vpop.f32.mrb[0].mxu0
      %v1772 = vadd.f32 0.0, %v1771
      %v1773 = vpop.f32.mrb[0].mxu0
      %1774 = vmatprep.mubr.f32.mxu0 %v484
      %1775 = vmatmul.mubr.f32.gmra.mrb[0].mxu0 %v448
      %v1776 = vpop.f32.mrb[0].mxu0
      %v1777 = vadd.f32 0.0, %v1776
      %v1778 = vpop.f32.mrb[0].mxu0
      %1779 = vmatprep.mubr.f32.mxu0 %v485
      %1780 = vmatmul.mubr.f32.gmra.mrb[0].mxu0 %v449
      %v1781 = vpop.f32.mrb[0].mxu0
      %v1782 = vadd.f32 0.0, %v1781
      %v1783 = vpop.f32.mrb[0].mxu0
      %1784 = vmatprep.mubr.f32.mxu0 %v486
      %1785 = vmatmul.mubr.f32.gmra.mrb[0].mxu0 %v450
      %v1786 = vpop.f32.mrb[0].mxu0
      %v1787 = vadd.f32 0.0, %v1786
      %v1788 = vpop.f32.mrb[0].mxu0
      %1789 = vmatprep.mubr.f32.mxu0 %v487
      %1790 = vmatmul.mubr.f32.gmra.mrb[0].mxu0 %v451
      %v1791 = vpop.f32.mrb[0].mxu0
      %v1792 = vadd.f32 0.0, %v1791
      %v1793 = vpop.f32.mrb[0].mxu0
      %1794 = vdwg.mxu0
      %1795 = vmatprep.subr.mxu0 0.0
      %1796 = vmatpush1.msra.mxu0 %v1554
      %1797 = vmatprep.subr.mxu0 0.0
      %1798 = vmatpush1.msra.mxu0 %v1555
      %1799 = vmatprep.subr.mxu0 0.0
      %1800 = vmatpush1.msra.mxu0 %v1556
      %1801 = vmatprep.subr.mxu0 0.0
      %1802 = vmatpush1.msra.mxu0 %v1557
      %1803 = vmatprep.subr.mxu0 0.0
      %1804 = vmatpush1.msra.mxu0 %v1558
      %1805 = vmatprep.subr.mxu0 0.0
      %1806 = vmatpush1.msra.mxu0 %v1559
      %1807 = vmatprep.subr.mxu0 0.0
      %1808 = vmatpush1.msra.mxu0 %v1560
      %1809 = vmatprep.subr.mxu0 0.0
      %1810 = vmatpush1.msra.mxu0 %v1561
      %1811 = vmatprep.subr.mxu0 0.0
      %1812 = vmatpush1.msra.mxu0 %v1562
      %1813 = vmatprep.subr.mxu0 0.0
      %1814 = vmatpush1.msra.mxu0 %v1563
      %1815 = vmatprep.subr.mxu0 0.0
      %1816 = vmatpush1.msra.mxu0 %v1564
      %1817 = vmatprep.subr.mxu0 0.0
      %1818 = vmatpush1.msra.mxu0 %v1565
      %1819 = vmatprep.subr.mxu0 0.0
      %1820 = vmatpush1.msra.mxu0 %v1566
      %1821 = vmatprep.subr.mxu0 0.0
      %1822 = vmatpush1.msra.mxu0 %v1567
      %1823 = vmatprep.subr.mxu0 0.0
      %1824 = vmatpush1.msra.mxu0 %v1568
      %1825 = vmatprep.subr.mxu0 0.0
      %1826 = vmatpush1.msra.mxu0 %v1569
      %1827 = vmatprep.subr.mxu0 0.0
      %1828 = vmatpush1.msra.mxu0 0.0
      %1829 = vmatprep.subr.mxu0 0.0
      %1830 = vmatpush1.msra.mxu0 0.0
      %1831 = vmatprep.subr.mxu0 0.0
      %1832 = vmatpush1.msra.mxu0 0.0
      %1833 = vmatprep.subr.mxu0 0.0
      %1834 = vmatpush1.msra.mxu0 0.0
      %1835 = vmatprep.subr.mxu0 0.0
      %1836 = vmatpush1.msra.mxu0 0.0
      %1837 = vmatprep.subr.mxu0 0.0
      %1838 = vmatpush1.msra.mxu0 0.0
      %1839 = vmatprep.subr.mxu0 0.0
      %1840 = vmatpush1.msra.mxu0 0.0
      %1841 = vmatprep.subr.mxu0 0.0
      %1842 = vmatpush1.msra.mxu0 0.0
      %1843 = vmatprep.subr.mxu0 0.0
      %1844 = vmatpush1.msra.mxu0 0.0
      %1845 = vmatprep.subr.mxu0 0.0
      %1846 = vmatpush1.msra.mxu0 0.0
      %1847 = vmatprep.subr.mxu0 0.0
      %1848 = vmatpush1.msra.mxu0 0.0
      %1849 = vmatprep.subr.mxu0 0.0
      %1850 = vmatpush1.msra.mxu0 0.0
      %1851 = vmatprep.subr.mxu0 0.0
      %1852 = vmatpush1.msra.mxu0 0.0
      %1853 = vmatprep.subr.mxu0 0.0
      %1854 = vmatpush1.msra.mxu0 0.0
      %1855 = vmatprep.subr.mxu0 0.0
      %1856 = vmatpush1.msra.mxu0 0.0
      %1857 = vmatprep.subr.mxu0 0.0
      %1858 = vmatpush1.msra.mxu0 0.0
      %1859 = vmatprep.mubr.f32.mxu0 0.0
      %1860 = vmatmul.mubr.f32.gmra.mrb[0].mxu0 %v492
      %v1861 = vpop.f32.mrb[0].mxu0
      %v1862 = vadd.f32 %v1637, %v1861
      %v1863 = vpop.f32.mrb[0].mxu0
      %1864 = vmatprep.mubr.f32.mxu0 0.0
      %1865 = vmatmul.mubr.f32.gmra.mrb[0].mxu0 %v493
      %v1866 = vpop.f32.mrb[0].mxu0
      %v1867 = vadd.f32 %v1642, %v1866
      %v1868 = vpop.f32.mrb[0].mxu0
      %1869 = vmatprep.mubr.f32.mxu0 0.0
      %1870 = vmatmul.mubr.f32.gmra.mrb[0].mxu0 %v494
      %v1871 = vpop.f32.mrb[0].mxu0
      %v1872 = vadd.f32 %v1647, %v1871
      %v1873 = vpop.f32.mrb[0].mxu0
      %1874 = vmatprep.mubr.f32.mxu0 0.0
      %1875 = vmatmul.mubr.f32.gmra.mrb[0].mxu0 %v495
      %v1876 = vpop.f32.mrb[0].mxu0
      %v1877 = vadd.f32 %v1652, %v1876
      %v1878 = vpop.f32.mrb[0].mxu0
      %1879 = vmatprep.mubr.f32.mxu0 0.0
      %1880 = vmatmul.mubr.f32.gmra.mrb[0].mxu0 %v496
      %v1881 = vpop.f32.mrb[0].mxu0
      %v1882 = vadd.f32 %v1657, %v1881
      %v1883 = vpop.f32.mrb[0].mxu0
      %1884 = vmatprep.mubr.f32.mxu0 0.0
      %1885 = vmatmul.mubr.f32.gmra.mrb[0].mxu0 %v497
      %v1886 = vpop.f32.mrb[0].mxu0
      %v1887 = vadd.f32 %v1662, %v1886
      %v1888 = vpop.f32.mrb[0].mxu0
      %1889 = vmatprep.mubr.f32.mxu0 0.0
      %1890 = vmatmul.mubr.f32.gmra.mrb[0].mxu0 %v498
      %v1891 = vpop.f32.mrb[0].mxu0
      %v1892 = vadd.f32 %v1667, %v1891
      %v1893 = vpop.f32.mrb[0].mxu0
      %1894 = vmatprep.mubr.f32.mxu0 0.0
      %1895 = vmatmul.mubr.f32.gmra.mrb[0].mxu0 %v499
      %v1896 = vpop.f32.mrb[0].mxu0
      %v1897 = vadd.f32 %v1672, %v1896
      %v1898 = vpop.f32.mrb[0].mxu0
      %1899 = vmatprep.mubr.f32.mxu0 0.0
      %1900 = vmatmul.mubr.f32.gmra.mrb[0].mxu0 %v500
      %v1901 = vpop.f32.mrb[0].mxu0
      %v1902 = vadd.f32 %v1677, %v1901
      %v1903 = vpop.f32.mrb[0].mxu0
      %1904 = vmatprep.mubr.f32.mxu0 0.0
      %1905 = vmatmul.mubr.f32.gmra.mrb[0].mxu0 %v501
      %v1906 = vpop.f32.mrb[0].mxu0
      %v1907 = vadd.f32 %v1682, %v1906
      %v1908 = vpop.f32.mrb[0].mxu0
      %1909 = vmatprep.mubr.f32.mxu0 0.0
      %1910 = vmatmul.mubr.f32.gmra.mrb[0].mxu0 %v502
      %v1911 = vpop.f32.mrb[0].mxu0
      %v1912 = vadd.f32 %v1687, %v1911
      %v1913 = vpop.f32.mrb[0].mxu0
      %1914 = vmatprep.mubr.f32.mxu0 0.0
      %1915 = vmatmul.mubr.f32.gmra.mrb[0].mxu0 %v503
      %v1916 = vpop.f32.mrb[0].mxu0
      %v1917 = vadd.f32 %v1692, %v1916
      %v1918 = vpop.f32.mrb[0].mxu0
      %1919 = vmatprep.mubr.f32.mxu0 0.0
      %1920 = vmatmul.mubr.f32.gmra.mrb[0].mxu0 %v504
      %v1921 = vpop.f32.mrb[0].mxu0
      %v1922 = vadd.f32 %v1697, %v1921
      %v1923 = vpop.f32.mrb[0].mxu0
      %1924 = vmatprep.mubr.f32.mxu0 0.0
      %1925 = vmatmul.mubr.f32.gmra.mrb[0].mxu0 %v505
      %v1926 = vpop.f32.mrb[0].mxu0
      %v1927 = vadd.f32 %v1702, %v1926
      %v1928 = vpop.f32.mrb[0].mxu0
      %1929 = vmatprep.mubr.f32.mxu0 0.0
      %1930 = vmatmul.mubr.f32.gmra.mrb[0].mxu0 %v506
      %v1931 = vpop.f32.mrb[0].mxu0
      %v1932 = vadd.f32 %v1707, %v1931
      %v1933 = vpop.f32.mrb[0].mxu0
      %1934 = vmatprep.mubr.f32.mxu0 0.0
      %1935 = vmatmul.mubr.f32.gmra.mrb[0].mxu0 %v507
      %v1936 = vpop.f32.mrb[0].mxu0
      %v1937 = vadd.f32 %v1712, %v1936
      %v1938 = vpop.f32.mrb[0].mxu0
      %1939 = vmatprep.mubr.f32.mxu0 0.0
      %1940 = vmatmul.mubr.f32.gmra.mrb[0].mxu0 %v508
      %v1941 = vpop.f32.mrb[0].mxu0
      %v1942 = vadd.f32 %v1717, %v1941
      %v1943 = vpop.f32.mrb[0].mxu0
      %1944 = vmatprep.mubr.f32.mxu0 0.0
      %1945 = vmatmul.mubr.f32.gmra.mrb[0].mxu0 %v509
      %v1946 = vpop.f32.mrb[0].mxu0
      %v1947 = vadd.f32 %v1722, %v1946
      %v1948 = vpop.f32.mrb[0].mxu0
      %1949 = vmatprep.mubr.f32.mxu0 0.0
      %1950 = vmatmul.mubr.f32.gmra.mrb[0].mxu0 %v510
      %v1951 = vpop.f32.mrb[0].mxu0
      %v1952 = vadd.f32 %v1727, %v1951
      %v1953 = vpop.f32.mrb[0].mxu0
      %1954 = vmatprep.mubr.f32.mxu0 0.0
      %1955 = vmatmul.mubr.f32.gmra.mrb[0].mxu0 %v511
      %v1956 = vpop.f32.mrb[0].mxu0
      %v1957 = vadd.f32 %v1732, %v1956
      %v1958 = vpop.f32.mrb[0].mxu0
      %1959 = vmatprep.mubr.f32.mxu0 0.0
      %1960 = vmatmul.mubr.f32.gmra.mrb[0].mxu0 %v512
      %v1961 = vpop.f32.mrb[0].mxu0
      %v1962 = vadd.f32 %v1737, %v1961
      %v1963 = vpop.f32.mrb[0].mxu0
      %1964 = vmatprep.mubr.f32.mxu0 0.0
      %1965 = vmatmul.mubr.f32.gmra.mrb[0].mxu0 %v513
      %v1966 = vpop.f32.mrb[0].mxu0
      %v1967 = vadd.f32 %v1742, %v1966
      %v1968 = vpop.f32.mrb[0].mxu0
      %1969 = vmatprep.mubr.f32.mxu0 0.0
      %1970 = vmatmul.mubr.f32.gmra.mrb[0].mxu0 %v514
      %v1971 = vpop.f32.mrb[0].mxu0
      %v1972 = vadd.f32 %v1747, %v1971
      %v1973 = vpop.f32.mrb[0].mxu0
      %1974 = vmatprep.mubr.f32.mxu0 0.0
      %1975 = vmatmul.mubr.f32.gmra.mrb[0].mxu0 %v515
      %v1976 = vpop.f32.mrb[0].mxu0
      %v1977 = vadd.f32 %v1752, %v1976
      %v1978 = vpop.f32.mrb[0].mxu0
      %1979 = vmatprep.mubr.f32.mxu0 0.0
      %1980 = vmatmul.mubr.f32.gmra.mrb[0].mxu0 %v516
      %v1981 = vpop.f32.mrb[0].mxu0
      %v1982 = vadd.f32 %v1757, %v1981
      %v1983 = vpop.f32.mrb[0].mxu0
      %1984 = vmatprep.mubr.f32.mxu0 0.0
      %1985 = vmatmul.mubr.f32.gmra.mrb[0].mxu0 %v517
      %v1986 = vpop.f32.mrb[0].mxu0
      %v1987 = vadd.f32 %v1762, %v1986
      %v1988 = vpop.f32.mrb[0].mxu0
      %1989 = vmatprep.mubr.f32.mxu0 0.0
      %1990 = vmatmul.mubr.f32.gmra.mrb[0].mxu0 %v518
      %v1991 = vpop.f32.mrb[0].mxu0
      %v1992 = vadd.f32 %v1767, %v1991
      %v1993 = vpop.f32.mrb[0].mxu0
      %1994 = vmatprep.mubr.f32.mxu0 0.0
      %1995 = vmatmul.mubr.f32.gmra.mrb[0].mxu0 %v519
      %v1996 = vpop.f32.mrb[0].mxu0
      %v1997 = vadd.f32 %v1772, %v1996
      %v1998 = vpop.f32.mrb[0].mxu0
      %1999 = vmatprep.mubr.f32.mxu0 0.0
      %2000 = vmatmul.mubr.f32.gmra.mrb[0].mxu0 %v520
      %v2001 = vpop.f32.mrb[0].mxu0
      %v2002 = vadd.f32 %v1777, %v2001
      %v2003 = vpop.f32.mrb[0].mxu0
      %2004 = vmatprep.mubr.f32.mxu0 0.0
      %2005 = vmatmul.mubr.f32.gmra.mrb[0].mxu0 %v521
      %v2006 = vpop.f32.mrb[0].mxu0
      %v2007 = vadd.f32 %v1782, %v2006
      %v2008 = vpop.f32.mrb[0].mxu0
      %2009 = vmatprep.mubr.f32.mxu0 0.0
      %2010 = vmatmul.mubr.f32.gmra.mrb[0].mxu0 %v522
      %v2011 = vpop.f32.mrb[0].mxu0
      %v2012 = vadd.f32 %v1787, %v2011
      %v2013 = vpop.f32.mrb[0].mxu0
      %2014 = vmatprep.mubr.f32.mxu0 0.0
      %2015 = vmatmul.mubr.f32.gmra.mrb[0].mxu0 %v523
      %v2016 = vpop.f32.mrb[0].mxu0
      %v2017 = vadd.f32 %v1792, %v2016
      %v2018 = vpop.f32.mrb[0].mxu0
      %2019 = vdwg.mxu0
      %v2020 = vadd.f32 %v1363, %v1862
      %v2021 = vadd.f32 %v1368, %v1867
      %v2022 = vadd.f32 %v1373, %v1872
      %v2023 = vadd.f32 %v1378, %v1877
      %v2024 = vadd.f32 %v1383, %v1882
      %v2025 = vadd.f32 %v1388, %v1887
      %v2026 = vadd.f32 %v1393, %v1892
      %v2027 = vadd.f32 %v1398, %v1897
      %v2028 = vadd.f32 %v1403, %v1902
      %v2029 = vadd.f32 %v1408, %v1907
      %v2030 = vadd.f32 %v1413, %v1912
      %v2031 = vadd.f32 %v1418, %v1917
      %v2032 = vadd.f32 %v1423, %v1922
      %v2033 = vadd.f32 %v1428, %v1927
      %v2034 = vadd.f32 %v1433, %v1932
      %v2035 = vadd.f32 %v1438, %v1937
      %v2036 = vadd.f32 %v1443, %v1942
      %v2037 = vadd.f32 %v1448, %v1947
      %v2038 = vadd.f32 %v1453, %v1952
      %v2039 = vadd.f32 %v1458, %v1957
      %v2040 = vadd.f32 %v1463, %v1962
      %v2041 = vadd.f32 %v1468, %v1967
      %v2042 = vadd.f32 %v1473, %v1972
      %v2043 = vadd.f32 %v1478, %v1977
      %v2044 = vadd.f32 %v1483, %v1982
      %v2045 = vadd.f32 %v1488, %v1987
      %v2046 = vadd.f32 %v1493, %v1992
      %v2047 = vadd.f32 %v1498, %v1997
      %v2048 = vadd.f32 %v1503, %v2002
      %v2049 = vadd.f32 %v1508, %v2007
      %v2050 = vadd.f32 %v1513, %v2012
      %v2051 = vadd.f32 %v1518, %v2017
      %v2052 = vld [vmem:[%s2] sm:$0x1]
      %v2054 = vlaneseq
      %v2055 = vshrl.u32 %v2054, 7
      %v2056 = vsub.s32 0, %v2055
      %v2057 = vrot.slane %v2052, %v2056
      %v2059 = vadd.f32 %v2020, %v2057
      %v2060 = vadd.f32 %v2021, %v2057
      %v2061 = vadd.f32 %v2022, %v2057
      %v2062 = vadd.f32 %v2023, %v2057
      %v2063 = vadd.f32 %v2024, %v2057
      %v2064 = vadd.f32 %v2025, %v2057
      %v2065 = vadd.f32 %v2026, %v2057
      %v2066 = vadd.f32 %v2027, %v2057
      %v2067 = vadd.f32 %v2028, %v2057
      %v2068 = vadd.f32 %v2029, %v2057
      %v2069 = vadd.f32 %v2030, %v2057
      %v2070 = vadd.f32 %v2031, %v2057
      %v2071 = vadd.f32 %v2032, %v2057
      %v2072 = vadd.f32 %v2033, %v2057
      %v2073 = vadd.f32 %v2034, %v2057
      %v2074 = vadd.f32 %v2035, %v2057
      %v2075 = vadd.f32 %v2036, %v2057
      %v2076 = vadd.f32 %v2037, %v2057
      %v2077 = vadd.f32 %v2038, %v2057
      %v2078 = vadd.f32 %v2039, %v2057
      %v2079 = vadd.f32 %v2040, %v2057
      %v2080 = vadd.f32 %v2041, %v2057
      %v2081 = vadd.f32 %v2042, %v2057
      %v2082 = vadd.f32 %v2043, %v2057
      %v2083 = vadd.f32 %v2044, %v2057
      %v2084 = vadd.f32 %v2045, %v2057
      %v2085 = vadd.f32 %v2046, %v2057
      %v2086 = vadd.f32 %v2047, %v2057
      %v2087 = vadd.f32 %v2048, %v2057
      %v2088 = vadd.f32 %v2049, %v2057
      %v2089 = vadd.f32 %v2050, %v2057
      %v2090 = vadd.f32 %v2051, %v2057
      %v2091 = vmax.f32 %v2059, 0.0
      %v2092 = vmax.f32 %v2060, 0.0
      %v2093 = vmax.f32 %v2061, 0.0
      %v2094 = vmax.f32 %v2062, 0.0
      %v2095 = vmax.f32 %v2063, 0.0
      %v2096 = vmax.f32 %v2064, 0.0
      %v2097 = vmax.f32 %v2065, 0.0
      %v2098 = vmax.f32 %v2066, 0.0
      %v2099 = vmax.f32 %v2067, 0.0
      %v2100 = vmax.f32 %v2068, 0.0
      %v2101 = vmax.f32 %v2069, 0.0
      %v2102 = vmax.f32 %v2070, 0.0
      %v2103 = vmax.f32 %v2071, 0.0
      %v2104 = vmax.f32 %v2072, 0.0
      %v2105 = vmax.f32 %v2073, 0.0
      %v2106 = vmax.f32 %v2074, 0.0
      %v2107 = vmax.f32 %v2075, 0.0
      %v2108 = vmax.f32 %v2076, 0.0
      %v2109 = vmax.f32 %v2077, 0.0
      %v2110 = vmax.f32 %v2078, 0.0
      %v2111 = vmax.f32 %v2079, 0.0
      %v2112 = vmax.f32 %v2080, 0.0
      %v2113 = vmax.f32 %v2081, 0.0
      %v2114 = vmax.f32 %v2082, 0.0
      %v2115 = vmax.f32 %v2083, 0.0
      %v2116 = vmax.f32 %v2084, 0.0
      %v2117 = vmax.f32 %v2085, 0.0
      %v2118 = vmax.f32 %v2086, 0.0
      %v2119 = vmax.f32 %v2087, 0.0
      %v2120 = vmax.f32 %v2088, 0.0
      %v2121 = vmax.f32 %v2089, 0.0
      %v2122 = vmax.f32 %v2090, 0.0
      %s2123 = scalar_lea.vmem [#allocation3], 24
      %2124 = vst [vmem:[%s2123 + $0x1] sm:$0xff] %v2091
      %2125 = vst [vmem:[%s2123 + $0x9] sm:$0xff] %v2092
      %2126 = vst [vmem:[%s2123 + $0x19] sm:$0xff] %v2093
      %2127 = vst [vmem:[%s2123 + $0x21] sm:$0xff] %v2094
      %2128 = vst [vmem:[%s2123 + $0x31] sm:$0xff] %v2095
      %2129 = vst [vmem:[%s2123 + $0x39] sm:$0xff] %v2096
      %2130 = vst [vmem:[%s2123 + $0x49] sm:$0xff] %v2097
      %2131 = vst [vmem:[%s2123 + $0x51] sm:$0xff] %v2098
      %2132 = vst [vmem:[%s2123 + $0x61] sm:$0xff] %v2099
      %2133 = vst [vmem:[%s2123 + $0x69] sm:$0xff] %v2100
      %2134 = vst [vmem:[%s2123 + $0x79] sm:$0xff] %v2101
      %2135 = vst [vmem:[%s2123 + $0x81] sm:$0xff] %v2102
      %2136 = vst [vmem:[%s2123 + $0x91] sm:$0xff] %v2103
      %2137 = vst [vmem:[%s2123 + $0x99] sm:$0xff] %v2104
      %2138 = vst [vmem:[%s2123 + $0xa9] sm:$0xff] %v2105
      %2139 = vst [vmem:[%s2123 + $0xb1] sm:$0xff] %v2106
      %2140 = vst [vmem:[%s2123 + $0xc1] sm:$0xff] %v2107
      %2141 = vst [vmem:[%s2123 + $0xc9] sm:$0xff] %v2108
      %2142 = vst [vmem:[%s2123 + $0xd9] sm:$0xff] %v2109
      %2143 = vst [vmem:[%s2123 + $0xe1] sm:$0xff] %v2110
      %2144 = vst [vmem:[%s2123 + $0xf1] sm:$0xff] %v2111
      %2145 = vst [vmem:[%s2123 + $0xf9] sm:$0xff] %v2112
      %2146 = vst [vmem:[%s2123 + $0x109] sm:$0xff] %v2113
      %2147 = vst [vmem:[%s2123 + $0x111] sm:$0xff] %v2114
      %2148 = vst [vmem:[%s2123 + $0x121] sm:$0xff] %v2115
      %2149 = vst [vmem:[%s2123 + $0x129] sm:$0xff] %v2116
      %2150 = vst [vmem:[%s2123 + $0x139] sm:$0xff] %v2117
      %2151 = vst [vmem:[%s2123 + $0x141] sm:$0xff] %v2118
      %2152 = vst [vmem:[%s2123 + $0x151] sm:$0xff] %v2119
      %2153 = vst [vmem:[%s2123 + $0x159] sm:$0xff] %v2120
      %2154 = vst [vmem:[%s2123 + $0x169] sm:$0xff] %v2121
      %2155 = vst [vmem:[%s2123 + $0x171] sm:$0xff] %v2122
      %v2156 = vld [vmem:[#allocation3] sm:$0xff]
      %v2157 = vld [vmem:[#allocation3 + $0x8] sm:$0xff]
      %v2158 = vld [vmem:[#allocation3 + $0x18] sm:$0xff]
      %v2159 = vld [vmem:[#allocation3 + $0x20] sm:$0xff]
      %v2160 = vld [vmem:[#allocation3 + $0x30] sm:$0xff]
      %v2161 = vld [vmem:[#allocation3 + $0x38] sm:$0xff]
      %v2162 = vld [vmem:[#allocation3 + $0x48] sm:$0xff]
      %v2163 = vld [vmem:[#allocation3 + $0x50] sm:$0xff]
      %v2164 = vld [vmem:[#allocation3 + $0x60] sm:$0xff]
      %v2165 = vld [vmem:[#allocation3 + $0x68] sm:$0xff]
      %v2166 = vld [vmem:[#allocation3 + $0x78] sm:$0xff]
      %v2167 = vld [vmem:[#allocation3 + $0x80] sm:$0xff]
      %v2168 = vld [vmem:[#allocation3 + $0x90] sm:$0xff]
      %v2169 = vld [vmem:[#allocation3 + $0x98] sm:$0xff]
      %v2170 = vld [vmem:[#allocation3 + $0xa8] sm:$0xff]
      %v2171 = vld [vmem:[#allocation3 + $0xb0] sm:$0xff]
      %v2172 = vld [vmem:[#allocation3 + $0xc0] sm:$0xff]
      %v2173 = vld [vmem:[#allocation3 + $0xc8] sm:$0xff]
      %v2174 = vld [vmem:[#allocation3 + $0xd8] sm:$0xff]
      %v2175 = vld [vmem:[#allocation3 + $0xe0] sm:$0xff]
      %v2176 = vld [vmem:[#allocation3 + $0xf0] sm:$0xff]
      %v2177 = vld [vmem:[#allocation3 + $0xf8] sm:$0xff]
      %v2178 = vld [vmem:[#allocation3 + $0x108] sm:$0xff]
      %v2179 = vld [vmem:[#allocation3 + $0x110] sm:$0xff]
      %v2180 = vld [vmem:[#allocation3 + $0x120] sm:$0xff]
      %v2181 = vld [vmem:[#allocation3 + $0x128] sm:$0xff]
      %v2182 = vld [vmem:[#allocation3 + $0x138] sm:$0xff]
      %v2183 = vld [vmem:[#allocation3 + $0x140] sm:$0xff]
      %v2184 = vld [vmem:[#allocation3 + $0x150] sm:$0xff]
      %v2185 = vld [vmem:[#allocation3 + $0x158] sm:$0xff]
      %v2186 = vld [vmem:[#allocation3 + $0x168] sm:$0xff]
      %v2187 = vld [vmem:[#allocation3 + $0x170] sm:$0xff]
      %v2188 = vld [vmem:[#allocation3 + $0x180] sm:$0xff]
      %v2189 = vld [vmem:[#allocation3 + $0x188] sm:$0xff]
      %v2190 = vld [vmem:[#allocation3 + $0x198] sm:$0xff]
      %v2191 = vld [vmem:[#allocation3 + $0x1a0] sm:$0xff]
      %v2192 = vld [vmem:[#allocation3 + $0x1] sm:$0xff]
      %v2193 = vld [vmem:[#allocation3 + $0x9] sm:$0xff]
      %v2194 = vld [vmem:[#allocation3 + $0x19] sm:$0xff]
      %v2195 = vld [vmem:[#allocation3 + $0x21] sm:$0xff]
      %v2196 = vld [vmem:[#allocation3 + $0x31] sm:$0xff]
      %v2197 = vld [vmem:[#allocation3 + $0x39] sm:$0xff]
      %v2198 = vld [vmem:[#allocation3 + $0x49] sm:$0xff]
      %v2199 = vld [vmem:[#allocation3 + $0x51] sm:$0xff]
      %v2200 = vld [vmem:[#allocation3 + $0x61] sm:$0xff]
      %v2201 = vld [vmem:[#allocation3 + $0x69] sm:$0xff]
      %v2202 = vld [vmem:[#allocation3 + $0x79] sm:$0xff]
      %v2203 = vld [vmem:[#allocation3 + $0x81] sm:$0xff]
      %v2204 = vld [vmem:[#allocation3 + $0x91] sm:$0xff]
      %v2205 = vld [vmem:[#allocation3 + $0x99] sm:$0xff]
      %v2206 = vld [vmem:[#allocation3 + $0xa9] sm:$0xff]
      %v2207 = vld [vmem:[#allocation3 + $0xb1] sm:$0xff]
      %v2208 = vld [vmem:[#allocation3 + $0xc1] sm:$0xff]
      %v2209 = vld [vmem:[#allocation3 + $0xc9] sm:$0xff]
      %v2210 = vld [vmem:[#allocation3 + $0xd9] sm:$0xff]
      %v2211 = vld [vmem:[#allocation3 + $0xe1] sm:$0xff]
      %v2212 = vld [vmem:[#allocation3 + $0xf1] sm:$0xff]
      %v2213 = vld [vmem:[#allocation3 + $0xf9] sm:$0xff]
      %v2214 = vld [vmem:[#allocation3 + $0x109] sm:$0xff]
      %v2215 = vld [vmem:[#allocation3 + $0x111] sm:$0xff]
      %v2216 = vld [vmem:[#allocation3 + $0x121] sm:$0xff]
      %v2217 = vld [vmem:[#allocation3 + $0x129] sm:$0xff]
      %v2218 = vld [vmem:[#allocation3 + $0x139] sm:$0xff]
      %v2219 = vld [vmem:[#allocation3 + $0x141] sm:$0xff]
      %v2220 = vld [vmem:[#allocation3 + $0x151] sm:$0xff]
      %v2221 = vld [vmem:[#allocation3 + $0x159] sm:$0xff]
      %v2222 = vld [vmem:[#allocation3 + $0x169] sm:$0xff]
      %v2223 = vld [vmem:[#allocation3 + $0x171] sm:$0xff]
      %v2224 = vld [vmem:[#allocation3 + $0x181] sm:$0xff]
      %v2225 = vld [vmem:[#allocation3 + $0x189] sm:$0xff]
      %v2226 = vld [vmem:[#allocation3 + $0x199] sm:$0xff]
      %v2227 = vld [vmem:[#allocation3 + $0x1a1] sm:$0xff]
      %v2228 = vld [vmem:[#allocation3 + $0x2] sm:$0xff]
      %v2229 = vld [vmem:[#allocation3 + $0xa] sm:$0xff]
      %v2230 = vld [vmem:[#allocation3 + $0x1a] sm:$0xff]
      %v2231 = vld [vmem:[#allocation3 + $0x22] sm:$0xff]
      %v2232 = vld [vmem:[#allocation3 + $0x32] sm:$0xff]
      %v2233 = vld [vmem:[#allocation3 + $0x3a] sm:$0xff]
      %v2234 = vld [vmem:[#allocation3 + $0x4a] sm:$0xff]
      %v2235 = vld [vmem:[#allocation3 + $0x52] sm:$0xff]
      %v2236 = vld [vmem:[#allocation3 + $0x62] sm:$0xff]
      %v2237 = vld [vmem:[#allocation3 + $0x6a] sm:$0xff]
      %v2238 = vld [vmem:[#allocation3 + $0x7a] sm:$0xff]
      %v2239 = vld [vmem:[#allocation3 + $0x82] sm:$0xff]
      %v2240 = vld [vmem:[#allocation3 + $0x92] sm:$0xff]
      %v2241 = vld [vmem:[#allocation3 + $0x9a] sm:$0xff]
      %v2242 = vld [vmem:[#allocation3 + $0xaa] sm:$0xff]
      %v2243 = vld [vmem:[#allocation3 + $0xb2] sm:$0xff]
      %v2244 = vld [vmem:[#allocation3 + $0xc2] sm:$0xff]
      %v2245 = vld [vmem:[#allocation3 + $0xca] sm:$0xff]
      %v2246 = vld [vmem:[#allocation3 + $0xda] sm:$0xff]
      %v2247 = vld [vmem:[#allocation3 + $0xe2] sm:$0xff]
      %v2248 = vld [vmem:[#allocation3 + $0xf2] sm:$0xff]
      %v2249 = vld [vmem:[#allocation3 + $0xfa] sm:$0xff]
      %v2250 = vld [vmem:[#allocation3 + $0x10a] sm:$0xff]
      %v2251 = vld [vmem:[#allocation3 + $0x112] sm:$0xff]
      %v2252 = vld [vmem:[#allocation3 + $0x122] sm:$0xff]
      %v2253 = vld [vmem:[#allocation3 + $0x12a] sm:$0xff]
      %v2254 = vld [vmem:[#allocation3 + $0x13a] sm:$0xff]
      %v2255 = vld [vmem:[#allocation3 + $0x142] sm:$0xff]
      %v2256 = vld [vmem:[#allocation3 + $0x152] sm:$0xff]
      %v2257 = vld [vmem:[#allocation3 + $0x15a] sm:$0xff]
      %v2258 = vld [vmem:[#allocation3 + $0x16a] sm:$0xff]
      %v2259 = vld [vmem:[#allocation3 + $0x172] sm:$0xff]
      %v2260 = vld [vmem:[#allocation3 + $0x182] sm:$0xff]
      %v2261 = vld [vmem:[#allocation3 + $0x18a] sm:$0xff]
      %v2262 = vld [vmem:[#allocation3 + $0x19a] sm:$0xff]
      %v2263 = vld [vmem:[#allocation3 + $0x1a2] sm:$0xff]
      %v2264 = vld [vmem:[%s3] sm:$0xff]
      %v2265 = vld [vmem:[%s3 + $0x8] sm:$0xff]
      %v2266 = vld [vmem:[%s3 + $0x10] sm:$0xff]
      %v2267 = vld [vmem:[%s3 + $0x18] sm:$0xff]
      %v2268 = vld [vmem:[%s3 + $0x20] sm:$0xff]
      %v2269 = vld [vmem:[%s3 + $0x28] sm:$0xff]
      %v2270 = vld [vmem:[%s3 + $0x30] sm:$0xff]
      %v2271 = vld [vmem:[%s3 + $0x38] sm:$0xff]
      %v2272 = vld [vmem:[%s3 + $0x40] sm:$0xff]
      %v2273 = vld [vmem:[%s3 + $0x48] sm:$0xff]
      %v2274 = vld [vmem:[%s3 + $0x50] sm:$0xff]
      %v2275 = vld [vmem:[%s3 + $0x58] sm:$0xff]
      %v2276 = vld [vmem:[%s3 + $0x60] sm:$0xff]
      %v2277 = vld [vmem:[%s3 + $0x68] sm:$0xff]
      %v2278 = vld [vmem:[%s3 + $0x70] sm:$0xff]
      %v2279 = vld [vmem:[%s3 + $0x78] sm:$0xff]
      %v2280 = vld [vmem:[%s3 + $0x80] sm:$0xff]
      %v2281 = vld [vmem:[%s3 + $0x88] sm:$0xff]
      %v2282 = vld [vmem:[%s3 + $0x90] sm:$0xff]
      %v2283 = vld [vmem:[%s3 + $0x98] sm:$0xff]
      %v2284 = vld [vmem:[%s3 + $0xa0] sm:$0xff]
      %v2285 = vld [vmem:[%s3 + $0xa8] sm:$0xff]
      %v2286 = vld [vmem:[%s3 + $0xb0] sm:$0xff]
      %v2287 = vld [vmem:[%s3 + $0xb8] sm:$0xff]
      %v2288 = vld [vmem:[%s3 + $0xc0] sm:$0xff]
      %v2289 = vld [vmem:[%s3 + $0xc8] sm:$0xff]
      %v2290 = vld [vmem:[%s3 + $0xd0] sm:$0xff]
      %v2291 = vld [vmem:[%s3 + $0xd8] sm:$0xff]
      %v2292 = vld [vmem:[%s3 + $0xe0] sm:$0xff]
      %v2293 = vld [vmem:[%s3 + $0xe8] sm:$0xff]
      %v2294 = vld [vmem:[%s3 + $0xf0] sm:$0xff]
      %v2295 = vld [vmem:[%s3 + $0xf8] sm:$0xff]
      %v2296 = vld [vmem:[%s3 + $0x100] sm:$0xff]
      %v2297 = vld [vmem:[%s3 + $0x108] sm:$0xff]
      %v2298 = vld [vmem:[%s3 + $0x110] sm:$0xff]
      %v2299 = vld [vmem:[%s3 + $0x118] sm:$0xff]
      %v2300 = vld [vmem:[%s3 + $0x120] sm:$0xff]
      %v2301 = vld [vmem:[%s3 + $0x128] sm:$0xff]
      %v2302 = vld [vmem:[%s3 + $0x130] sm:$0xff]
      %v2303 = vld [vmem:[%s3 + $0x138] sm:$0xff]
      %v2304 = vld [vmem:[%s3 + $0x140] sm:$0xff]
      %v2305 = vld [vmem:[%s3 + $0x148] sm:$0xff]
      %v2306 = vld [vmem:[%s3 + $0x150] sm:$0xff]
      %v2307 = vld [vmem:[%s3 + $0x158] sm:$0xff]
      %v2308 = vld [vmem:[%s3 + $0x160] sm:$0xff]
      %v2309 = vld [vmem:[%s3 + $0x168] sm:$0xff]
      %v2310 = vld [vmem:[%s3 + $0x170] sm:$0xff]
      %v2311 = vld [vmem:[%s3 + $0x178] sm:$0xff]
      %s2312 = scalar_lea.vmem %s3, 384
      %v2313 = vld [vmem:[%s2312] sm:$0xff]
      %v2314 = vld [vmem:[%s2312 + $0x8] sm:$0xff]
      %v2315 = vld [vmem:[%s2312 + $0x10] sm:$0xff]
      %v2316 = vld [vmem:[%s2312 + $0x18] sm:$0xff]
      %v2317 = vld [vmem:[%s2312 + $0x20] sm:$0xff]
      %v2318 = vld [vmem:[%s2312 + $0x28] sm:$0xff]
      %v2319 = vld [vmem:[%s2312 + $0x30] sm:$0xff]
      %v2320 = vld [vmem:[%s2312 + $0x38] sm:$0xff]
      %v2321 = vld [vmem:[%s2312 + $0x40] sm:$0xff]
      %v2322 = vld [vmem:[%s2312 + $0x48] sm:$0xff]
      %v2323 = vld [vmem:[%s2312 + $0x50] sm:$0xff]
      %v2324 = vld [vmem:[%s2312 + $0x58] sm:$0xff]
      %v2325 = vld [vmem:[%s2312 + $0x60] sm:$0xff]
      %v2326 = vld [vmem:[%s2312 + $0x68] sm:$0xff]
      %v2327 = vld [vmem:[%s2312 + $0x70] sm:$0xff]
      %v2328 = vld [vmem:[%s2312 + $0x78] sm:$0xff]
      %v2329 = vld [vmem:[%s2312 + $0x80] sm:$0xff]
      %v2330 = vld [vmem:[%s2312 + $0x88] sm:$0xff]
      %v2331 = vld [vmem:[%s2312 + $0x90] sm:$0xff]
      %v2332 = vld [vmem:[%s2312 + $0x98] sm:$0xff]
      %v2333 = vld [vmem:[%s2312 + $0xa0] sm:$0xff]
      %v2334 = vld [vmem:[%s2312 + $0xa8] sm:$0xff]
      %v2335 = vld [vmem:[%s2312 + $0xb0] sm:$0xff]
      %v2336 = vld [vmem:[%s2312 + $0xb8] sm:$0xff]
      %v2337 = vld [vmem:[%s2312 + $0xc0] sm:$0xff]
      %v2338 = vld [vmem:[%s2312 + $0xc8] sm:$0xff]
      %v2339 = vld [vmem:[%s2312 + $0xd0] sm:$0xff]
      %v2340 = vld [vmem:[%s2312 + $0xd8] sm:$0xff]
      %v2341 = vld [vmem:[%s2312 + $0xe0] sm:$0xff]
      %v2342 = vld [vmem:[%s2312 + $0xe8] sm:$0xff]
      %v2343 = vld [vmem:[%s2312 + $0xf0] sm:$0xff]
      %v2344 = vld [vmem:[%s2312 + $0xf8] sm:$0xff]
      %v2345 = vld [vmem:[%s2312 + $0x100] sm:$0xff]
      %v2346 = vld [vmem:[%s2312 + $0x108] sm:$0xff]
      %v2347 = vld [vmem:[%s2312 + $0x110] sm:$0xff]
      %v2348 = vld [vmem:[%s2312 + $0x118] sm:$0xff]
      %v2349 = vld [vmem:[%s2312 + $0x120] sm:$0xff]
      %v2350 = vld [vmem:[%s2312 + $0x128] sm:$0xff]
      %v2351 = vld [vmem:[%s2312 + $0x130] sm:$0xff]
      %v2352 = vld [vmem:[%s2312 + $0x138] sm:$0xff]
      %v2353 = vld [vmem:[%s2312 + $0x140] sm:$0xff]
      %v2354 = vld [vmem:[%s2312 + $0x148] sm:$0xff]
      %v2355 = vld [vmem:[%s2312 + $0x150] sm:$0xff]
      %v2356 = vld [vmem:[%s2312 + $0x158] sm:$0xff]
      %v2357 = vld [vmem:[%s2312 + $0x160] sm:$0xff]
      %v2358 = vld [vmem:[%s2312 + $0x168] sm:$0xff]
      %v2359 = vld [vmem:[%s2312 + $0x170] sm:$0xff]
      %v2360 = vld [vmem:[%s2312 + $0x178] sm:$0xff]
      %2361 = vmatprep.subr.mxu0 0.0
      %2362 = vmatpush1.msra.mxu0 %v2313
      %2363 = vmatprep.subr.mxu0 0.0
      %2364 = vmatpush1.msra.mxu0 %v2314
      %2365 = vmatprep.subr.mxu0 0.0
      %2366 = vmatpush1.msra.mxu0 %v2315
      %2367 = vmatprep.subr.mxu0 0.0
      %2368 = vmatpush1.msra.mxu0 %v2316
      %2369 = vmatprep.subr.mxu0 0.0
      %2370 = vmatpush1.msra.mxu0 %v2317
      %2371 = vmatprep.subr.mxu0 0.0
      %2372 = vmatpush1.msra.mxu0 %v2318
      %2373 = vmatprep.subr.mxu0 0.0
      %2374 = vmatpush1.msra.mxu0 %v2319
      %2375 = vmatprep.subr.mxu0 0.0
      %2376 = vmatpush1.msra.mxu0 %v2320
      %2377 = vmatprep.subr.mxu0 0.0
      %2378 = vmatpush1.msra.mxu0 %v2321
      %2379 = vmatprep.subr.mxu0 0.0
      %2380 = vmatpush1.msra.mxu0 %v2322
      %2381 = vmatprep.subr.mxu0 0.0
      %2382 = vmatpush1.msra.mxu0 %v2323
      %2383 = vmatprep.subr.mxu0 0.0
      %2384 = vmatpush1.msra.mxu0 %v2324
      %2385 = vmatprep.subr.mxu0 0.0
      %2386 = vmatpush1.msra.mxu0 %v2325
      %2387 = vmatprep.subr.mxu0 0.0
      %2388 = vmatpush1.msra.mxu0 %v2326
      %2389 = vmatprep.subr.mxu0 0.0
      %2390 = vmatpush1.msra.mxu0 %v2327
      %2391 = vmatprep.subr.mxu0 0.0
      %2392 = vmatpush1.msra.mxu0 %v2328
      %2393 = vmatprep.subr.mxu0 0.0
      %2394 = vmatpush1.msra.mxu0 %v2329
      %2395 = vmatprep.subr.mxu0 0.0
      %2396 = vmatpush1.msra.mxu0 %v2330
      %2397 = vmatprep.subr.mxu0 0.0
      %2398 = vmatpush1.msra.mxu0 %v2331
      %2399 = vmatprep.subr.mxu0 0.0
      %2400 = vmatpush1.msra.mxu0 %v2332
      %2401 = vmatprep.subr.mxu0 0.0
      %2402 = vmatpush1.msra.mxu0 %v2333
      %2403 = vmatprep.subr.mxu0 0.0
      %2404 = vmatpush1.msra.mxu0 %v2334
      %2405 = vmatprep.subr.mxu0 0.0
      %2406 = vmatpush1.msra.mxu0 %v2335
      %2407 = vmatprep.subr.mxu0 0.0
      %2408 = vmatpush1.msra.mxu0 %v2336
      %2409 = vmatprep.subr.mxu0 0.0
      %2410 = vmatpush1.msra.mxu0 %v2337
      %2411 = vmatprep.subr.mxu0 0.0
      %2412 = vmatpush1.msra.mxu0 %v2338
      %2413 = vmatprep.subr.mxu0 0.0
      %2414 = vmatpush1.msra.mxu0 %v2339
      %2415 = vmatprep.subr.mxu0 0.0
      %2416 = vmatpush1.msra.mxu0 %v2340
      %2417 = vmatprep.subr.mxu0 0.0
      %2418 = vmatpush1.msra.mxu0 %v2341
      %2419 = vmatprep.subr.mxu0 0.0
      %2420 = vmatpush1.msra.mxu0 %v2342
      %2421 = vmatprep.subr.mxu0 0.0
      %2422 = vmatpush1.msra.mxu0 %v2343
      %2423 = vmatprep.subr.mxu0 0.0
      %2424 = vmatpush1.msra.mxu0 %v2344
      %2425 = vmatprep.mubr.f32.mxu0 %v2194
      %2426 = vmatmul.mubr.f32.gmra.mrb[0].mxu0 %v2158
      %v2427 = vpop.f32.mrb[0].mxu0
      %v2428 = vadd.f32 0.0, %v2427
      %v2429 = vpop.f32.mrb[0].mxu0
      %2430 = vmatprep.mubr.f32.mxu0 %v2195
      %2431 = vmatmul.mubr.f32.gmra.mrb[0].mxu0 %v2159
      %v2432 = vpop.f32.mrb[0].mxu0
      %v2433 = vadd.f32 0.0, %v2432
      %v2434 = vpop.f32.mrb[0].mxu0
      %2435 = vmatprep.mubr.f32.mxu0 %v2196
      %2436 = vmatmul.mubr.f32.gmra.mrb[0].mxu0 %v2160
      %v2437 = vpop.f32.mrb[0].mxu0
      %v2438 = vadd.f32 0.0, %v2437
      %v2439 = vpop.f32.mrb[0].mxu0
      %2440 = vmatprep.mubr.f32.mxu0 %v2197
      %2441 = vmatmul.mubr.f32.gmra.mrb[0].mxu0 %v2161
      %v2442 = vpop.f32.mrb[0].mxu0
      %v2443 = vadd.f32 0.0, %v2442
      %v2444 = vpop.f32.mrb[0].mxu0
      %2445 = vmatprep.mubr.f32.mxu0 %v2198
      %2446 = vmatmul.mubr.f32.gmra.mrb[0].mxu0 %v2162
      %v2447 = vpop.f32.mrb[0].mxu0
      %v2448 = vadd.f32 0.0, %v2447
      %v2449 = vpop.f32.mrb[0].mxu0
      %2450 = vmatprep.mubr.f32.mxu0 %v2199
      %2451 = vmatmul.mubr.f32.gmra.mrb[0].mxu0 %v2163
      %v2452 = vpop.f32.mrb[0].mxu0
      %v2453 = vadd.f32 0.0, %v2452
      %v2454 = vpop.f32.mrb[0].mxu0
      %2455 = vmatprep.mubr.f32.mxu0 %v2200
      %2456 = vmatmul.mubr.f32.gmra.mrb[0].mxu0 %v2164
      %v2457 = vpop.f32.mrb[0].mxu0
      %v2458 = vadd.f32 0.0, %v2457
      %v2459 = vpop.f32.mrb[0].mxu0
      %2460 = vmatprep.mubr.f32.mxu0 %v2201
      %2461 = vmatmul.mubr.f32.gmra.mrb[0].mxu0 %v2165
      %v2462 = vpop.f32.mrb[0].mxu0
      %v2463 = vadd.f32 0.0, %v2462
      %v2464 = vpop.f32.mrb[0].mxu0
      %2465 = vmatprep.mubr.f32.mxu0 %v2202
      %2466 = vmatmul.mubr.f32.gmra.mrb[0].mxu0 %v2166
      %v2467 = vpop.f32.mrb[0].mxu0
      %v2468 = vadd.f32 0.0, %v2467
      %v2469 = vpop.f32.mrb[0].mxu0
      %2470 = vmatprep.mubr.f32.mxu0 %v2203
      %2471 = vmatmul.mubr.f32.gmra.mrb[0].mxu0 %v2167
      %v2472 = vpop.f32.mrb[0].mxu0
      %v2473 = vadd.f32 0.0, %v2472
      %v2474 = vpop.f32.mrb[0].mxu0
      %2475 = vmatprep.mubr.f32.mxu0 %v2204
      %2476 = vmatmul.mubr.f32.gmra.mrb[0].mxu0 %v2168
      %v2477 = vpop.f32.mrb[0].mxu0
      %v2478 = vadd.f32 0.0, %v2477
      %v2479 = vpop.f32.mrb[0].mxu0
      %2480 = vmatprep.mubr.f32.mxu0 %v2205
      %2481 = vmatmul.mubr.f32.gmra.mrb[0].mxu0 %v2169
      %v2482 = vpop.f32.mrb[0].mxu0
      %v2483 = vadd.f32 0.0, %v2482
      %v2484 = vpop.f32.mrb[0].mxu0
      %2485 = vmatprep.mubr.f32.mxu0 %v2206
      %2486 = vmatmul.mubr.f32.gmra.mrb[0].mxu0 %v2170
      %v2487 = vpop.f32.mrb[0].mxu0
      %v2488 = vadd.f32 0.0, %v2487
      %v2489 = vpop.f32.mrb[0].mxu0
      %2490 = vmatprep.mubr.f32.mxu0 %v2207
      %2491 = vmatmul.mubr.f32.gmra.mrb[0].mxu0 %v2171
      %v2492 = vpop.f32.mrb[0].mxu0
      %v2493 = vadd.f32 0.0, %v2492
      %v2494 = vpop.f32.mrb[0].mxu0
      %2495 = vmatprep.mubr.f32.mxu0 %v2208
      %2496 = vmatmul.mubr.f32.gmra.mrb[0].mxu0 %v2172
      %v2497 = vpop.f32.mrb[0].mxu0
      %v2498 = vadd.f32 0.0, %v2497
      %v2499 = vpop.f32.mrb[0].mxu0
      %2500 = vmatprep.mubr.f32.mxu0 %v2209
      %2501 = vmatmul.mubr.f32.gmra.mrb[0].mxu0 %v2173
      %v2502 = vpop.f32.mrb[0].mxu0
      %v2503 = vadd.f32 0.0, %v2502
      %v2504 = vpop.f32.mrb[0].mxu0
      %2505 = vmatprep.mubr.f32.mxu0 %v2210
      %2506 = vmatmul.mubr.f32.gmra.mrb[0].mxu0 %v2174
      %v2507 = vpop.f32.mrb[0].mxu0
      %v2508 = vadd.f32 0.0, %v2507
      %v2509 = vpop.f32.mrb[0].mxu0
      %2510 = vmatprep.mubr.f32.mxu0 %v2211
      %2511 = vmatmul.mubr.f32.gmra.mrb[0].mxu0 %v2175
      %v2512 = vpop.f32.mrb[0].mxu0
      %v2513 = vadd.f32 0.0, %v2512
      %v2514 = vpop.f32.mrb[0].mxu0
      %2515 = vmatprep.mubr.f32.mxu0 %v2212
      %2516 = vmatmul.mubr.f32.gmra.mrb[0].mxu0 %v2176
      %v2517 = vpop.f32.mrb[0].mxu0
      %v2518 = vadd.f32 0.0, %v2517
      %v2519 = vpop.f32.mrb[0].mxu0
      %2520 = vmatprep.mubr.f32.mxu0 %v2213
      %2521 = vmatmul.mubr.f32.gmra.mrb[0].mxu0 %v2177
      %v2522 = vpop.f32.mrb[0].mxu0
      %v2523 = vadd.f32 0.0, %v2522
      %v2524 = vpop.f32.mrb[0].mxu0
      %2525 = vmatprep.mubr.f32.mxu0 %v2214
      %2526 = vmatmul.mubr.f32.gmra.mrb[0].mxu0 %v2178
      %v2527 = vpop.f32.mrb[0].mxu0
      %v2528 = vadd.f32 0.0, %v2527
      %v2529 = vpop.f32.mrb[0].mxu0
      %2530 = vmatprep.mubr.f32.mxu0 %v2215
      %2531 = vmatmul.mubr.f32.gmra.mrb[0].mxu0 %v2179
      %v2532 = vpop.f32.mrb[0].mxu0
      %v2533 = vadd.f32 0.0, %v2532
      %v2534 = vpop.f32.mrb[0].mxu0
      %2535 = vmatprep.mubr.f32.mxu0 %v2216
      %2536 = vmatmul.mubr.f32.gmra.mrb[0].mxu0 %v2180
      %v2537 = vpop.f32.mrb[0].mxu0
      %v2538 = vadd.f32 0.0, %v2537
      %v2539 = vpop.f32.mrb[0].mxu0
      %2540 = vmatprep.mubr.f32.mxu0 %v2217
      %2541 = vmatmul.mubr.f32.gmra.mrb[0].mxu0 %v2181
      %v2542 = vpop.f32.mrb[0].mxu0
      %v2543 = vadd.f32 0.0, %v2542
      %v2544 = vpop.f32.mrb[0].mxu0
      %2545 = vmatprep.mubr.f32.mxu0 %v2218
      %2546 = vmatmul.mubr.f32.gmra.mrb[0].mxu0 %v2182
      %v2547 = vpop.f32.mrb[0].mxu0
      %v2548 = vadd.f32 0.0, %v2547
      %v2549 = vpop.f32.mrb[0].mxu0
      %2550 = vmatprep.mubr.f32.mxu0 %v2219
      %2551 = vmatmul.mubr.f32.gmra.mrb[0].mxu0 %v2183
      %v2552 = vpop.f32.mrb[0].mxu0
      %v2553 = vadd.f32 0.0, %v2552
      %v2554 = vpop.f32.mrb[0].mxu0
      %2555 = vmatprep.mubr.f32.mxu0 %v2220
      %2556 = vmatmul.mubr.f32.gmra.mrb[0].mxu0 %v2184
      %v2557 = vpop.f32.mrb[0].mxu0
      %v2558 = vadd.f32 0.0, %v2557
      %v2559 = vpop.f32.mrb[0].mxu0
      %2560 = vmatprep.mubr.f32.mxu0 %v2221
      %2561 = vmatmul.mubr.f32.gmra.mrb[0].mxu0 %v2185
      %v2562 = vpop.f32.mrb[0].mxu0
      %v2563 = vadd.f32 0.0, %v2562
      %v2564 = vpop.f32.mrb[0].mxu0
      %2565 = vmatprep.mubr.f32.mxu0 %v2222
      %2566 = vmatmul.mubr.f32.gmra.mrb[0].mxu0 %v2186
      %v2567 = vpop.f32.mrb[0].mxu0
      %v2568 = vadd.f32 0.0, %v2567
      %v2569 = vpop.f32.mrb[0].mxu0
      %2570 = vmatprep.mubr.f32.mxu0 %v2223
      %2571 = vmatmul.mubr.f32.gmra.mrb[0].mxu0 %v2187
      %v2572 = vpop.f32.mrb[0].mxu0
      %v2573 = vadd.f32 0.0, %v2572
      %v2574 = vpop.f32.mrb[0].mxu0
      %2575 = vmatprep.mubr.f32.mxu0 %v2224
      %2576 = vmatmul.mubr.f32.gmra.mrb[0].mxu0 %v2188
      %v2577 = vpop.f32.mrb[0].mxu0
      %v2578 = vadd.f32 0.0, %v2577
      %v2579 = vpop.f32.mrb[0].mxu0
      %2580 = vmatprep.mubr.f32.mxu0 %v2225
      %2581 = vmatmul.mubr.f32.gmra.mrb[0].mxu0 %v2189
      %v2582 = vpop.f32.mrb[0].mxu0
      %v2583 = vadd.f32 0.0, %v2582
      %v2584 = vpop.f32.mrb[0].mxu0
      %2585 = vdwg.mxu0
      %2586 = vmatprep.subr.mxu0 0.0
      %2587 = vmatpush1.msra.mxu0 %v2345
      %2588 = vmatprep.subr.mxu0 0.0
      %2589 = vmatpush1.msra.mxu0 %v2346
      %2590 = vmatprep.subr.mxu0 0.0
      %2591 = vmatpush1.msra.mxu0 %v2347
      %2592 = vmatprep.subr.mxu0 0.0
      %2593 = vmatpush1.msra.mxu0 %v2348
      %2594 = vmatprep.subr.mxu0 0.0
      %2595 = vmatpush1.msra.mxu0 %v2349
      %2596 = vmatprep.subr.mxu0 0.0
      %2597 = vmatpush1.msra.mxu0 %v2350
      %2598 = vmatprep.subr.mxu0 0.0
      %2599 = vmatpush1.msra.mxu0 %v2351
      %2600 = vmatprep.subr.mxu0 0.0
      %2601 = vmatpush1.msra.mxu0 %v2352
      %2602 = vmatprep.subr.mxu0 0.0
      %2603 = vmatpush1.msra.mxu0 %v2353
      %2604 = vmatprep.subr.mxu0 0.0
      %2605 = vmatpush1.msra.mxu0 %v2354
      %2606 = vmatprep.subr.mxu0 0.0
      %2607 = vmatpush1.msra.mxu0 %v2355
      %2608 = vmatprep.subr.mxu0 0.0
      %2609 = vmatpush1.msra.mxu0 %v2356
      %2610 = vmatprep.subr.mxu0 0.0
      %2611 = vmatpush1.msra.mxu0 %v2357
      %2612 = vmatprep.subr.mxu0 0.0
      %2613 = vmatpush1.msra.mxu0 %v2358
      %2614 = vmatprep.subr.mxu0 0.0
      %2615 = vmatpush1.msra.mxu0 %v2359
      %2616 = vmatprep.subr.mxu0 0.0
      %2617 = vmatpush1.msra.mxu0 %v2360
      %2618 = vmatprep.subr.mxu0 0.0
      %2619 = vmatpush1.msra.mxu0 0.0
      %2620 = vmatprep.subr.mxu0 0.0
      %2621 = vmatpush1.msra.mxu0 0.0
      %2622 = vmatprep.subr.mxu0 0.0
      %2623 = vmatpush1.msra.mxu0 0.0
      %2624 = vmatprep.subr.mxu0 0.0
      %2625 = vmatpush1.msra.mxu0 0.0
      %2626 = vmatprep.subr.mxu0 0.0
      %2627 = vmatpush1.msra.mxu0 0.0
      %2628 = vmatprep.subr.mxu0 0.0
      %2629 = vmatpush1.msra.mxu0 0.0
      %2630 = vmatprep.subr.mxu0 0.0
      %2631 = vmatpush1.msra.mxu0 0.0
      %2632 = vmatprep.subr.mxu0 0.0
      %2633 = vmatpush1.msra.mxu0 0.0
      %2634 = vmatprep.subr.mxu0 0.0
      %2635 = vmatpush1.msra.mxu0 0.0
      %2636 = vmatprep.subr.mxu0 0.0
      %2637 = vmatpush1.msra.mxu0 0.0
      %2638 = vmatprep.subr.mxu0 0.0
      %2639 = vmatpush1.msra.mxu0 0.0
      %2640 = vmatprep.subr.mxu0 0.0
      %2641 = vmatpush1.msra.mxu0 0.0
      %2642 = vmatprep.subr.mxu0 0.0
      %2643 = vmatpush1.msra.mxu0 0.0
      %2644 = vmatprep.subr.mxu0 0.0
      %2645 = vmatpush1.msra.mxu0 0.0
      %2646 = vmatprep.subr.mxu0 0.0
      %2647 = vmatpush1.msra.mxu0 0.0
      %2648 = vmatprep.subr.mxu0 0.0
      %2649 = vmatpush1.msra.mxu0 0.0
      %2650 = vmatprep.mubr.f32.mxu0 0.0
      %2651 = vmatmul.mubr.f32.gmra.mrb[0].mxu0 %v2230
      %v2652 = vpop.f32.mrb[0].mxu0
      %v2653 = vadd.f32 %v2428, %v2652
      %v2654 = vpop.f32.mrb[0].mxu0
      %2655 = vmatprep.mubr.f32.mxu0 0.0
      %2656 = vmatmul.mubr.f32.gmra.mrb[0].mxu0 %v2231
      %v2657 = vpop.f32.mrb[0].mxu0
      %v2658 = vadd.f32 %v2433, %v2657
      %v2659 = vpop.f32.mrb[0].mxu0
      %2660 = vmatprep.mubr.f32.mxu0 0.0
      %2661 = vmatmul.mubr.f32.gmra.mrb[0].mxu0 %v2232
      %v2662 = vpop.f32.mrb[0].mxu0
      %v2663 = vadd.f32 %v2438, %v2662
      %v2664 = vpop.f32.mrb[0].mxu0
      %2665 = vmatprep.mubr.f32.mxu0 0.0
      %2666 = vmatmul.mubr.f32.gmra.mrb[0].mxu0 %v2233
      %v2667 = vpop.f32.mrb[0].mxu0
      %v2668 = vadd.f32 %v2443, %v2667
      %v2669 = vpop.f32.mrb[0].mxu0
      %2670 = vmatprep.mubr.f32.mxu0 0.0
      %2671 = vmatmul.mubr.f32.gmra.mrb[0].mxu0 %v2234
      %v2672 = vpop.f32.mrb[0].mxu0
      %v2673 = vadd.f32 %v2448, %v2672
      %v2674 = vpop.f32.mrb[0].mxu0
      %2675 = vmatprep.mubr.f32.mxu0 0.0
      %2676 = vmatmul.mubr.f32.gmra.mrb[0].mxu0 %v2235
      %v2677 = vpop.f32.mrb[0].mxu0
      %v2678 = vadd.f32 %v2453, %v2677
      %v2679 = vpop.f32.mrb[0].mxu0
      %2680 = vmatprep.mubr.f32.mxu0 0.0
      %2681 = vmatmul.mubr.f32.gmra.mrb[0].mxu0 %v2236
      %v2682 = vpop.f32.mrb[0].mxu0
      %v2683 = vadd.f32 %v2458, %v2682
      %v2684 = vpop.f32.mrb[0].mxu0
      %2685 = vmatprep.mubr.f32.mxu0 0.0
      %2686 = vmatmul.mubr.f32.gmra.mrb[0].mxu0 %v2237
      %v2687 = vpop.f32.mrb[0].mxu0
      %v2688 = vadd.f32 %v2463, %v2687
      %v2689 = vpop.f32.mrb[0].mxu0
      %2690 = vmatprep.mubr.f32.mxu0 0.0
      %2691 = vmatmul.mubr.f32.gmra.mrb[0].mxu0 %v2238
      %v2692 = vpop.f32.mrb[0].mxu0
      %v2693 = vadd.f32 %v2468, %v2692
      %v2694 = vpop.f32.mrb[0].mxu0
      %2695 = vmatprep.mubr.f32.mxu0 0.0
      %2696 = vmatmul.mubr.f32.gmra.mrb[0].mxu0 %v2239
      %v2697 = vpop.f32.mrb[0].mxu0
      %v2698 = vadd.f32 %v2473, %v2697
      %v2699 = vpop.f32.mrb[0].mxu0
      %2700 = vmatprep.mubr.f32.mxu0 0.0
      %2701 = vmatmul.mubr.f32.gmra.mrb[0].mxu0 %v2240
      %v2702 = vpop.f32.mrb[0].mxu0
      %v2703 = vadd.f32 %v2478, %v2702
      %v2704 = vpop.f32.mrb[0].mxu0
      %2705 = vmatprep.mubr.f32.mxu0 0.0
      %2706 = vmatmul.mubr.f32.gmra.mrb[0].mxu0 %v2241
      %v2707 = vpop.f32.mrb[0].mxu0
      %v2708 = vadd.f32 %v2483, %v2707
      %v2709 = vpop.f32.mrb[0].mxu0
      %2710 = vmatprep.mubr.f32.mxu0 0.0
      %2711 = vmatmul.mubr.f32.gmra.mrb[0].mxu0 %v2242
      %v2712 = vpop.f32.mrb[0].mxu0
      %v2713 = vadd.f32 %v2488, %v2712
      %v2714 = vpop.f32.mrb[0].mxu0
      %2715 = vmatprep.mubr.f32.mxu0 0.0
      %2716 = vmatmul.mubr.f32.gmra.mrb[0].mxu0 %v2243
      %v2717 = vpop.f32.mrb[0].mxu0
      %v2718 = vadd.f32 %v2493, %v2717
      %v2719 = vpop.f32.mrb[0].mxu0
      %2720 = vmatprep.mubr.f32.mxu0 0.0
      %2721 = vmatmul.mubr.f32.gmra.mrb[0].mxu0 %v2244
      %v2722 = vpop.f32.mrb[0].mxu0
      %v2723 = vadd.f32 %v2498, %v2722
      %v2724 = vpop.f32.mrb[0].mxu0
      %2725 = vmatprep.mubr.f32.mxu0 0.0
      %2726 = vmatmul.mubr.f32.gmra.mrb[0].mxu0 %v2245
      %v2727 = vpop.f32.mrb[0].mxu0
      %v2728 = vadd.f32 %v2503, %v2727
      %v2729 = vpop.f32.mrb[0].mxu0
      %2730 = vmatprep.mubr.f32.mxu0 0.0
      %2731 = vmatmul.mubr.f32.gmra.mrb[0].mxu0 %v2246
      %v2732 = vpop.f32.mrb[0].mxu0
      %v2733 = vadd.f32 %v2508, %v2732
      %v2734 = vpop.f32.mrb[0].mxu0
      %2735 = vmatprep.mubr.f32.mxu0 0.0
      %2736 = vmatmul.mubr.f32.gmra.mrb[0].mxu0 %v2247
      %v2737 = vpop.f32.mrb[0].mxu0
      %v2738 = vadd.f32 %v2513, %v2737
      %v2739 = vpop.f32.mrb[0].mxu0
      %2740 = vmatprep.mubr.f32.mxu0 0.0
      %2741 = vmatmul.mubr.f32.gmra.mrb[0].mxu0 %v2248
      %v2742 = vpop.f32.mrb[0].mxu0
      %v2743 = vadd.f32 %v2518, %v2742
      %v2744 = vpop.f32.mrb[0].mxu0
      %2745 = vmatprep.mubr.f32.mxu0 0.0
      %2746 = vmatmul.mubr.f32.gmra.mrb[0].mxu0 %v2249
      %v2747 = vpop.f32.mrb[0].mxu0
      %v2748 = vadd.f32 %v2523, %v2747
      %v2749 = vpop.f32.mrb[0].mxu0
      %2750 = vmatprep.mubr.f32.mxu0 0.0
      %2751 = vmatmul.mubr.f32.gmra.mrb[0].mxu0 %v2250
      %v2752 = vpop.f32.mrb[0].mxu0
      %v2753 = vadd.f32 %v2528, %v2752
      %v2754 = vpop.f32.mrb[0].mxu0
      %2755 = vmatprep.mubr.f32.mxu0 0.0
      %2756 = vmatmul.mubr.f32.gmra.mrb[0].mxu0 %v2251
      %v2757 = vpop.f32.mrb[0].mxu0
      %v2758 = vadd.f32 %v2533, %v2757
      %v2759 = vpop.f32.mrb[0].mxu0
      %2760 = vmatprep.mubr.f32.mxu0 0.0
      %2761 = vmatmul.mubr.f32.gmra.mrb[0].mxu0 %v2252
      %v2762 = vpop.f32.mrb[0].mxu0
      %v2763 = vadd.f32 %v2538, %v2762
      %v2764 = vpop.f32.mrb[0].mxu0
      %2765 = vmatprep.mubr.f32.mxu0 0.0
      %2766 = vmatmul.mubr.f32.gmra.mrb[0].mxu0 %v2253
      %v2767 = vpop.f32.mrb[0].mxu0
      %v2768 = vadd.f32 %v2543, %v2767
      %v2769 = vpop.f32.mrb[0].mxu0
      %2770 = vmatprep.mubr.f32.mxu0 0.0
      %2771 = vmatmul.mubr.f32.gmra.mrb[0].mxu0 %v2254
      %v2772 = vpop.f32.mrb[0].mxu0
      %v2773 = vadd.f32 %v2548, %v2772
      %v2774 = vpop.f32.mrb[0].mxu0
      %2775 = vmatprep.mubr.f32.mxu0 0.0
      %2776 = vmatmul.mubr.f32.gmra.mrb[0].mxu0 %v2255
      %v2777 = vpop.f32.mrb[0].mxu0
      %v2778 = vadd.f32 %v2553, %v2777
      %v2779 = vpop.f32.mrb[0].mxu0
      %2780 = vmatprep.mubr.f32.mxu0 0.0
      %2781 = vmatmul.mubr.f32.gmra.mrb[0].mxu0 %v2256
      %v2782 = vpop.f32.mrb[0].mxu0
      %v2783 = vadd.f32 %v2558, %v2782
      %v2784 = vpop.f32.mrb[0].mxu0
      %2785 = vmatprep.mubr.f32.mxu0 0.0
      %2786 = vmatmul.mubr.f32.gmra.mrb[0].mxu0 %v2257
      %v2787 = vpop.f32.mrb[0].mxu0
      %v2788 = vadd.f32 %v2563, %v2787
      %v2789 = vpop.f32.mrb[0].mxu0
      %2790 = vmatprep.mubr.f32.mxu0 0.0
      %2791 = vmatmul.mubr.f32.gmra.mrb[0].mxu0 %v2258
      %v2792 = vpop.f32.mrb[0].mxu0
      %v2793 = vadd.f32 %v2568, %v2792
      %v2794 = vpop.f32.mrb[0].mxu0
      %2795 = vmatprep.mubr.f32.mxu0 0.0
      %2796 = vmatmul.mubr.f32.gmra.mrb[0].mxu0 %v2259
      %v2797 = vpop.f32.mrb[0].mxu0
      %v2798 = vadd.f32 %v2573, %v2797
      %v2799 = vpop.f32.mrb[0].mxu0
      %2800 = vmatprep.mubr.f32.mxu0 0.0
      %2801 = vmatmul.mubr.f32.gmra.mrb[0].mxu0 %v2260
      %v2802 = vpop.f32.mrb[0].mxu0
      %v2803 = vadd.f32 %v2578, %v2802
      %v2804 = vpop.f32.mrb[0].mxu0
      %2805 = vmatprep.mubr.f32.mxu0 0.0
      %2806 = vmatmul.mubr.f32.gmra.mrb[0].mxu0 %v2261
      %v2807 = vpop.f32.mrb[0].mxu0
      %v2808 = vadd.f32 %v2583, %v2807
      %v2809 = vpop.f32.mrb[0].mxu0
      %2810 = vdwg.mxu0
      %2811 = vmatprep.subr.mxu0 0.0
      %2812 = vmatpush1.msra.mxu0 %v2264
      %2813 = vmatprep.subr.mxu0 0.0
      %2814 = vmatpush1.msra.mxu0 %v2265
      %2815 = vmatprep.subr.mxu0 0.0
      %2816 = vmatpush1.msra.mxu0 %v2266
      %2817 = vmatprep.subr.mxu0 0.0
      %2818 = vmatpush1.msra.mxu0 %v2267
      %2819 = vmatprep.subr.mxu0 0.0
      %2820 = vmatpush1.msra.mxu0 %v2268
      %2821 = vmatprep.subr.mxu0 0.0
      %2822 = vmatpush1.msra.mxu0 %v2269
      %2823 = vmatprep.subr.mxu0 0.0
      %2824 = vmatpush1.msra.mxu0 %v2270
      %2825 = vmatprep.subr.mxu0 0.0
      %2826 = vmatpush1.msra.mxu0 %v2271
      %2827 = vmatprep.subr.mxu0 0.0
      %2828 = vmatpush1.msra.mxu0 %v2272
      %2829 = vmatprep.subr.mxu0 0.0
      %2830 = vmatpush1.msra.mxu0 %v2273
      %2831 = vmatprep.subr.mxu0 0.0
      %2832 = vmatpush1.msra.mxu0 %v2274
      %2833 = vmatprep.subr.mxu0 0.0
      %2834 = vmatpush1.msra.mxu0 %v2275
      %2835 = vmatprep.subr.mxu0 0.0
      %2836 = vmatpush1.msra.mxu0 %v2276
      %2837 = vmatprep.subr.mxu0 0.0
      %2838 = vmatpush1.msra.mxu0 %v2277
      %2839 = vmatprep.subr.mxu0 0.0
      %2840 = vmatpush1.msra.mxu0 %v2278
      %2841 = vmatprep.subr.mxu0 0.0
      %2842 = vmatpush1.msra.mxu0 %v2279
      %2843 = vmatprep.subr.mxu0 0.0
      %2844 = vmatpush1.msra.mxu0 %v2280
      %2845 = vmatprep.subr.mxu0 0.0
      %2846 = vmatpush1.msra.mxu0 %v2281
      %2847 = vmatprep.subr.mxu0 0.0
      %2848 = vmatpush1.msra.mxu0 %v2282
      %2849 = vmatprep.subr.mxu0 0.0
      %2850 = vmatpush1.msra.mxu0 %v2283
      %2851 = vmatprep.subr.mxu0 0.0
      %2852 = vmatpush1.msra.mxu0 %v2284
      %2853 = vmatprep.subr.mxu0 0.0
      %2854 = vmatpush1.msra.mxu0 %v2285
      %2855 = vmatprep.subr.mxu0 0.0
      %2856 = vmatpush1.msra.mxu0 %v2286
      %2857 = vmatprep.subr.mxu0 0.0
      %2858 = vmatpush1.msra.mxu0 %v2287
      %2859 = vmatprep.subr.mxu0 0.0
      %2860 = vmatpush1.msra.mxu0 %v2288
      %2861 = vmatprep.subr.mxu0 0.0
      %2862 = vmatpush1.msra.mxu0 %v2289
      %2863 = vmatprep.subr.mxu0 0.0
      %2864 = vmatpush1.msra.mxu0 %v2290
      %2865 = vmatprep.subr.mxu0 0.0
      %2866 = vmatpush1.msra.mxu0 %v2291
      %2867 = vmatprep.subr.mxu0 0.0
      %2868 = vmatpush1.msra.mxu0 %v2292
      %2869 = vmatprep.subr.mxu0 0.0
      %2870 = vmatpush1.msra.mxu0 %v2293
      %2871 = vmatprep.subr.mxu0 0.0
      %2872 = vmatpush1.msra.mxu0 %v2294
      %2873 = vmatprep.subr.mxu0 0.0
      %2874 = vmatpush1.msra.mxu0 %v2295
      %2875 = vmatprep.mubr.f32.mxu0 %v2192
      %2876 = vmatmul.mubr.f32.gmra.mrb[0].mxu0 %v2156
      %v2877 = vpop.f32.mrb[0].mxu0
      %v2878 = vadd.f32 %v2653, %v2877
      %v2879 = vpop.f32.mrb[0].mxu0
      %2880 = vmatprep.mubr.f32.mxu0 %v2193
      %2881 = vmatmul.mubr.f32.gmra.mrb[0].mxu0 %v2157
      %v2882 = vpop.f32.mrb[0].mxu0
      %v2883 = vadd.f32 %v2658, %v2882
      %v2884 = vpop.f32.mrb[0].mxu0
      %2885 = vmatprep.mubr.f32.mxu0 %v2194
      %2886 = vmatmul.mubr.f32.gmra.mrb[0].mxu0 %v2158
      %v2887 = vpop.f32.mrb[0].mxu0
      %v2888 = vadd.f32 %v2663, %v2887
      %v2889 = vpop.f32.mrb[0].mxu0
      %2890 = vmatprep.mubr.f32.mxu0 %v2195
      %2891 = vmatmul.mubr.f32.gmra.mrb[0].mxu0 %v2159
      %v2892 = vpop.f32.mrb[0].mxu0
      %v2893 = vadd.f32 %v2668, %v2892
      %v2894 = vpop.f32.mrb[0].mxu0
      %2895 = vmatprep.mubr.f32.mxu0 %v2196
      %2896 = vmatmul.mubr.f32.gmra.mrb[0].mxu0 %v2160
      %v2897 = vpop.f32.mrb[0].mxu0
      %v2898 = vadd.f32 %v2673, %v2897
      %v2899 = vpop.f32.mrb[0].mxu0
      %2900 = vmatprep.mubr.f32.mxu0 %v2197
      %2901 = vmatmul.mubr.f32.gmra.mrb[0].mxu0 %v2161
      %v2902 = vpop.f32.mrb[0].mxu0
      %v2903 = vadd.f32 %v2678, %v2902
      %v2904 = vpop.f32.mrb[0].mxu0
      %2905 = vmatprep.mubr.f32.mxu0 %v2198
      %2906 = vmatmul.mubr.f32.gmra.mrb[0].mxu0 %v2162
      %v2907 = vpop.f32.mrb[0].mxu0
      %v2908 = vadd.f32 %v2683, %v2907
      %v2909 = vpop.f32.mrb[0].mxu0
      %2910 = vmatprep.mubr.f32.mxu0 %v2199
      %2911 = vmatmul.mubr.f32.gmra.mrb[0].mxu0 %v2163
      %v2912 = vpop.f32.mrb[0].mxu0
      %v2913 = vadd.f32 %v2688, %v2912
      %v2914 = vpop.f32.mrb[0].mxu0
      %2915 = vmatprep.mubr.f32.mxu0 %v2200
      %2916 = vmatmul.mubr.f32.gmra.mrb[0].mxu0 %v2164
      %v2917 = vpop.f32.mrb[0].mxu0
      %v2918 = vadd.f32 %v2693, %v2917
      %v2919 = vpop.f32.mrb[0].mxu0
      %2920 = vmatprep.mubr.f32.mxu0 %v2201
      %2921 = vmatmul.mubr.f32.gmra.mrb[0].mxu0 %v2165
      %v2922 = vpop.f32.mrb[0].mxu0
      %v2923 = vadd.f32 %v2698, %v2922
      %v2924 = vpop.f32.mrb[0].mxu0
      %2925 = vmatprep.mubr.f32.mxu0 %v2202
      %2926 = vmatmul.mubr.f32.gmra.mrb[0].mxu0 %v2166
      %v2927 = vpop.f32.mrb[0].mxu0
      %v2928 = vadd.f32 %v2703, %v2927
      %v2929 = vpop.f32.mrb[0].mxu0
      %2930 = vmatprep.mubr.f32.mxu0 %v2203
      %2931 = vmatmul.mubr.f32.gmra.mrb[0].mxu0 %v2167
      %v2932 = vpop.f32.mrb[0].mxu0
      %v2933 = vadd.f32 %v2708, %v2932
      %v2934 = vpop.f32.mrb[0].mxu0
      %2935 = vmatprep.mubr.f32.mxu0 %v2204
      %2936 = vmatmul.mubr.f32.gmra.mrb[0].mxu0 %v2168
      %v2937 = vpop.f32.mrb[0].mxu0
      %v2938 = vadd.f32 %v2713, %v2937
      %v2939 = vpop.f32.mrb[0].mxu0
      %2940 = vmatprep.mubr.f32.mxu0 %v2205
      %2941 = vmatmul.mubr.f32.gmra.mrb[0].mxu0 %v2169
      %v2942 = vpop.f32.mrb[0].mxu0
      %v2943 = vadd.f32 %v2718, %v2942
      %v2944 = vpop.f32.mrb[0].mxu0
      %2945 = vmatprep.mubr.f32.mxu0 %v2206
      %2946 = vmatmul.mubr.f32.gmra.mrb[0].mxu0 %v2170
      %v2947 = vpop.f32.mrb[0].mxu0
      %v2948 = vadd.f32 %v2723, %v2947
      %v2949 = vpop.f32.mrb[0].mxu0
      %2950 = vmatprep.mubr.f32.mxu0 %v2207
      %2951 = vmatmul.mubr.f32.gmra.mrb[0].mxu0 %v2171
      %v2952 = vpop.f32.mrb[0].mxu0
      %v2953 = vadd.f32 %v2728, %v2952
      %v2954 = vpop.f32.mrb[0].mxu0
      %2955 = vmatprep.mubr.f32.mxu0 %v2208
      %2956 = vmatmul.mubr.f32.gmra.mrb[0].mxu0 %v2172
      %v2957 = vpop.f32.mrb[0].mxu0
      %v2958 = vadd.f32 %v2733, %v2957
      %v2959 = vpop.f32.mrb[0].mxu0
      %2960 = vmatprep.mubr.f32.mxu0 %v2209
      %2961 = vmatmul.mubr.f32.gmra.mrb[0].mxu0 %v2173
      %v2962 = vpop.f32.mrb[0].mxu0
      %v2963 = vadd.f32 %v2738, %v2962
      %v2964 = vpop.f32.mrb[0].mxu0
      %2965 = vmatprep.mubr.f32.mxu0 %v2210
      %2966 = vmatmul.mubr.f32.gmra.mrb[0].mxu0 %v2174
      %v2967 = vpop.f32.mrb[0].mxu0
      %v2968 = vadd.f32 %v2743, %v2967
      %v2969 = vpop.f32.mrb[0].mxu0
      %2970 = vmatprep.mubr.f32.mxu0 %v2211
      %2971 = vmatmul.mubr.f32.gmra.mrb[0].mxu0 %v2175
      %v2972 = vpop.f32.mrb[0].mxu0
      %v2973 = vadd.f32 %v2748, %v2972
      %v2974 = vpop.f32.mrb[0].mxu0
      %2975 = vmatprep.mubr.f32.mxu0 %v2212
      %2976 = vmatmul.mubr.f32.gmra.mrb[0].mxu0 %v2176
      %v2977 = vpop.f32.mrb[0].mxu0
      %v2978 = vadd.f32 %v2753, %v2977
      %v2979 = vpop.f32.mrb[0].mxu0
      %2980 = vmatprep.mubr.f32.mxu0 %v2213
      %2981 = vmatmul.mubr.f32.gmra.mrb[0].mxu0 %v2177
      %v2982 = vpop.f32.mrb[0].mxu0
      %v2983 = vadd.f32 %v2758, %v2982
      %v2984 = vpop.f32.mrb[0].mxu0
      %2985 = vmatprep.mubr.f32.mxu0 %v2214
      %2986 = vmatmul.mubr.f32.gmra.mrb[0].mxu0 %v2178
      %v2987 = vpop.f32.mrb[0].mxu0
      %v2988 = vadd.f32 %v2763, %v2987
      %v2989 = vpop.f32.mrb[0].mxu0
      %2990 = vmatprep.mubr.f32.mxu0 %v2215
      %2991 = vmatmul.mubr.f32.gmra.mrb[0].mxu0 %v2179
      %v2992 = vpop.f32.mrb[0].mxu0
      %v2993 = vadd.f32 %v2768, %v2992
      %v2994 = vpop.f32.mrb[0].mxu0
      %2995 = vmatprep.mubr.f32.mxu0 %v2216
      %2996 = vmatmul.mubr.f32.gmra.mrb[0].mxu0 %v2180
      %v2997 = vpop.f32.mrb[0].mxu0
      %v2998 = vadd.f32 %v2773, %v2997
      %v2999 = vpop.f32.mrb[0].mxu0
      %3000 = vmatprep.mubr.f32.mxu0 %v2217
      %3001 = vmatmul.mubr.f32.gmra.mrb[0].mxu0 %v2181
      %v3002 = vpop.f32.mrb[0].mxu0
      %v3003 = vadd.f32 %v2778, %v3002
      %v3004 = vpop.f32.mrb[0].mxu0
      %3005 = vmatprep.mubr.f32.mxu0 %v2218
      %3006 = vmatmul.mubr.f32.gmra.mrb[0].mxu0 %v2182
      %v3007 = vpop.f32.mrb[0].mxu0
      %v3008 = vadd.f32 %v2783, %v3007
      %v3009 = vpop.f32.mrb[0].mxu0
      %3010 = vmatprep.mubr.f32.mxu0 %v2219
      %3011 = vmatmul.mubr.f32.gmra.mrb[0].mxu0 %v2183
      %v3012 = vpop.f32.mrb[0].mxu0
      %v3013 = vadd.f32 %v2788, %v3012
      %v3014 = vpop.f32.mrb[0].mxu0
      %3015 = vmatprep.mubr.f32.mxu0 %v2220
      %3016 = vmatmul.mubr.f32.gmra.mrb[0].mxu0 %v2184
      %v3017 = vpop.f32.mrb[0].mxu0
      %v3018 = vadd.f32 %v2793, %v3017
      %v3019 = vpop.f32.mrb[0].mxu0
      %3020 = vmatprep.mubr.f32.mxu0 %v2221
      %3021 = vmatmul.mubr.f32.gmra.mrb[0].mxu0 %v2185
      %v3022 = vpop.f32.mrb[0].mxu0
      %v3023 = vadd.f32 %v2798, %v3022
      %v3024 = vpop.f32.mrb[0].mxu0
      %3025 = vmatprep.mubr.f32.mxu0 %v2222
      %3026 = vmatmul.mubr.f32.gmra.mrb[0].mxu0 %v2186
      %v3027 = vpop.f32.mrb[0].mxu0
      %v3028 = vadd.f32 %v2803, %v3027
      %v3029 = vpop.f32.mrb[0].mxu0
      %3030 = vmatprep.mubr.f32.mxu0 %v2223
      %3031 = vmatmul.mubr.f32.gmra.mrb[0].mxu0 %v2187
      %v3032 = vpop.f32.mrb[0].mxu0
      %v3033 = vadd.f32 %v2808, %v3032
      %v3034 = vpop.f32.mrb[0].mxu0
      %3035 = vdwg.mxu0
      %3036 = vmatprep.subr.mxu0 0.0
      %3037 = vmatpush1.msra.mxu0 %v2296
      %3038 = vmatprep.subr.mxu0 0.0
      %3039 = vmatpush1.msra.mxu0 %v2297
      %3040 = vmatprep.subr.mxu0 0.0
      %3041 = vmatpush1.msra.mxu0 %v2298
      %3042 = vmatprep.subr.mxu0 0.0
      %3043 = vmatpush1.msra.mxu0 %v2299
      %3044 = vmatprep.subr.mxu0 0.0
      %3045 = vmatpush1.msra.mxu0 %v2300
      %3046 = vmatprep.subr.mxu0 0.0
      %3047 = vmatpush1.msra.mxu0 %v2301
      %3048 = vmatprep.subr.mxu0 0.0
      %3049 = vmatpush1.msra.mxu0 %v2302
      %3050 = vmatprep.subr.mxu0 0.0
      %3051 = vmatpush1.msra.mxu0 %v2303
      %3052 = vmatprep.subr.mxu0 0.0
      %3053 = vmatpush1.msra.mxu0 %v2304
      %3054 = vmatprep.subr.mxu0 0.0
      %3055 = vmatpush1.msra.mxu0 %v2305
      %3056 = vmatprep.subr.mxu0 0.0
      %3057 = vmatpush1.msra.mxu0 %v2306
      %3058 = vmatprep.subr.mxu0 0.0
      %3059 = vmatpush1.msra.mxu0 %v2307
      %3060 = vmatprep.subr.mxu0 0.0
      %3061 = vmatpush1.msra.mxu0 %v2308
      %3062 = vmatprep.subr.mxu0 0.0
      %3063 = vmatpush1.msra.mxu0 %v2309
      %3064 = vmatprep.subr.mxu0 0.0
      %3065 = vmatpush1.msra.mxu0 %v2310
      %3066 = vmatprep.subr.mxu0 0.0
      %3067 = vmatpush1.msra.mxu0 %v2311
      %3068 = vmatprep.subr.mxu0 0.0
      %3069 = vmatpush1.msra.mxu0 0.0
      %3070 = vmatprep.subr.mxu0 0.0
      %3071 = vmatpush1.msra.mxu0 0.0
      %3072 = vmatprep.subr.mxu0 0.0
      %3073 = vmatpush1.msra.mxu0 0.0
      %3074 = vmatprep.subr.mxu0 0.0
      %3075 = vmatpush1.msra.mxu0 0.0
      %3076 = vmatprep.subr.mxu0 0.0
      %3077 = vmatpush1.msra.mxu0 0.0
      %3078 = vmatprep.subr.mxu0 0.0
      %3079 = vmatpush1.msra.mxu0 0.0
      %3080 = vmatprep.subr.mxu0 0.0
      %3081 = vmatpush1.msra.mxu0 0.0
      %3082 = vmatprep.subr.mxu0 0.0
      %3083 = vmatpush1.msra.mxu0 0.0
      %3084 = vmatprep.subr.mxu0 0.0
      %3085 = vmatpush1.msra.mxu0 0.0
      %3086 = vmatprep.subr.mxu0 0.0
      %3087 = vmatpush1.msra.mxu0 0.0
      %3088 = vmatprep.subr.mxu0 0.0
      %3089 = vmatpush1.msra.mxu0 0.0
      %3090 = vmatprep.subr.mxu0 0.0
      %3091 = vmatpush1.msra.mxu0 0.0
      %3092 = vmatprep.subr.mxu0 0.0
      %3093 = vmatpush1.msra.mxu0 0.0
      %3094 = vmatprep.subr.mxu0 0.0
      %3095 = vmatpush1.msra.mxu0 0.0
      %3096 = vmatprep.subr.mxu0 0.0
      %3097 = vmatpush1.msra.mxu0 0.0
      %3098 = vmatprep.subr.mxu0 0.0
      %3099 = vmatpush1.msra.mxu0 0.0
      %3100 = vmatprep.mubr.f32.mxu0 0.0
      %3101 = vmatmul.mubr.f32.gmra.mrb[0].mxu0 %v2228
      %v3102 = vpop.f32.mrb[0].mxu0
      %v3103 = vadd.f32 %v2878, %v3102
      %v3104 = vpop.f32.mrb[0].mxu0
      %3105 = vmatprep.mubr.f32.mxu0 0.0
      %3106 = vmatmul.mubr.f32.gmra.mrb[0].mxu0 %v2229
      %v3107 = vpop.f32.mrb[0].mxu0
      %v3108 = vadd.f32 %v2883, %v3107
      %v3109 = vpop.f32.mrb[0].mxu0
      %3110 = vmatprep.mubr.f32.mxu0 0.0
      %3111 = vmatmul.mubr.f32.gmra.mrb[0].mxu0 %v2230
      %v3112 = vpop.f32.mrb[0].mxu0
      %v3113 = vadd.f32 %v2888, %v3112
      %v3114 = vpop.f32.mrb[0].mxu0
      %3115 = vmatprep.mubr.f32.mxu0 0.0
      %3116 = vmatmul.mubr.f32.gmra.mrb[0].mxu0 %v2231
      %v3117 = vpop.f32.mrb[0].mxu0
      %v3118 = vadd.f32 %v2893, %v3117
      %v3119 = vpop.f32.mrb[0].mxu0
      %3120 = vmatprep.mubr.f32.mxu0 0.0
      %3121 = vmatmul.mubr.f32.gmra.mrb[0].mxu0 %v2232
      %v3122 = vpop.f32.mrb[0].mxu0
      %v3123 = vadd.f32 %v2898, %v3122
      %v3124 = vpop.f32.mrb[0].mxu0
      %3125 = vmatprep.mubr.f32.mxu0 0.0
      %3126 = vmatmul.mubr.f32.gmra.mrb[0].mxu0 %v2233
      %v3127 = vpop.f32.mrb[0].mxu0
      %v3128 = vadd.f32 %v2903, %v3127
      %v3129 = vpop.f32.mrb[0].mxu0
      %3130 = vmatprep.mubr.f32.mxu0 0.0
      %3131 = vmatmul.mubr.f32.gmra.mrb[0].mxu0 %v2234
      %v3132 = vpop.f32.mrb[0].mxu0
      %v3133 = vadd.f32 %v2908, %v3132
      %v3134 = vpop.f32.mrb[0].mxu0
      %3135 = vmatprep.mubr.f32.mxu0 0.0
      %3136 = vmatmul.mubr.f32.gmra.mrb[0].mxu0 %v2235
      %v3137 = vpop.f32.mrb[0].mxu0
      %v3138 = vadd.f32 %v2913, %v3137
      %v3139 = vpop.f32.mrb[0].mxu0
      %3140 = vmatprep.mubr.f32.mxu0 0.0
      %3141 = vmatmul.mubr.f32.gmra.mrb[0].mxu0 %v2236
      %v3142 = vpop.f32.mrb[0].mxu0
      %v3143 = vadd.f32 %v2918, %v3142
      %v3144 = vpop.f32.mrb[0].mxu0
      %3145 = vmatprep.mubr.f32.mxu0 0.0
      %3146 = vmatmul.mubr.f32.gmra.mrb[0].mxu0 %v2237
      %v3147 = vpop.f32.mrb[0].mxu0
      %v3148 = vadd.f32 %v2923, %v3147
      %v3149 = vpop.f32.mrb[0].mxu0
      %3150 = vmatprep.mubr.f32.mxu0 0.0
      %3151 = vmatmul.mubr.f32.gmra.mrb[0].mxu0 %v2238
      %v3152 = vpop.f32.mrb[0].mxu0
      %v3153 = vadd.f32 %v2928, %v3152
      %v3154 = vpop.f32.mrb[0].mxu0
      %3155 = vmatprep.mubr.f32.mxu0 0.0
      %3156 = vmatmul.mubr.f32.gmra.mrb[0].mxu0 %v2239
      %v3157 = vpop.f32.mrb[0].mxu0
      %v3158 = vadd.f32 %v2933, %v3157
      %v3159 = vpop.f32.mrb[0].mxu0
      %3160 = vmatprep.mubr.f32.mxu0 0.0
      %3161 = vmatmul.mubr.f32.gmra.mrb[0].mxu0 %v2240
      %v3162 = vpop.f32.mrb[0].mxu0
      %v3163 = vadd.f32 %v2938, %v3162
      %v3164 = vpop.f32.mrb[0].mxu0
      %3165 = vmatprep.mubr.f32.mxu0 0.0
      %3166 = vmatmul.mubr.f32.gmra.mrb[0].mxu0 %v2241
      %v3167 = vpop.f32.mrb[0].mxu0
      %v3168 = vadd.f32 %v2943, %v3167
      %v3169 = vpop.f32.mrb[0].mxu0
      %3170 = vmatprep.mubr.f32.mxu0 0.0
      %3171 = vmatmul.mubr.f32.gmra.mrb[0].mxu0 %v2242
      %v3172 = vpop.f32.mrb[0].mxu0
      %v3173 = vadd.f32 %v2948, %v3172
      %v3174 = vpop.f32.mrb[0].mxu0
      %3175 = vmatprep.mubr.f32.mxu0 0.0
      %3176 = vmatmul.mubr.f32.gmra.mrb[0].mxu0 %v2243
      %v3177 = vpop.f32.mrb[0].mxu0
      %v3178 = vadd.f32 %v2953, %v3177
      %v3179 = vpop.f32.mrb[0].mxu0
      %3180 = vmatprep.mubr.f32.mxu0 0.0
      %3181 = vmatmul.mubr.f32.gmra.mrb[0].mxu0 %v2244
      %v3182 = vpop.f32.mrb[0].mxu0
      %v3183 = vadd.f32 %v2958, %v3182
      %v3184 = vpop.f32.mrb[0].mxu0
      %3185 = vmatprep.mubr.f32.mxu0 0.0
      %3186 = vmatmul.mubr.f32.gmra.mrb[0].mxu0 %v2245
      %v3187 = vpop.f32.mrb[0].mxu0
      %v3188 = vadd.f32 %v2963, %v3187
      %v3189 = vpop.f32.mrb[0].mxu0
      %3190 = vmatprep.mubr.f32.mxu0 0.0
      %3191 = vmatmul.mubr.f32.gmra.mrb[0].mxu0 %v2246
      %v3192 = vpop.f32.mrb[0].mxu0
      %v3193 = vadd.f32 %v2968, %v3192
      %v3194 = vpop.f32.mrb[0].mxu0
      %3195 = vmatprep.mubr.f32.mxu0 0.0
      %3196 = vmatmul.mubr.f32.gmra.mrb[0].mxu0 %v2247
      %v3197 = vpop.f32.mrb[0].mxu0
      %v3198 = vadd.f32 %v2973, %v3197
      %v3199 = vpop.f32.mrb[0].mxu0
      %3200 = vmatprep.mubr.f32.mxu0 0.0
      %3201 = vmatmul.mubr.f32.gmra.mrb[0].mxu0 %v2248
      %v3202 = vpop.f32.mrb[0].mxu0
      %v3203 = vadd.f32 %v2978, %v3202
      %v3204 = vpop.f32.mrb[0].mxu0
      %3205 = vmatprep.mubr.f32.mxu0 0.0
      %3206 = vmatmul.mubr.f32.gmra.mrb[0].mxu0 %v2249
      %v3207 = vpop.f32.mrb[0].mxu0
      %v3208 = vadd.f32 %v2983, %v3207
      %v3209 = vpop.f32.mrb[0].mxu0
      %3210 = vmatprep.mubr.f32.mxu0 0.0
      %3211 = vmatmul.mubr.f32.gmra.mrb[0].mxu0 %v2250
      %v3212 = vpop.f32.mrb[0].mxu0
      %v3213 = vadd.f32 %v2988, %v3212
      %v3214 = vpop.f32.mrb[0].mxu0
      %3215 = vmatprep.mubr.f32.mxu0 0.0
      %3216 = vmatmul.mubr.f32.gmra.mrb[0].mxu0 %v2251
      %v3217 = vpop.f32.mrb[0].mxu0
      %v3218 = vadd.f32 %v2993, %v3217
      %v3219 = vpop.f32.mrb[0].mxu0
      %3220 = vmatprep.mubr.f32.mxu0 0.0
      %3221 = vmatmul.mubr.f32.gmra.mrb[0].mxu0 %v2252
      %v3222 = vpop.f32.mrb[0].mxu0
      %v3223 = vadd.f32 %v2998, %v3222
      %v3224 = vpop.f32.mrb[0].mxu0
      %3225 = vmatprep.mubr.f32.mxu0 0.0
      %3226 = vmatmul.mubr.f32.gmra.mrb[0].mxu0 %v2253
      %v3227 = vpop.f32.mrb[0].mxu0
      %v3228 = vadd.f32 %v3003, %v3227
      %v3229 = vpop.f32.mrb[0].mxu0
      %3230 = vmatprep.mubr.f32.mxu0 0.0
      %3231 = vmatmul.mubr.f32.gmra.mrb[0].mxu0 %v2254
      %v3232 = vpop.f32.mrb[0].mxu0
      %v3233 = vadd.f32 %v3008, %v3232
      %v3234 = vpop.f32.mrb[0].mxu0
      %3235 = vmatprep.mubr.f32.mxu0 0.0
      %3236 = vmatmul.mubr.f32.gmra.mrb[0].mxu0 %v2255
      %v3237 = vpop.f32.mrb[0].mxu0
      %v3238 = vadd.f32 %v3013, %v3237
      %v3239 = vpop.f32.mrb[0].mxu0
      %3240 = vmatprep.mubr.f32.mxu0 0.0
      %3241 = vmatmul.mubr.f32.gmra.mrb[0].mxu0 %v2256
      %v3242 = vpop.f32.mrb[0].mxu0
      %v3243 = vadd.f32 %v3018, %v3242
      %v3244 = vpop.f32.mrb[0].mxu0
      %3245 = vmatprep.mubr.f32.mxu0 0.0
      %3246 = vmatmul.mubr.f32.gmra.mrb[0].mxu0 %v2257
      %v3247 = vpop.f32.mrb[0].mxu0
      %v3248 = vadd.f32 %v3023, %v3247
      %v3249 = vpop.f32.mrb[0].mxu0
      %3250 = vmatprep.mubr.f32.mxu0 0.0
      %3251 = vmatmul.mubr.f32.gmra.mrb[0].mxu0 %v2258
      %v3252 = vpop.f32.mrb[0].mxu0
      %v3253 = vadd.f32 %v3028, %v3252
      %v3254 = vpop.f32.mrb[0].mxu0
      %3255 = vmatprep.mubr.f32.mxu0 0.0
      %3256 = vmatmul.mubr.f32.gmra.mrb[0].mxu0 %v2259
      %v3257 = vpop.f32.mrb[0].mxu0
      %v3258 = vadd.f32 %v3033, %v3257
      %v3259 = vpop.f32.mrb[0].mxu0
      %3260 = vdwg.mxu0
      %s3261 = scalar_lea.vmem %s3, 768
      %v3262 = vld [vmem:[%s3261] sm:$0xff]
      %v3263 = vld [vmem:[%s3261 + $0x8] sm:$0xff]
      %v3264 = vld [vmem:[%s3261 + $0x10] sm:$0xff]
      %v3265 = vld [vmem:[%s3261 + $0x18] sm:$0xff]
      %v3266 = vld [vmem:[%s3261 + $0x20] sm:$0xff]
      %v3267 = vld [vmem:[%s3261 + $0x28] sm:$0xff]
      %v3268 = vld [vmem:[%s3261 + $0x30] sm:$0xff]
      %v3269 = vld [vmem:[%s3261 + $0x38] sm:$0xff]
      %v3270 = vld [vmem:[%s3261 + $0x40] sm:$0xff]
      %v3271 = vld [vmem:[%s3261 + $0x48] sm:$0xff]
      %v3272 = vld [vmem:[%s3261 + $0x50] sm:$0xff]
      %v3273 = vld [vmem:[%s3261 + $0x58] sm:$0xff]
      %v3274 = vld [vmem:[%s3261 + $0x60] sm:$0xff]
      %v3275 = vld [vmem:[%s3261 + $0x68] sm:$0xff]
      %v3276 = vld [vmem:[%s3261 + $0x70] sm:$0xff]
      %v3277 = vld [vmem:[%s3261 + $0x78] sm:$0xff]
      %v3278 = vld [vmem:[%s3261 + $0x80] sm:$0xff]
      %v3279 = vld [vmem:[%s3261 + $0x88] sm:$0xff]
      %v3280 = vld [vmem:[%s3261 + $0x90] sm:$0xff]
      %v3281 = vld [vmem:[%s3261 + $0x98] sm:$0xff]
      %v3282 = vld [vmem:[%s3261 + $0xa0] sm:$0xff]
      %v3283 = vld [vmem:[%s3261 + $0xa8] sm:$0xff]
      %v3284 = vld [vmem:[%s3261 + $0xb0] sm:$0xff]
      %v3285 = vld [vmem:[%s3261 + $0xb8] sm:$0xff]
      %v3286 = vld [vmem:[%s3261 + $0xc0] sm:$0xff]
      %v3287 = vld [vmem:[%s3261 + $0xc8] sm:$0xff]
      %v3288 = vld [vmem:[%s3261 + $0xd0] sm:$0xff]
      %v3289 = vld [vmem:[%s3261 + $0xd8] sm:$0xff]
      %v3290 = vld [vmem:[%s3261 + $0xe0] sm:$0xff]
      %v3291 = vld [vmem:[%s3261 + $0xe8] sm:$0xff]
      %v3292 = vld [vmem:[%s3261 + $0xf0] sm:$0xff]
      %v3293 = vld [vmem:[%s3261 + $0xf8] sm:$0xff]
      %v3294 = vld [vmem:[%s3261 + $0x100] sm:$0xff]
      %v3295 = vld [vmem:[%s3261 + $0x108] sm:$0xff]
      %v3296 = vld [vmem:[%s3261 + $0x110] sm:$0xff]
      %v3297 = vld [vmem:[%s3261 + $0x118] sm:$0xff]
      %v3298 = vld [vmem:[%s3261 + $0x120] sm:$0xff]
      %v3299 = vld [vmem:[%s3261 + $0x128] sm:$0xff]
      %v3300 = vld [vmem:[%s3261 + $0x130] sm:$0xff]
      %v3301 = vld [vmem:[%s3261 + $0x138] sm:$0xff]
      %v3302 = vld [vmem:[%s3261 + $0x140] sm:$0xff]
      %v3303 = vld [vmem:[%s3261 + $0x148] sm:$0xff]
      %v3304 = vld [vmem:[%s3261 + $0x150] sm:$0xff]
      %v3305 = vld [vmem:[%s3261 + $0x158] sm:$0xff]
      %v3306 = vld [vmem:[%s3261 + $0x160] sm:$0xff]
      %v3307 = vld [vmem:[%s3261 + $0x168] sm:$0xff]
      %v3308 = vld [vmem:[%s3261 + $0x170] sm:$0xff]
      %v3309 = vld [vmem:[%s3261 + $0x178] sm:$0xff]
      %3310 = vmatprep.subr.mxu0 0.0
      %3311 = vmatpush1.msra.mxu0 %v3262
      %3312 = vmatprep.subr.mxu0 0.0
      %3313 = vmatpush1.msra.mxu0 %v3263
      %3314 = vmatprep.subr.mxu0 0.0
      %3315 = vmatpush1.msra.mxu0 %v3264
      %3316 = vmatprep.subr.mxu0 0.0
      %3317 = vmatpush1.msra.mxu0 %v3265
      %3318 = vmatprep.subr.mxu0 0.0
      %3319 = vmatpush1.msra.mxu0 %v3266
      %3320 = vmatprep.subr.mxu0 0.0
      %3321 = vmatpush1.msra.mxu0 %v3267
      %3322 = vmatprep.subr.mxu0 0.0
      %3323 = vmatpush1.msra.mxu0 %v3268
      %3324 = vmatprep.subr.mxu0 0.0
      %3325 = vmatpush1.msra.mxu0 %v3269
      %3326 = vmatprep.subr.mxu0 0.0
      %3327 = vmatpush1.msra.mxu0 %v3270
      %3328 = vmatprep.subr.mxu0 0.0
      %3329 = vmatpush1.msra.mxu0 %v3271
      %3330 = vmatprep.subr.mxu0 0.0
      %3331 = vmatpush1.msra.mxu0 %v3272
      %3332 = vmatprep.subr.mxu0 0.0
      %3333 = vmatpush1.msra.mxu0 %v3273
      %3334 = vmatprep.subr.mxu0 0.0
      %3335 = vmatpush1.msra.mxu0 %v3274
      %3336 = vmatprep.subr.mxu0 0.0
      %3337 = vmatpush1.msra.mxu0 %v3275
      %3338 = vmatprep.subr.mxu0 0.0
      %3339 = vmatpush1.msra.mxu0 %v3276
      %3340 = vmatprep.subr.mxu0 0.0
      %3341 = vmatpush1.msra.mxu0 %v3277
      %3342 = vmatprep.subr.mxu0 0.0
      %3343 = vmatpush1.msra.mxu0 %v3278
      %3344 = vmatprep.subr.mxu0 0.0
      %3345 = vmatpush1.msra.mxu0 %v3279
      %3346 = vmatprep.subr.mxu0 0.0
      %3347 = vmatpush1.msra.mxu0 %v3280
      %3348 = vmatprep.subr.mxu0 0.0
      %3349 = vmatpush1.msra.mxu0 %v3281
      %3350 = vmatprep.subr.mxu0 0.0
      %3351 = vmatpush1.msra.mxu0 %v3282
      %3352 = vmatprep.subr.mxu0 0.0
      %3353 = vmatpush1.msra.mxu0 %v3283
      %3354 = vmatprep.subr.mxu0 0.0
      %3355 = vmatpush1.msra.mxu0 %v3284
      %3356 = vmatprep.subr.mxu0 0.0
      %3357 = vmatpush1.msra.mxu0 %v3285
      %3358 = vmatprep.subr.mxu0 0.0
      %3359 = vmatpush1.msra.mxu0 %v3286
      %3360 = vmatprep.subr.mxu0 0.0
      %3361 = vmatpush1.msra.mxu0 %v3287
      %3362 = vmatprep.subr.mxu0 0.0
      %3363 = vmatpush1.msra.mxu0 %v3288
      %3364 = vmatprep.subr.mxu0 0.0
      %3365 = vmatpush1.msra.mxu0 %v3289
      %3366 = vmatprep.subr.mxu0 0.0
      %3367 = vmatpush1.msra.mxu0 %v3290
      %3368 = vmatprep.subr.mxu0 0.0
      %3369 = vmatpush1.msra.mxu0 %v3291
      %3370 = vmatprep.subr.mxu0 0.0
      %3371 = vmatpush1.msra.mxu0 %v3292
      %3372 = vmatprep.subr.mxu0 0.0
      %3373 = vmatpush1.msra.mxu0 %v3293
      %3374 = vmatprep.mubr.f32.mxu0 %v2196
      %3375 = vmatmul.mubr.f32.gmra.mrb[0].mxu0 %v2160
      %v3376 = vpop.f32.mrb[0].mxu0
      %v3377 = vadd.f32 0.0, %v3376
      %v3378 = vpop.f32.mrb[0].mxu0
      %3379 = vmatprep.mubr.f32.mxu0 %v2197
      %3380 = vmatmul.mubr.f32.gmra.mrb[0].mxu0 %v2161
      %v3381 = vpop.f32.mrb[0].mxu0
      %v3382 = vadd.f32 0.0, %v3381
      %v3383 = vpop.f32.mrb[0].mxu0
      %3384 = vmatprep.mubr.f32.mxu0 %v2198
      %3385 = vmatmul.mubr.f32.gmra.mrb[0].mxu0 %v2162
      %v3386 = vpop.f32.mrb[0].mxu0
      %v3387 = vadd.f32 0.0, %v3386
      %v3388 = vpop.f32.mrb[0].mxu0
      %3389 = vmatprep.mubr.f32.mxu0 %v2199
      %3390 = vmatmul.mubr.f32.gmra.mrb[0].mxu0 %v2163
      %v3391 = vpop.f32.mrb[0].mxu0
      %v3392 = vadd.f32 0.0, %v3391
      %v3393 = vpop.f32.mrb[0].mxu0
      %3394 = vmatprep.mubr.f32.mxu0 %v2200
      %3395 = vmatmul.mubr.f32.gmra.mrb[0].mxu0 %v2164
      %v3396 = vpop.f32.mrb[0].mxu0
      %v3397 = vadd.f32 0.0, %v3396
      %v3398 = vpop.f32.mrb[0].mxu0
      %3399 = vmatprep.mubr.f32.mxu0 %v2201
      %3400 = vmatmul.mubr.f32.gmra.mrb[0].mxu0 %v2165
      %v3401 = vpop.f32.mrb[0].mxu0
      %v3402 = vadd.f32 0.0, %v3401
      %v3403 = vpop.f32.mrb[0].mxu0
      %3404 = vmatprep.mubr.f32.mxu0 %v2202
      %3405 = vmatmul.mubr.f32.gmra.mrb[0].mxu0 %v2166
      %v3406 = vpop.f32.mrb[0].mxu0
      %v3407 = vadd.f32 0.0, %v3406
      %v3408 = vpop.f32.mrb[0].mxu0
      %3409 = vmatprep.mubr.f32.mxu0 %v2203
      %3410 = vmatmul.mubr.f32.gmra.mrb[0].mxu0 %v2167
      %v3411 = vpop.f32.mrb[0].mxu0
      %v3412 = vadd.f32 0.0, %v3411
      %v3413 = vpop.f32.mrb[0].mxu0
      %3414 = vmatprep.mubr.f32.mxu0 %v2204
      %3415 = vmatmul.mubr.f32.gmra.mrb[0].mxu0 %v2168
      %v3416 = vpop.f32.mrb[0].mxu0
      %v3417 = vadd.f32 0.0, %v3416
      %v3418 = vpop.f32.mrb[0].mxu0
      %3419 = vmatprep.mubr.f32.mxu0 %v2205
      %3420 = vmatmul.mubr.f32.gmra.mrb[0].mxu0 %v2169
      %v3421 = vpop.f32.mrb[0].mxu0
      %v3422 = vadd.f32 0.0, %v3421
      %v3423 = vpop.f32.mrb[0].mxu0
      %3424 = vmatprep.mubr.f32.mxu0 %v2206
      %3425 = vmatmul.mubr.f32.gmra.mrb[0].mxu0 %v2170
      %v3426 = vpop.f32.mrb[0].mxu0
      %v3427 = vadd.f32 0.0, %v3426
      %v3428 = vpop.f32.mrb[0].mxu0
      %3429 = vmatprep.mubr.f32.mxu0 %v2207
      %3430 = vmatmul.mubr.f32.gmra.mrb[0].mxu0 %v2171
      %v3431 = vpop.f32.mrb[0].mxu0
      %v3432 = vadd.f32 0.0, %v3431
      %v3433 = vpop.f32.mrb[0].mxu0
      %3434 = vmatprep.mubr.f32.mxu0 %v2208
      %3435 = vmatmul.mubr.f32.gmra.mrb[0].mxu0 %v2172
      %v3436 = vpop.f32.mrb[0].mxu0
      %v3437 = vadd.f32 0.0, %v3436
      %v3438 = vpop.f32.mrb[0].mxu0
      %3439 = vmatprep.mubr.f32.mxu0 %v2209
      %3440 = vmatmul.mubr.f32.gmra.mrb[0].mxu0 %v2173
      %v3441 = vpop.f32.mrb[0].mxu0
      %v3442 = vadd.f32 0.0, %v3441
      %v3443 = vpop.f32.mrb[0].mxu0
      %3444 = vmatprep.mubr.f32.mxu0 %v2210
      %3445 = vmatmul.mubr.f32.gmra.mrb[0].mxu0 %v2174
      %v3446 = vpop.f32.mrb[0].mxu0
      %v3447 = vadd.f32 0.0, %v3446
      %v3448 = vpop.f32.mrb[0].mxu0
      %3449 = vmatprep.mubr.f32.mxu0 %v2211
      %3450 = vmatmul.mubr.f32.gmra.mrb[0].mxu0 %v2175
      %v3451 = vpop.f32.mrb[0].mxu0
      %v3452 = vadd.f32 0.0, %v3451
      %v3453 = vpop.f32.mrb[0].mxu0
      %3454 = vmatprep.mubr.f32.mxu0 %v2212
      %3455 = vmatmul.mubr.f32.gmra.mrb[0].mxu0 %v2176
      %v3456 = vpop.f32.mrb[0].mxu0
      %v3457 = vadd.f32 0.0, %v3456
      %v3458 = vpop.f32.mrb[0].mxu0
      %3459 = vmatprep.mubr.f32.mxu0 %v2213
      %3460 = vmatmul.mubr.f32.gmra.mrb[0].mxu0 %v2177
      %v3461 = vpop.f32.mrb[0].mxu0
      %v3462 = vadd.f32 0.0, %v3461
      %v3463 = vpop.f32.mrb[0].mxu0
      %3464 = vmatprep.mubr.f32.mxu0 %v2214
      %3465 = vmatmul.mubr.f32.gmra.mrb[0].mxu0 %v2178
      %v3466 = vpop.f32.mrb[0].mxu0
      %v3467 = vadd.f32 0.0, %v3466
      %v3468 = vpop.f32.mrb[0].mxu0
      %3469 = vmatprep.mubr.f32.mxu0 %v2215
      %3470 = vmatmul.mubr.f32.gmra.mrb[0].mxu0 %v2179
      %v3471 = vpop.f32.mrb[0].mxu0
      %v3472 = vadd.f32 0.0, %v3471
      %v3473 = vpop.f32.mrb[0].mxu0
      %3474 = vmatprep.mubr.f32.mxu0 %v2216
      %3475 = vmatmul.mubr.f32.gmra.mrb[0].mxu0 %v2180
      %v3476 = vpop.f32.mrb[0].mxu0
      %v3477 = vadd.f32 0.0, %v3476
      %v3478 = vpop.f32.mrb[0].mxu0
      %3479 = vmatprep.mubr.f32.mxu0 %v2217
      %3480 = vmatmul.mubr.f32.gmra.mrb[0].mxu0 %v2181
      %v3481 = vpop.f32.mrb[0].mxu0
      %v3482 = vadd.f32 0.0, %v3481
      %v3483 = vpop.f32.mrb[0].mxu0
      %3484 = vmatprep.mubr.f32.mxu0 %v2218
      %3485 = vmatmul.mubr.f32.gmra.mrb[0].mxu0 %v2182
      %v3486 = vpop.f32.mrb[0].mxu0
      %v3487 = vadd.f32 0.0, %v3486
      %v3488 = vpop.f32.mrb[0].mxu0
      %3489 = vmatprep.mubr.f32.mxu0 %v2219
      %3490 = vmatmul.mubr.f32.gmra.mrb[0].mxu0 %v2183
      %v3491 = vpop.f32.mrb[0].mxu0
      %v3492 = vadd.f32 0.0, %v3491
      %v3493 = vpop.f32.mrb[0].mxu0
      %3494 = vmatprep.mubr.f32.mxu0 %v2220
      %3495 = vmatmul.mubr.f32.gmra.mrb[0].mxu0 %v2184
      %v3496 = vpop.f32.mrb[0].mxu0
      %v3497 = vadd.f32 0.0, %v3496
      %v3498 = vpop.f32.mrb[0].mxu0
      %3499 = vmatprep.mubr.f32.mxu0 %v2221
      %3500 = vmatmul.mubr.f32.gmra.mrb[0].mxu0 %v2185
      %v3501 = vpop.f32.mrb[0].mxu0
      %v3502 = vadd.f32 0.0, %v3501
      %v3503 = vpop.f32.mrb[0].mxu0
      %3504 = vmatprep.mubr.f32.mxu0 %v2222
      %3505 = vmatmul.mubr.f32.gmra.mrb[0].mxu0 %v2186
      %v3506 = vpop.f32.mrb[0].mxu0
      %v3507 = vadd.f32 0.0, %v3506
      %v3508 = vpop.f32.mrb[0].mxu0
      %3509 = vmatprep.mubr.f32.mxu0 %v2223
      %3510 = vmatmul.mubr.f32.gmra.mrb[0].mxu0 %v2187
      %v3511 = vpop.f32.mrb[0].mxu0
      %v3512 = vadd.f32 0.0, %v3511
      %v3513 = vpop.f32.mrb[0].mxu0
      %3514 = vmatprep.mubr.f32.mxu0 %v2224
      %3515 = vmatmul.mubr.f32.gmra.mrb[0].mxu0 %v2188
      %v3516 = vpop.f32.mrb[0].mxu0
      %v3517 = vadd.f32 0.0, %v3516
      %v3518 = vpop.f32.mrb[0].mxu0
      %3519 = vmatprep.mubr.f32.mxu0 %v2225
      %3520 = vmatmul.mubr.f32.gmra.mrb[0].mxu0 %v2189
      %v3521 = vpop.f32.mrb[0].mxu0
      %v3522 = vadd.f32 0.0, %v3521
      %v3523 = vpop.f32.mrb[0].mxu0
      %3524 = vmatprep.mubr.f32.mxu0 %v2226
      %3525 = vmatmul.mubr.f32.gmra.mrb[0].mxu0 %v2190
      %v3526 = vpop.f32.mrb[0].mxu0
      %v3527 = vadd.f32 0.0, %v3526
      %v3528 = vpop.f32.mrb[0].mxu0
      %3529 = vmatprep.mubr.f32.mxu0 %v2227
      %3530 = vmatmul.mubr.f32.gmra.mrb[0].mxu0 %v2191
      %v3531 = vpop.f32.mrb[0].mxu0
      %v3532 = vadd.f32 0.0, %v3531
      %v3533 = vpop.f32.mrb[0].mxu0
      %3534 = vdwg.mxu0
      %3535 = vmatprep.subr.mxu0 0.0
      %3536 = vmatpush1.msra.mxu0 %v3294
      %3537 = vmatprep.subr.mxu0 0.0
      %3538 = vmatpush1.msra.mxu0 %v3295
      %3539 = vmatprep.subr.mxu0 0.0
      %3540 = vmatpush1.msra.mxu0 %v3296
      %3541 = vmatprep.subr.mxu0 0.0
      %3542 = vmatpush1.msra.mxu0 %v3297
      %3543 = vmatprep.subr.mxu0 0.0
      %3544 = vmatpush1.msra.mxu0 %v3298
      %3545 = vmatprep.subr.mxu0 0.0
      %3546 = vmatpush1.msra.mxu0 %v3299
      %3547 = vmatprep.subr.mxu0 0.0
      %3548 = vmatpush1.msra.mxu0 %v3300
      %3549 = vmatprep.subr.mxu0 0.0
      %3550 = vmatpush1.msra.mxu0 %v3301
      %3551 = vmatprep.subr.mxu0 0.0
      %3552 = vmatpush1.msra.mxu0 %v3302
      %3553 = vmatprep.subr.mxu0 0.0
      %3554 = vmatpush1.msra.mxu0 %v3303
      %3555 = vmatprep.subr.mxu0 0.0
      %3556 = vmatpush1.msra.mxu0 %v3304
      %3557 = vmatprep.subr.mxu0 0.0
      %3558 = vmatpush1.msra.mxu0 %v3305
      %3559 = vmatprep.subr.mxu0 0.0
      %3560 = vmatpush1.msra.mxu0 %v3306
      %3561 = vmatprep.subr.mxu0 0.0
      %3562 = vmatpush1.msra.mxu0 %v3307
      %3563 = vmatprep.subr.mxu0 0.0
      %3564 = vmatpush1.msra.mxu0 %v3308
      %3565 = vmatprep.subr.mxu0 0.0
      %3566 = vmatpush1.msra.mxu0 %v3309
      %3567 = vmatprep.subr.mxu0 0.0
      %3568 = vmatpush1.msra.mxu0 0.0
      %3569 = vmatprep.subr.mxu0 0.0
      %3570 = vmatpush1.msra.mxu0 0.0
      %3571 = vmatprep.subr.mxu0 0.0
      %3572 = vmatpush1.msra.mxu0 0.0
      %3573 = vmatprep.subr.mxu0 0.0
      %3574 = vmatpush1.msra.mxu0 0.0
      %3575 = vmatprep.subr.mxu0 0.0
      %3576 = vmatpush1.msra.mxu0 0.0
      %3577 = vmatprep.subr.mxu0 0.0
      %3578 = vmatpush1.msra.mxu0 0.0
      %3579 = vmatprep.subr.mxu0 0.0
      %3580 = vmatpush1.msra.mxu0 0.0
      %3581 = vmatprep.subr.mxu0 0.0
      %3582 = vmatpush1.msra.mxu0 0.0
      %3583 = vmatprep.subr.mxu0 0.0
      %3584 = vmatpush1.msra.mxu0 0.0
      %3585 = vmatprep.subr.mxu0 0.0
      %3586 = vmatpush1.msra.mxu0 0.0
      %3587 = vmatprep.subr.mxu0 0.0
      %3588 = vmatpush1.msra.mxu0 0.0
      %3589 = vmatprep.subr.mxu0 0.0
      %3590 = vmatpush1.msra.mxu0 0.0
      %3591 = vmatprep.subr.mxu0 0.0
      %3592 = vmatpush1.msra.mxu0 0.0
      %3593 = vmatprep.subr.mxu0 0.0
      %3594 = vmatpush1.msra.mxu0 0.0
      %3595 = vmatprep.subr.mxu0 0.0
      %3596 = vmatpush1.msra.mxu0 0.0
      %3597 = vmatprep.subr.mxu0 0.0
      %3598 = vmatpush1.msra.mxu0 0.0
      %3599 = vmatprep.mubr.f32.mxu0 0.0
      %3600 = vmatmul.mubr.f32.gmra.mrb[0].mxu0 %v2232
      %v3601 = vpop.f32.mrb[0].mxu0
      %v3602 = vadd.f32 %v3377, %v3601
      %v3603 = vpop.f32.mrb[0].mxu0
      %3604 = vmatprep.mubr.f32.mxu0 0.0
      %3605 = vmatmul.mubr.f32.gmra.mrb[0].mxu0 %v2233
      %v3606 = vpop.f32.mrb[0].mxu0
      %v3607 = vadd.f32 %v3382, %v3606
      %v3608 = vpop.f32.mrb[0].mxu0
      %3609 = vmatprep.mubr.f32.mxu0 0.0
      %3610 = vmatmul.mubr.f32.gmra.mrb[0].mxu0 %v2234
      %v3611 = vpop.f32.mrb[0].mxu0
      %v3612 = vadd.f32 %v3387, %v3611
      %v3613 = vpop.f32.mrb[0].mxu0
      %3614 = vmatprep.mubr.f32.mxu0 0.0
      %3615 = vmatmul.mubr.f32.gmra.mrb[0].mxu0 %v2235
      %v3616 = vpop.f32.mrb[0].mxu0
      %v3617 = vadd.f32 %v3392, %v3616
      %v3618 = vpop.f32.mrb[0].mxu0
      %3619 = vmatprep.mubr.f32.mxu0 0.0
      %3620 = vmatmul.mubr.f32.gmra.mrb[0].mxu0 %v2236
      %v3621 = vpop.f32.mrb[0].mxu0
      %v3622 = vadd.f32 %v3397, %v3621
      %v3623 = vpop.f32.mrb[0].mxu0
      %3624 = vmatprep.mubr.f32.mxu0 0.0
      %3625 = vmatmul.mubr.f32.gmra.mrb[0].mxu0 %v2237
      %v3626 = vpop.f32.mrb[0].mxu0
      %v3627 = vadd.f32 %v3402, %v3626
      %v3628 = vpop.f32.mrb[0].mxu0
      %3629 = vmatprep.mubr.f32.mxu0 0.0
      %3630 = vmatmul.mubr.f32.gmra.mrb[0].mxu0 %v2238
      %v3631 = vpop.f32.mrb[0].mxu0
      %v3632 = vadd.f32 %v3407, %v3631
      %v3633 = vpop.f32.mrb[0].mxu0
      %3634 = vmatprep.mubr.f32.mxu0 0.0
      %3635 = vmatmul.mubr.f32.gmra.mrb[0].mxu0 %v2239
      %v3636 = vpop.f32.mrb[0].mxu0
      %v3637 = vadd.f32 %v3412, %v3636
      %v3638 = vpop.f32.mrb[0].mxu0
      %3639 = vmatprep.mubr.f32.mxu0 0.0
      %3640 = vmatmul.mubr.f32.gmra.mrb[0].mxu0 %v2240
      %v3641 = vpop.f32.mrb[0].mxu0
      %v3642 = vadd.f32 %v3417, %v3641
      %v3643 = vpop.f32.mrb[0].mxu0
      %3644 = vmatprep.mubr.f32.mxu0 0.0
      %3645 = vmatmul.mubr.f32.gmra.mrb[0].mxu0 %v2241
      %v3646 = vpop.f32.mrb[0].mxu0
      %v3647 = vadd.f32 %v3422, %v3646
      %v3648 = vpop.f32.mrb[0].mxu0
      %3649 = vmatprep.mubr.f32.mxu0 0.0
      %3650 = vmatmul.mubr.f32.gmra.mrb[0].mxu0 %v2242
      %v3651 = vpop.f32.mrb[0].mxu0
      %v3652 = vadd.f32 %v3427, %v3651
      %v3653 = vpop.f32.mrb[0].mxu0
      %3654 = vmatprep.mubr.f32.mxu0 0.0
      %3655 = vmatmul.mubr.f32.gmra.mrb[0].mxu0 %v2243
      %v3656 = vpop.f32.mrb[0].mxu0
      %v3657 = vadd.f32 %v3432, %v3656
      %v3658 = vpop.f32.mrb[0].mxu0
      %3659 = vmatprep.mubr.f32.mxu0 0.0
      %3660 = vmatmul.mubr.f32.gmra.mrb[0].mxu0 %v2244
      %v3661 = vpop.f32.mrb[0].mxu0
      %v3662 = vadd.f32 %v3437, %v3661
      %v3663 = vpop.f32.mrb[0].mxu0
      %3664 = vmatprep.mubr.f32.mxu0 0.0
      %3665 = vmatmul.mubr.f32.gmra.mrb[0].mxu0 %v2245
      %v3666 = vpop.f32.mrb[0].mxu0
      %v3667 = vadd.f32 %v3442, %v3666
      %v3668 = vpop.f32.mrb[0].mxu0
      %3669 = vmatprep.mubr.f32.mxu0 0.0
      %3670 = vmatmul.mubr.f32.gmra.mrb[0].mxu0 %v2246
      %v3671 = vpop.f32.mrb[0].mxu0
      %v3672 = vadd.f32 %v3447, %v3671
      %v3673 = vpop.f32.mrb[0].mxu0
      %3674 = vmatprep.mubr.f32.mxu0 0.0
      %3675 = vmatmul.mubr.f32.gmra.mrb[0].mxu0 %v2247
      %v3676 = vpop.f32.mrb[0].mxu0
      %v3677 = vadd.f32 %v3452, %v3676
      %v3678 = vpop.f32.mrb[0].mxu0
      %3679 = vmatprep.mubr.f32.mxu0 0.0
      %3680 = vmatmul.mubr.f32.gmra.mrb[0].mxu0 %v2248
      %v3681 = vpop.f32.mrb[0].mxu0
      %v3682 = vadd.f32 %v3457, %v3681
      %v3683 = vpop.f32.mrb[0].mxu0
      %3684 = vmatprep.mubr.f32.mxu0 0.0
      %3685 = vmatmul.mubr.f32.gmra.mrb[0].mxu0 %v2249
      %v3686 = vpop.f32.mrb[0].mxu0
      %v3687 = vadd.f32 %v3462, %v3686
      %v3688 = vpop.f32.mrb[0].mxu0
      %3689 = vmatprep.mubr.f32.mxu0 0.0
      %3690 = vmatmul.mubr.f32.gmra.mrb[0].mxu0 %v2250
      %v3691 = vpop.f32.mrb[0].mxu0
      %v3692 = vadd.f32 %v3467, %v3691
      %v3693 = vpop.f32.mrb[0].mxu0
      %3694 = vmatprep.mubr.f32.mxu0 0.0
      %3695 = vmatmul.mubr.f32.gmra.mrb[0].mxu0 %v2251
      %v3696 = vpop.f32.mrb[0].mxu0
      %v3697 = vadd.f32 %v3472, %v3696
      %v3698 = vpop.f32.mrb[0].mxu0
      %3699 = vmatprep.mubr.f32.mxu0 0.0
      %3700 = vmatmul.mubr.f32.gmra.mrb[0].mxu0 %v2252
      %v3701 = vpop.f32.mrb[0].mxu0
      %v3702 = vadd.f32 %v3477, %v3701
      %v3703 = vpop.f32.mrb[0].mxu0
      %3704 = vmatprep.mubr.f32.mxu0 0.0
      %3705 = vmatmul.mubr.f32.gmra.mrb[0].mxu0 %v2253
      %v3706 = vpop.f32.mrb[0].mxu0
      %v3707 = vadd.f32 %v3482, %v3706
      %v3708 = vpop.f32.mrb[0].mxu0
      %3709 = vmatprep.mubr.f32.mxu0 0.0
      %3710 = vmatmul.mubr.f32.gmra.mrb[0].mxu0 %v2254
      %v3711 = vpop.f32.mrb[0].mxu0
      %v3712 = vadd.f32 %v3487, %v3711
      %v3713 = vpop.f32.mrb[0].mxu0
      %3714 = vmatprep.mubr.f32.mxu0 0.0
      %3715 = vmatmul.mubr.f32.gmra.mrb[0].mxu0 %v2255
      %v3716 = vpop.f32.mrb[0].mxu0
      %v3717 = vadd.f32 %v3492, %v3716
      %v3718 = vpop.f32.mrb[0].mxu0
      %3719 = vmatprep.mubr.f32.mxu0 0.0
      %3720 = vmatmul.mubr.f32.gmra.mrb[0].mxu0 %v2256
      %v3721 = vpop.f32.mrb[0].mxu0
      %v3722 = vadd.f32 %v3497, %v3721
      %v3723 = vpop.f32.mrb[0].mxu0
      %3724 = vmatprep.mubr.f32.mxu0 0.0
      %3725 = vmatmul.mubr.f32.gmra.mrb[0].mxu0 %v2257
      %v3726 = vpop.f32.mrb[0].mxu0
      %v3727 = vadd.f32 %v3502, %v3726
      %v3728 = vpop.f32.mrb[0].mxu0
      %3729 = vmatprep.mubr.f32.mxu0 0.0
      %3730 = vmatmul.mubr.f32.gmra.mrb[0].mxu0 %v2258
      %v3731 = vpop.f32.mrb[0].mxu0
      %v3732 = vadd.f32 %v3507, %v3731
      %v3733 = vpop.f32.mrb[0].mxu0
      %3734 = vmatprep.mubr.f32.mxu0 0.0
      %3735 = vmatmul.mubr.f32.gmra.mrb[0].mxu0 %v2259
      %v3736 = vpop.f32.mrb[0].mxu0
      %v3737 = vadd.f32 %v3512, %v3736
      %v3738 = vpop.f32.mrb[0].mxu0
      %3739 = vmatprep.mubr.f32.mxu0 0.0
      %3740 = vmatmul.mubr.f32.gmra.mrb[0].mxu0 %v2260
      %v3741 = vpop.f32.mrb[0].mxu0
      %v3742 = vadd.f32 %v3517, %v3741
      %v3743 = vpop.f32.mrb[0].mxu0
      %3744 = vmatprep.mubr.f32.mxu0 0.0
      %3745 = vmatmul.mubr.f32.gmra.mrb[0].mxu0 %v2261
      %v3746 = vpop.f32.mrb[0].mxu0
      %v3747 = vadd.f32 %v3522, %v3746
      %v3748 = vpop.f32.mrb[0].mxu0
      %3749 = vmatprep.mubr.f32.mxu0 0.0
      %3750 = vmatmul.mubr.f32.gmra.mrb[0].mxu0 %v2262
      %v3751 = vpop.f32.mrb[0].mxu0
      %v3752 = vadd.f32 %v3527, %v3751
      %v3753 = vpop.f32.mrb[0].mxu0
      %3754 = vmatprep.mubr.f32.mxu0 0.0
      %3755 = vmatmul.mubr.f32.gmra.mrb[0].mxu0 %v2263
      %v3756 = vpop.f32.mrb[0].mxu0
      %v3757 = vadd.f32 %v3532, %v3756
      %v3758 = vpop.f32.mrb[0].mxu0
      %3759 = vdwg.mxu0
      %v3760 = vadd.f32 %v3103, %v3602
      %v3761 = vadd.f32 %v3108, %v3607
      %v3762 = vadd.f32 %v3113, %v3612
      %v3763 = vadd.f32 %v3118, %v3617
      %v3764 = vadd.f32 %v3123, %v3622
      %v3765 = vadd.f32 %v3128, %v3627
      %v3766 = vadd.f32 %v3133, %v3632
      %v3767 = vadd.f32 %v3138, %v3637
      %v3768 = vadd.f32 %v3143, %v3642
      %v3769 = vadd.f32 %v3148, %v3647
      %v3770 = vadd.f32 %v3153, %v3652
      %v3771 = vadd.f32 %v3158, %v3657
      %v3772 = vadd.f32 %v3163, %v3662
      %v3773 = vadd.f32 %v3168, %v3667
      %v3774 = vadd.f32 %v3173, %v3672
      %v3775 = vadd.f32 %v3178, %v3677
      %v3776 = vadd.f32 %v3183, %v3682
      %v3777 = vadd.f32 %v3188, %v3687
      %v3778 = vadd.f32 %v3193, %v3692
      %v3779 = vadd.f32 %v3198, %v3697
      %v3780 = vadd.f32 %v3203, %v3702
      %v3781 = vadd.f32 %v3208, %v3707
      %v3782 = vadd.f32 %v3213, %v3712
      %v3783 = vadd.f32 %v3218, %v3717
      %v3784 = vadd.f32 %v3223, %v3722
      %v3785 = vadd.f32 %v3228, %v3727
      %v3786 = vadd.f32 %v3233, %v3732
      %v3787 = vadd.f32 %v3238, %v3737
      %v3788 = vadd.f32 %v3243, %v3742
      %v3789 = vadd.f32 %v3248, %v3747
      %v3790 = vadd.f32 %v3253, %v3752
      %v3791 = vadd.f32 %v3258, %v3757
      %v3792 = vld [vmem:[%s4] sm:$0x1]
      %v3794 = vlaneseq
      %v3795 = vshrl.u32 %v3794, 7
      %v3796 = vsub.s32 0, %v3795
      %v3797 = vrot.slane %v3792, %v3796
      %v3799 = vadd.f32 %v3760, %v3797
      %v3800 = vadd.f32 %v3761, %v3797
      %v3801 = vadd.f32 %v3762, %v3797
      %v3802 = vadd.f32 %v3763, %v3797
      %v3803 = vadd.f32 %v3764, %v3797
      %v3804 = vadd.f32 %v3765, %v3797
      %v3805 = vadd.f32 %v3766, %v3797
      %v3806 = vadd.f32 %v3767, %v3797
      %v3807 = vadd.f32 %v3768, %v3797
      %v3808 = vadd.f32 %v3769, %v3797
      %v3809 = vadd.f32 %v3770, %v3797
      %v3810 = vadd.f32 %v3771, %v3797
      %v3811 = vadd.f32 %v3772, %v3797
      %v3812 = vadd.f32 %v3773, %v3797
      %v3813 = vadd.f32 %v3774, %v3797
      %v3814 = vadd.f32 %v3775, %v3797
      %v3815 = vadd.f32 %v3776, %v3797
      %v3816 = vadd.f32 %v3777, %v3797
      %v3817 = vadd.f32 %v3778, %v3797
      %v3818 = vadd.f32 %v3779, %v3797
      %v3819 = vadd.f32 %v3780, %v3797
      %v3820 = vadd.f32 %v3781, %v3797
      %v3821 = vadd.f32 %v3782, %v3797
      %v3822 = vadd.f32 %v3783, %v3797
      %v3823 = vadd.f32 %v3784, %v3797
      %v3824 = vadd.f32 %v3785, %v3797
      %v3825 = vadd.f32 %v3786, %v3797
      %v3826 = vadd.f32 %v3787, %v3797
      %v3827 = vadd.f32 %v3788, %v3797
      %v3828 = vadd.f32 %v3789, %v3797
      %v3829 = vadd.f32 %v3790, %v3797
      %v3830 = vadd.f32 %v3791, %v3797
      %v3831 = vmax.f32 %v3799, 0.0
      %v3832 = vmax.f32 %v3800, 0.0
      %v3833 = vmax.f32 %v3801, 0.0
      %v3834 = vmax.f32 %v3802, 0.0
      %v3835 = vmax.f32 %v3803, 0.0
      %v3836 = vmax.f32 %v3804, 0.0
      %v3837 = vmax.f32 %v3805, 0.0
      %v3838 = vmax.f32 %v3806, 0.0
      %v3839 = vmax.f32 %v3807, 0.0
      %v3840 = vmax.f32 %v3808, 0.0
      %v3841 = vmax.f32 %v3809, 0.0
      %v3842 = vmax.f32 %v3810, 0.0
      %v3843 = vmax.f32 %v3811, 0.0
      %v3844 = vmax.f32 %v3812, 0.0
      %v3845 = vmax.f32 %v3813, 0.0
      %v3846 = vmax.f32 %v3814, 0.0
      %v3847 = vmax.f32 %v3815, 0.0
      %v3848 = vmax.f32 %v3816, 0.0
      %v3849 = vmax.f32 %v3817, 0.0
      %v3850 = vmax.f32 %v3818, 0.0
      %v3851 = vmax.f32 %v3819, 0.0
      %v3852 = vmax.f32 %v3820, 0.0
      %v3853 = vmax.f32 %v3821, 0.0
      %v3854 = vmax.f32 %v3822, 0.0
      %v3855 = vmax.f32 %v3823, 0.0
      %v3856 = vmax.f32 %v3824, 0.0
      %v3857 = vmax.f32 %v3825, 0.0
      %v3858 = vmax.f32 %v3826, 0.0
      %v3859 = vmax.f32 %v3827, 0.0
      %v3860 = vmax.f32 %v3828, 0.0
      %v3861 = vmax.f32 %v3829, 0.0
      %v3862 = vmax.f32 %v3830, 0.0
      %3863 = vst [vmem:[%s264] sm:$0xff] %v3831
      %3864 = vst [vmem:[%s264 + $0x8] sm:$0xff] %v3832
      %3865 = vst [vmem:[%s264 + $0x10] sm:$0xff] %v3833
      %3866 = vst [vmem:[%s264 + $0x18] sm:$0xff] %v3834
      %3867 = vst [vmem:[%s264 + $0x20] sm:$0xff] %v3835
      %3868 = vst [vmem:[%s264 + $0x28] sm:$0xff] %v3836
      %3869 = vst [vmem:[%s264 + $0x30] sm:$0xff] %v3837
      %3870 = vst [vmem:[%s264 + $0x38] sm:$0xff] %v3838
      %3871 = vst [vmem:[%s264 + $0x40] sm:$0xff] %v3839
      %3872 = vst [vmem:[%s264 + $0x48] sm:$0xff] %v3840
      %3873 = vst [vmem:[%s264 + $0x50] sm:$0xff] %v3841
      %3874 = vst [vmem:[%s264 + $0x58] sm:$0xff] %v3842
      %3875 = vst [vmem:[%s264 + $0x60] sm:$0xff] %v3843
      %3876 = vst [vmem:[%s264 + $0x68] sm:$0xff] %v3844
      %3877 = vst [vmem:[%s264 + $0x70] sm:$0xff] %v3845
      %3878 = vst [vmem:[%s264 + $0x78] sm:$0xff] %v3846
      %3879 = vst [vmem:[%s264 + $0x80] sm:$0xff] %v3847
      %3880 = vst [vmem:[%s264 + $0x88] sm:$0xff] %v3848
      %3881 = vst [vmem:[%s264 + $0x90] sm:$0xff] %v3849
      %3882 = vst [vmem:[%s264 + $0x98] sm:$0xff] %v3850
      %3883 = vst [vmem:[%s264 + $0xa0] sm:$0xff] %v3851
      %3884 = vst [vmem:[%s264 + $0xa8] sm:$0xff] %v3852
      %3885 = vst [vmem:[%s264 + $0xb0] sm:$0xff] %v3853
      %3886 = vst [vmem:[%s264 + $0xb8] sm:$0xff] %v3854
      %3887 = vst [vmem:[%s264 + $0xc0] sm:$0xff] %v3855
      %3888 = vst [vmem:[%s264 + $0xc8] sm:$0xff] %v3856
      %3889 = vst [vmem:[%s264 + $0xd0] sm:$0xff] %v3857
      %3890 = vst [vmem:[%s264 + $0xd8] sm:$0xff] %v3858
      %3891 = vst [vmem:[%s264 + $0xe0] sm:$0xff] %v3859
      %3892 = vst [vmem:[%s264 + $0xe8] sm:$0xff] %v3860
      %3893 = vst [vmem:[%s264 + $0xf0] sm:$0xff] %v3861
      %3894 = vst [vmem:[%s264 + $0xf8] sm:$0xff] %v3862
      %v3895 = vmax.f32 %v3831, %v3833
      %v3896 = vmax.f32 %v3832, %v3834
      %v3897 = vmax.f32 %v3835, %v3837
      %v3898 = vmax.f32 %v3836, %v3838
      %v3899 = vmax.f32 %v3839, %v3841
      %v3900 = vmax.f32 %v3840, %v3842
      %v3901 = vmax.f32 %v3843, %v3845
      %v3902 = vmax.f32 %v3844, %v3846
      %v3903 = vmax.f32 %v3847, %v3849
      %v3904 = vmax.f32 %v3848, %v3850
      %v3905 = vmax.f32 %v3851, %v3853
      %v3906 = vmax.f32 %v3852, %v3854
      %v3907 = vmax.f32 %v3855, %v3857
      %v3908 = vmax.f32 %v3856, %v3858
      %v3909 = vmax.f32 %v3859, %v3861
      %v3910 = vmax.f32 %v3860, %v3862
      %v3927 = vcombine.high %v3895, %v3895
      %v3929 = vunpack.c.l.s4 1983009808
      %v3930 = vunpack.c.0.s8 %v3929
      %v3931 = vlaneseq
      %v3932 = vshrl.u32 %v3931, 7
      %v3933 = vsub.s32 %v3930, %v3932
      %v3934 = vrot.slane %v3895, %v3933
      %v3936 = vunpack.c.l.s4 1983009808
      %v3937 = vunpack.c.0.s8 %v3936
      %v3938 = vlaneseq
      %v3939 = vshrl.u32 %v3938, 7
      %v3940 = vsub.s32 %v3937, %v3939
      %v3941 = vrot.slane %v3927, %v3940
      %v3942 = vcombine.high %v3934, %v3934
      %v3943 = vcombine.high %v3941, %v3941
      %v3944 = vcombine.high %v3896, %v3896
      %v3946 = vunpack.c.l.s4 1983009808
      %v3947 = vunpack.c.0.s8 %v3946
      %v3948 = vlaneseq
      %v3949 = vshrl.u32 %v3948, 7
      %v3950 = vsub.s32 %v3947, %v3949
      %v3951 = vrot.slane %v3896, %v3950
      %v3953 = vunpack.c.l.s4 1983009808
      %v3954 = vunpack.c.0.s8 %v3953
      %v3955 = vlaneseq
      %v3956 = vshrl.u32 %v3955, 7
      %v3957 = vsub.s32 %v3954, %v3956
      %v3958 = vrot.slane %v3944, %v3957
      %v3959 = vcombine.high %v3951, %v3951
      %v3960 = vcombine.high %v3958, %v3958
      %v3961 = vcombine.high %v3897, %v3897
      %v3963 = vunpack.c.l.s4 1983009808
      %v3964 = vunpack.c.0.s8 %v3963
      %v3965 = vlaneseq
      %v3966 = vshrl.u32 %v3965, 7
      %v3967 = vsub.s32 %v3964, %v3966
      %v3968 = vrot.slane %v3897, %v3967
      %v3970 = vunpack.c.l.s4 1983009808
      %v3971 = vunpack.c.0.s8 %v3970
      %v3972 = vlaneseq
      %v3973 = vshrl.u32 %v3972, 7
      %v3974 = vsub.s32 %v3971, %v3973
      %v3975 = vrot.slane %v3961, %v3974
      %v3976 = vcombine.high %v3968, %v3968
      %v3977 = vcombine.high %v3975, %v3975
      %v3978 = vcombine.high %v3898, %v3898
      %v3980 = vunpack.c.l.s4 1983009808
      %v3981 = vunpack.c.0.s8 %v3980
      %v3982 = vlaneseq
      %v3983 = vshrl.u32 %v3982, 7
      %v3984 = vsub.s32 %v3981, %v3983
      %v3985 = vrot.slane %v3898, %v3984
      %v3987 = vunpack.c.l.s4 1983009808
      %v3988 = vunpack.c.0.s8 %v3987
      %v3989 = vlaneseq
      %v3990 = vshrl.u32 %v3989, 7
      %v3991 = vsub.s32 %v3988, %v3990
      %v3992 = vrot.slane %v3978, %v3991
      %v3993 = vcombine.high %v3985, %v3985
      %v3994 = vcombine.high %v3992, %v3992
      %v3995 = vcombine.high %v3899, %v3899
      %v3997 = vunpack.c.l.s4 1983009808
      %v3998 = vunpack.c.0.s8 %v3997
      %v3999 = vlaneseq
      %v4000 = vshrl.u32 %v3999, 7
      %v4001 = vsub.s32 %v3998, %v4000
      %v4002 = vrot.slane %v3899, %v4001
      %v4004 = vunpack.c.l.s4 1983009808
      %v4005 = vunpack.c.0.s8 %v4004
      %v4006 = vlaneseq
      %v4007 = vshrl.u32 %v4006, 7
      %v4008 = vsub.s32 %v4005, %v4007
      %v4009 = vrot.slane %v3995, %v4008
      %v4010 = vcombine.high %v4002, %v4002
      %v4011 = vcombine.high %v4009, %v4009
      %v4012 = vcombine.high %v3900, %v3900
      %v4014 = vunpack.c.l.s4 1983009808
      %v4015 = vunpack.c.0.s8 %v4014
      %v4016 = vlaneseq
      %v4017 = vshrl.u32 %v4016, 7
      %v4018 = vsub.s32 %v4015, %v4017
      %v4019 = vrot.slane %v3900, %v4018
      %v4021 = vunpack.c.l.s4 1983009808
      %v4022 = vunpack.c.0.s8 %v4021
      %v4023 = vlaneseq
      %v4024 = vshrl.u32 %v4023, 7
      %v4025 = vsub.s32 %v4022, %v4024
      %v4026 = vrot.slane %v4012, %v4025
      %v4027 = vcombine.high %v4019, %v4019
      %v4028 = vcombine.high %v4026, %v4026
      %v4029 = vcombine.high %v3901, %v3901
      %v4031 = vunpack.c.l.s4 1983009808
      %v4032 = vunpack.c.0.s8 %v4031
      %v4033 = vlaneseq
      %v4034 = vshrl.u32 %v4033, 7
      %v4035 = vsub.s32 %v4032, %v4034
      %v4036 = vrot.slane %v3901, %v4035
      %v4038 = vunpack.c.l.s4 1983009808
      %v4039 = vunpack.c.0.s8 %v4038
      %v4040 = vlaneseq
      %v4041 = vshrl.u32 %v4040, 7
      %v4042 = vsub.s32 %v4039, %v4041
      %v4043 = vrot.slane %v4029, %v4042
      %v4044 = vcombine.high %v4036, %v4036
      %v4045 = vcombine.high %v4043, %v4043
      %v4046 = vcombine.high %v3902, %v3902
      %v4048 = vunpack.c.l.s4 1983009808
      %v4049 = vunpack.c.0.s8 %v4048
      %v4050 = vlaneseq
      %v4051 = vshrl.u32 %v4050, 7
      %v4052 = vsub.s32 %v4049, %v4051
      %v4053 = vrot.slane %v3902, %v4052
      %v4055 = vunpack.c.l.s4 1983009808
      %v4056 = vunpack.c.0.s8 %v4055
      %v4057 = vlaneseq
      %v4058 = vshrl.u32 %v4057, 7
      %v4059 = vsub.s32 %v4056, %v4058
      %v4060 = vrot.slane %v4046, %v4059
      %v4061 = vcombine.high %v4053, %v4053
      %v4062 = vcombine.high %v4060, %v4060
      %v4063 = vcombine.high %v3903, %v3903
      %v4065 = vunpack.c.l.s4 1983009808
      %v4066 = vunpack.c.0.s8 %v4065
      %v4067 = vlaneseq
      %v4068 = vshrl.u32 %v4067, 7
      %v4069 = vsub.s32 %v4066, %v4068
      %v4070 = vrot.slane %v3903, %v4069
      %v4072 = vunpack.c.l.s4 1983009808
      %v4073 = vunpack.c.0.s8 %v4072
      %v4074 = vlaneseq
      %v4075 = vshrl.u32 %v4074, 7
      %v4076 = vsub.s32 %v4073, %v4075
      %v4077 = vrot.slane %v4063, %v4076
      %v4078 = vcombine.high %v4070, %v4070
      %v4079 = vcombine.high %v4077, %v4077
      %v4080 = vcombine.high %v3904, %v3904
      %v4082 = vunpack.c.l.s4 1983009808
      %v4083 = vunpack.c.0.s8 %v4082
      %v4084 = vlaneseq
      %v4085 = vshrl.u32 %v4084, 7
      %v4086 = vsub.s32 %v4083, %v4085
      %v4087 = vrot.slane %v3904, %v4086
      %v4089 = vunpack.c.l.s4 1983009808
      %v4090 = vunpack.c.0.s8 %v4089
      %v4091 = vlaneseq
      %v4092 = vshrl.u32 %v4091, 7
      %v4093 = vsub.s32 %v4090, %v4092
      %v4094 = vrot.slane %v4080, %v4093
      %v4095 = vcombine.high %v4087, %v4087
      %v4096 = vcombine.high %v4094, %v4094
      %v4097 = vcombine.high %v3905, %v3905
      %v4099 = vunpack.c.l.s4 1983009808
      %v4100 = vunpack.c.0.s8 %v4099
      %v4101 = vlaneseq
      %v4102 = vshrl.u32 %v4101, 7
      %v4103 = vsub.s32 %v4100, %v4102
      %v4104 = vrot.slane %v3905, %v4103
      %v4106 = vunpack.c.l.s4 1983009808
      %v4107 = vunpack.c.0.s8 %v4106
      %v4108 = vlaneseq
      %v4109 = vshrl.u32 %v4108, 7
      %v4110 = vsub.s32 %v4107, %v4109
      %v4111 = vrot.slane %v4097, %v4110
      %v4112 = vcombine.high %v4104, %v4104
      %v4113 = vcombine.high %v4111, %v4111
      %v4114 = vcombine.high %v3906, %v3906
      %v4116 = vunpack.c.l.s4 1983009808
      %v4117 = vunpack.c.0.s8 %v4116
      %v4118 = vlaneseq
      %v4119 = vshrl.u32 %v4118, 7
      %v4120 = vsub.s32 %v4117, %v4119
      %v4121 = vrot.slane %v3906, %v4120
      %v4123 = vunpack.c.l.s4 1983009808
      %v4124 = vunpack.c.0.s8 %v4123
      %v4125 = vlaneseq
      %v4126 = vshrl.u32 %v4125, 7
      %v4127 = vsub.s32 %v4124, %v4126
      %v4128 = vrot.slane %v4114, %v4127
      %v4129 = vcombine.high %v4121, %v4121
      %v4130 = vcombine.high %v4128, %v4128
      %v4131 = vcombine.high %v3907, %v3907
      %v4133 = vunpack.c.l.s4 1983009808
      %v4134 = vunpack.c.0.s8 %v4133
      %v4135 = vlaneseq
      %v4136 = vshrl.u32 %v4135, 7
      %v4137 = vsub.s32 %v4134, %v4136
      %v4138 = vrot.slane %v3907, %v4137
      %v4140 = vunpack.c.l.s4 1983009808
      %v4141 = vunpack.c.0.s8 %v4140
      %v4142 = vlaneseq
      %v4143 = vshrl.u32 %v4142, 7
      %v4144 = vsub.s32 %v4141, %v4143
      %v4145 = vrot.slane %v4131, %v4144
      %v4146 = vcombine.high %v4138, %v4138
      %v4147 = vcombine.high %v4145, %v4145
      %v4148 = vcombine.high %v3908, %v3908
      %v4150 = vunpack.c.l.s4 1983009808
      %v4151 = vunpack.c.0.s8 %v4150
      %v4152 = vlaneseq
      %v4153 = vshrl.u32 %v4152, 7
      %v4154 = vsub.s32 %v4151, %v4153
      %v4155 = vrot.slane %v3908, %v4154
      %v4157 = vunpack.c.l.s4 1983009808
      %v4158 = vunpack.c.0.s8 %v4157
      %v4159 = vlaneseq
      %v4160 = vshrl.u32 %v4159, 7
      %v4161 = vsub.s32 %v4158, %v4160
      %v4162 = vrot.slane %v4148, %v4161
      %v4163 = vcombine.high %v4155, %v4155
      %v4164 = vcombine.high %v4162, %v4162
      %v4165 = vcombine.high %v3909, %v3909
      %v4167 = vunpack.c.l.s4 1983009808
      %v4168 = vunpack.c.0.s8 %v4167
      %v4169 = vlaneseq
      %v4170 = vshrl.u32 %v4169, 7
      %v4171 = vsub.s32 %v4168, %v4170
      %v4172 = vrot.slane %v3909, %v4171
      %v4174 = vunpack.c.l.s4 1983009808
      %v4175 = vunpack.c.0.s8 %v4174
      %v4176 = vlaneseq
      %v4177 = vshrl.u32 %v4176, 7
      %v4178 = vsub.s32 %v4175, %v4177
      %v4179 = vrot.slane %v4165, %v4178
      %v4180 = vcombine.high %v4172, %v4172
      %v4181 = vcombine.high %v4179, %v4179
      %v4182 = vcombine.high %v3910, %v3910
      %v4184 = vunpack.c.l.s4 1983009808
      %v4185 = vunpack.c.0.s8 %v4184
      %v4186 = vlaneseq
      %v4187 = vshrl.u32 %v4186, 7
      %v4188 = vsub.s32 %v4185, %v4187
      %v4189 = vrot.slane %v3910, %v4188
      %v4191 = vunpack.c.l.s4 1983009808
      %v4192 = vunpack.c.0.s8 %v4191
      %v4193 = vlaneseq
      %v4194 = vshrl.u32 %v4193, 7
      %v4195 = vsub.s32 %v4192, %v4194
      %v4196 = vrot.slane %v4182, %v4195
      %v4197 = vcombine.high %v4189, %v4189
      %v4198 = vcombine.high %v4196, %v4196
      %v4263 = vrot.slane %v3934, 7
      %v4264 = vrot.slane %v4263, 2
      %v4265 = vrot.slane %v3942, 7
      %v4266 = vrot.slane %v4265, 2
      %v4267 = vrot.slane %v3941, 7
      %v4268 = vrot.slane %v4267, 2
      %v4269 = vrot.slane %v3943, 7
      %v4270 = vrot.slane %v4269, 2
      %v4271 = vrot.slane %v3951, 7
      %v4272 = vrot.slane %v4271, 2
      %v4273 = vrot.slane %v3959, 7
      %v4274 = vrot.slane %v4273, 2
      %v4275 = vrot.slane %v3958, 7
      %v4276 = vrot.slane %v4275, 2
      %v4277 = vrot.slane %v3960, 7
      %v4278 = vrot.slane %v4277, 2
      %v4279 = vrot.slane %v3968, 7
      %v4280 = vrot.slane %v4279, 2
      %v4281 = vrot.slane %v3976, 7
      %v4282 = vrot.slane %v4281, 2
      %v4283 = vrot.slane %v3975, 7
      %v4284 = vrot.slane %v4283, 2
      %v4285 = vrot.slane %v3977, 7
      %v4286 = vrot.slane %v4285, 2
      %v4287 = vrot.slane %v3985, 7
      %v4288 = vrot.slane %v4287, 2
      %v4289 = vrot.slane %v3993, 7
      %v4290 = vrot.slane %v4289, 2
      %v4291 = vrot.slane %v3992, 7
      %v4292 = vrot.slane %v4291, 2
      %v4293 = vrot.slane %v3994, 7
      %v4294 = vrot.slane %v4293, 2
      %v4295 = vrot.slane %v4002, 7
      %v4296 = vrot.slane %v4295, 2
      %v4297 = vrot.slane %v4010, 7
      %v4298 = vrot.slane %v4297, 2
      %v4299 = vrot.slane %v4009, 7
      %v4300 = vrot.slane %v4299, 2
      %v4301 = vrot.slane %v4011, 7
      %v4302 = vrot.slane %v4301, 2
      %v4303 = vrot.slane %v4019, 7
      %v4304 = vrot.slane %v4303, 2
      %v4305 = vrot.slane %v4027, 7
      %v4306 = vrot.slane %v4305, 2
      %v4307 = vrot.slane %v4026, 7
      %v4308 = vrot.slane %v4307, 2
      %v4309 = vrot.slane %v4028, 7
      %v4310 = vrot.slane %v4309, 2
      %v4311 = vrot.slane %v4036, 7
      %v4312 = vrot.slane %v4311, 2
      %v4313 = vrot.slane %v4044, 7
      %v4314 = vrot.slane %v4313, 2
      %v4315 = vrot.slane %v4043, 7
      %v4316 = vrot.slane %v4315, 2
      %v4317 = vrot.slane %v4045, 7
      %v4318 = vrot.slane %v4317, 2
      %v4319 = vrot.slane %v4053, 7
      %v4320 = vrot.slane %v4319, 2
      %v4321 = vrot.slane %v4061, 7
      %v4322 = vrot.slane %v4321, 2
      %v4323 = vrot.slane %v4060, 7
      %v4324 = vrot.slane %v4323, 2
      %v4325 = vrot.slane %v4062, 7
      %v4326 = vrot.slane %v4325, 2
      %v4327 = vrot.slane %v4070, 7
      %v4328 = vrot.slane %v4327, 2
      %v4329 = vrot.slane %v4078, 7
      %v4330 = vrot.slane %v4329, 2
      %v4331 = vrot.slane %v4077, 7
      %v4332 = vrot.slane %v4331, 2
      %v4333 = vrot.slane %v4079, 7
      %v4334 = vrot.slane %v4333, 2
      %v4335 = vrot.slane %v4087, 7
      %v4336 = vrot.slane %v4335, 2
      %v4337 = vrot.slane %v4095, 7
      %v4338 = vrot.slane %v4337, 2
      %v4339 = vrot.slane %v4094, 7
      %v4340 = vrot.slane %v4339, 2
      %v4341 = vrot.slane %v4096, 7
      %v4342 = vrot.slane %v4341, 2
      %v4343 = vrot.slane %v4104, 7
      %v4344 = vrot.slane %v4343, 2
      %v4345 = vrot.slane %v4112, 7
      %v4346 = vrot.slane %v4345, 2
      %v4347 = vrot.slane %v4111, 7
      %v4348 = vrot.slane %v4347, 2
      %v4349 = vrot.slane %v4113, 7
      %v4350 = vrot.slane %v4349, 2
      %v4351 = vrot.slane %v4121, 7
      %v4352 = vrot.slane %v4351, 2
      %v4353 = vrot.slane %v4129, 7
      %v4354 = vrot.slane %v4353, 2
      %v4355 = vrot.slane %v4128, 7
      %v4356 = vrot.slane %v4355, 2
      %v4357 = vrot.slane %v4130, 7
      %v4358 = vrot.slane %v4357, 2
      %v4359 = vrot.slane %v4138, 7
      %v4360 = vrot.slane %v4359, 2
      %v4361 = vrot.slane %v4146, 7
      %v4362 = vrot.slane %v4361, 2
      %v4363 = vrot.slane %v4145, 7
      %v4364 = vrot.slane %v4363, 2
      %v4365 = vrot.slane %v4147, 7
      %v4366 = vrot.slane %v4365, 2
      %v4367 = vrot.slane %v4155, 7
      %v4368 = vrot.slane %v4367, 2
      %v4369 = vrot.slane %v4163, 7
      %v4370 = vrot.slane %v4369, 2
      %v4371 = vrot.slane %v4162, 7
      %v4372 = vrot.slane %v4371, 2
      %v4373 = vrot.slane %v4164, 7
      %v4374 = vrot.slane %v4373, 2
      %v4375 = vrot.slane %v4172, 7
      %v4376 = vrot.slane %v4375, 2
      %v4377 = vrot.slane %v4180, 7
      %v4378 = vrot.slane %v4377, 2
      %v4379 = vrot.slane %v4179, 7
      %v4380 = vrot.slane %v4379, 2
      %v4381 = vrot.slane %v4181, 7
      %v4382 = vrot.slane %v4381, 2
      %v4383 = vrot.slane %v4189, 7
      %v4384 = vrot.slane %v4383, 2
      %v4385 = vrot.slane %v4197, 7
      %v4386 = vrot.slane %v4385, 2
      %v4387 = vrot.slane %v4196, 7
      %v4388 = vrot.slane %v4387, 2
      %v4389 = vrot.slane %v4198, 7
      %v4390 = vrot.slane %v4389, 2
      %v4455 = vmax.f32 %v3934, %v4264
      %v4456 = vmax.f32 %v3942, %v4266
      %v4457 = vmax.f32 %v3941, %v4268
      %v4458 = vmax.f32 %v3943, %v4270
      %v4459 = vmax.f32 %v3951, %v4272
      %v4460 = vmax.f32 %v3959, %v4274
      %v4461 = vmax.f32 %v3958, %v4276
      %v4462 = vmax.f32 %v3960, %v4278
      %v4463 = vmax.f32 %v3968, %v4280
      %v4464 = vmax.f32 %v3976, %v4282
      %v4465 = vmax.f32 %v3975, %v4284
      %v4466 = vmax.f32 %v3977, %v4286
      %v4467 = vmax.f32 %v3985, %v4288
      %v4468 = vmax.f32 %v3993, %v4290
      %v4469 = vmax.f32 %v3992, %v4292
      %v4470 = vmax.f32 %v3994, %v4294
      %v4471 = vmax.f32 %v4002, %v4296
      %v4472 = vmax.f32 %v4010, %v4298
      %v4473 = vmax.f32 %v4009, %v4300
      %v4474 = vmax.f32 %v4011, %v4302
      %v4475 = vmax.f32 %v4019, %v4304
      %v4476 = vmax.f32 %v4027, %v4306
      %v4477 = vmax.f32 %v4026, %v4308
      %v4478 = vmax.f32 %v4028, %v4310
      %v4479 = vmax.f32 %v4036, %v4312
      %v4480 = vmax.f32 %v4044, %v4314
      %v4481 = vmax.f32 %v4043, %v4316
      %v4482 = vmax.f32 %v4045, %v4318
      %v4483 = vmax.f32 %v4053, %v4320
      %v4484 = vmax.f32 %v4061, %v4322
      %v4485 = vmax.f32 %v4060, %v4324
      %v4486 = vmax.f32 %v4062, %v4326
      %v4487 = vmax.f32 %v4070, %v4328
      %v4488 = vmax.f32 %v4078, %v4330
      %v4489 = vmax.f32 %v4077, %v4332
      %v4490 = vmax.f32 %v4079, %v4334
      %v4491 = vmax.f32 %v4087, %v4336
      %v4492 = vmax.f32 %v4095, %v4338
      %v4493 = vmax.f32 %v4094, %v4340
      %v4494 = vmax.f32 %v4096, %v4342
      %v4495 = vmax.f32 %v4104, %v4344
      %v4496 = vmax.f32 %v4112, %v4346
      %v4497 = vmax.f32 %v4111, %v4348
      %v4498 = vmax.f32 %v4113, %v4350
      %v4499 = vmax.f32 %v4121, %v4352
      %v4500 = vmax.f32 %v4129, %v4354
      %v4501 = vmax.f32 %v4128, %v4356
      %v4502 = vmax.f32 %v4130, %v4358
      %v4503 = vmax.f32 %v4138, %v4360
      %v4504 = vmax.f32 %v4146, %v4362
      %v4505 = vmax.f32 %v4145, %v4364
      %v4506 = vmax.f32 %v4147, %v4366
      %v4507 = vmax.f32 %v4155, %v4368
      %v4508 = vmax.f32 %v4163, %v4370
      %v4509 = vmax.f32 %v4162, %v4372
      %v4510 = vmax.f32 %v4164, %v4374
      %v4511 = vmax.f32 %v4172, %v4376
      %v4512 = vmax.f32 %v4180, %v4378
      %v4513 = vmax.f32 %v4179, %v4380
      %v4514 = vmax.f32 %v4181, %v4382
      %v4515 = vmax.f32 %v4189, %v4384
      %v4516 = vmax.f32 %v4197, %v4386
      %v4517 = vmax.f32 %v4196, %v4388
      %v4518 = vmax.f32 %v4198, %v4390
      %v4583 = vlaneseq
      %v4584 = vshrl.u32 %v4583, 7
      %v4585 = vsub.s32 0, %v4584
      %v4586 = vrot.slane %v4455, %v4585
      %v4587 = vlaneseq
      %v4588 = vshrl.u32 %v4587, 7
      %v4589 = vsub.s32 0, %v4588
      %v4590 = vrot.slane %v4456, %v4589
      %v4591 = vlaneseq
      %v4592 = vshrl.u32 %v4591, 7
      %v4593 = vsub.s32 0, %v4592
      %v4594 = vrot.slane %v4457, %v4593
      %v4595 = vlaneseq
      %v4596 = vshrl.u32 %v4595, 7
      %v4597 = vsub.s32 0, %v4596
      %v4598 = vrot.slane %v4458, %v4597
      %v4599 = vlaneseq
      %v4600 = vshrl.u32 %v4599, 7
      %v4601 = vsub.s32 0, %v4600
      %v4602 = vrot.slane %v4459, %v4601
      %v4603 = vlaneseq
      %v4604 = vshrl.u32 %v4603, 7
      %v4605 = vsub.s32 0, %v4604
      %v4606 = vrot.slane %v4460, %v4605
      %v4607 = vlaneseq
      %v4608 = vshrl.u32 %v4607, 7
      %v4609 = vsub.s32 0, %v4608
      %v4610 = vrot.slane %v4461, %v4609
      %v4611 = vlaneseq
      %v4612 = vshrl.u32 %v4611, 7
      %v4613 = vsub.s32 0, %v4612
      %v4614 = vrot.slane %v4462, %v4613
      %v4615 = vlaneseq
      %v4616 = vshrl.u32 %v4615, 7
      %v4617 = vsub.s32 0, %v4616
      %v4618 = vrot.slane %v4463, %v4617
      %v4619 = vlaneseq
      %v4620 = vshrl.u32 %v4619, 7
      %v4621 = vsub.s32 0, %v4620
      %v4622 = vrot.slane %v4464, %v4621
      %v4623 = vlaneseq
      %v4624 = vshrl.u32 %v4623, 7
      %v4625 = vsub.s32 0, %v4624
      %v4626 = vrot.slane %v4465, %v4625
      %v4627 = vlaneseq
      %v4628 = vshrl.u32 %v4627, 7
      %v4629 = vsub.s32 0, %v4628
      %v4630 = vrot.slane %v4466, %v4629
      %v4631 = vlaneseq
      %v4632 = vshrl.u32 %v4631, 7
      %v4633 = vsub.s32 0, %v4632
      %v4634 = vrot.slane %v4467, %v4633
      %v4635 = vlaneseq
      %v4636 = vshrl.u32 %v4635, 7
      %v4637 = vsub.s32 0, %v4636
      %v4638 = vrot.slane %v4468, %v4637
      %v4639 = vlaneseq
      %v4640 = vshrl.u32 %v4639, 7
      %v4641 = vsub.s32 0, %v4640
      %v4642 = vrot.slane %v4469, %v4641
      %v4643 = vlaneseq
      %v4644 = vshrl.u32 %v4643, 7
      %v4645 = vsub.s32 0, %v4644
      %v4646 = vrot.slane %v4470, %v4645
      %v4647 = vlaneseq
      %v4648 = vshrl.u32 %v4647, 7
      %v4649 = vsub.s32 0, %v4648
      %v4650 = vrot.slane %v4471, %v4649
      %v4651 = vlaneseq
      %v4652 = vshrl.u32 %v4651, 7
      %v4653 = vsub.s32 0, %v4652
      %v4654 = vrot.slane %v4472, %v4653
      %v4655 = vlaneseq
      %v4656 = vshrl.u32 %v4655, 7
      %v4657 = vsub.s32 0, %v4656
      %v4658 = vrot.slane %v4473, %v4657
      %v4659 = vlaneseq
      %v4660 = vshrl.u32 %v4659, 7
      %v4661 = vsub.s32 0, %v4660
      %v4662 = vrot.slane %v4474, %v4661
      %v4663 = vlaneseq
      %v4664 = vshrl.u32 %v4663, 7
      %v4665 = vsub.s32 0, %v4664
      %v4666 = vrot.slane %v4475, %v4665
      %v4667 = vlaneseq
      %v4668 = vshrl.u32 %v4667, 7
      %v4669 = vsub.s32 0, %v4668
      %v4670 = vrot.slane %v4476, %v4669
      %v4671 = vlaneseq
      %v4672 = vshrl.u32 %v4671, 7
      %v4673 = vsub.s32 0, %v4672
      %v4674 = vrot.slane %v4477, %v4673
      %v4675 = vlaneseq
      %v4676 = vshrl.u32 %v4675, 7
      %v4677 = vsub.s32 0, %v4676
      %v4678 = vrot.slane %v4478, %v4677
      %v4679 = vlaneseq
      %v4680 = vshrl.u32 %v4679, 7
      %v4681 = vsub.s32 0, %v4680
      %v4682 = vrot.slane %v4479, %v4681
      %v4683 = vlaneseq
      %v4684 = vshrl.u32 %v4683, 7
      %v4685 = vsub.s32 0, %v4684
      %v4686 = vrot.slane %v4480, %v4685
      %v4687 = vlaneseq
      %v4688 = vshrl.u32 %v4687, 7
      %v4689 = vsub.s32 0, %v4688
      %v4690 = vrot.slane %v4481, %v4689
      %v4691 = vlaneseq
      %v4692 = vshrl.u32 %v4691, 7
      %v4693 = vsub.s32 0, %v4692
      %v4694 = vrot.slane %v4482, %v4693
      %v4695 = vlaneseq
      %v4696 = vshrl.u32 %v4695, 7
      %v4697 = vsub.s32 0, %v4696
      %v4698 = vrot.slane %v4483, %v4697
      %v4699 = vlaneseq
      %v4700 = vshrl.u32 %v4699, 7
      %v4701 = vsub.s32 0, %v4700
      %v4702 = vrot.slane %v4484, %v4701
      %v4703 = vlaneseq
      %v4704 = vshrl.u32 %v4703, 7
      %v4705 = vsub.s32 0, %v4704
      %v4706 = vrot.slane %v4485, %v4705
      %v4707 = vlaneseq
      %v4708 = vshrl.u32 %v4707, 7
      %v4709 = vsub.s32 0, %v4708
      %v4710 = vrot.slane %v4486, %v4709
      %v4711 = vlaneseq
      %v4712 = vshrl.u32 %v4711, 7
      %v4713 = vsub.s32 0, %v4712
      %v4714 = vrot.slane %v4487, %v4713
      %v4715 = vlaneseq
      %v4716 = vshrl.u32 %v4715, 7
      %v4717 = vsub.s32 0, %v4716
      %v4718 = vrot.slane %v4488, %v4717
      %v4719 = vlaneseq
      %v4720 = vshrl.u32 %v4719, 7
      %v4721 = vsub.s32 0, %v4720
      %v4722 = vrot.slane %v4489, %v4721
      %v4723 = vlaneseq
      %v4724 = vshrl.u32 %v4723, 7
      %v4725 = vsub.s32 0, %v4724
      %v4726 = vrot.slane %v4490, %v4725
      %v4727 = vlaneseq
      %v4728 = vshrl.u32 %v4727, 7
      %v4729 = vsub.s32 0, %v4728
      %v4730 = vrot.slane %v4491, %v4729
      %v4731 = vlaneseq
      %v4732 = vshrl.u32 %v4731, 7
      %v4733 = vsub.s32 0, %v4732
      %v4734 = vrot.slane %v4492, %v4733
      %v4735 = vlaneseq
      %v4736 = vshrl.u32 %v4735, 7
      %v4737 = vsub.s32 0, %v4736
      %v4738 = vrot.slane %v4493, %v4737
      %v4739 = vlaneseq
      %v4740 = vshrl.u32 %v4739, 7
      %v4741 = vsub.s32 0, %v4740
      %v4742 = vrot.slane %v4494, %v4741
      %v4743 = vlaneseq
      %v4744 = vshrl.u32 %v4743, 7
      %v4745 = vsub.s32 0, %v4744
      %v4746 = vrot.slane %v4495, %v4745
      %v4747 = vlaneseq
      %v4748 = vshrl.u32 %v4747, 7
      %v4749 = vsub.s32 0, %v4748
      %v4750 = vrot.slane %v4496, %v4749
      %v4751 = vlaneseq
      %v4752 = vshrl.u32 %v4751, 7
      %v4753 = vsub.s32 0, %v4752
      %v4754 = vrot.slane %v4497, %v4753
      %v4755 = vlaneseq
      %v4756 = vshrl.u32 %v4755, 7
      %v4757 = vsub.s32 0, %v4756
      %v4758 = vrot.slane %v4498, %v4757
      %v4759 = vlaneseq
      %v4760 = vshrl.u32 %v4759, 7
      %v4761 = vsub.s32 0, %v4760
      %v4762 = vrot.slane %v4499, %v4761
      %v4763 = vlaneseq
      %v4764 = vshrl.u32 %v4763, 7
      %v4765 = vsub.s32 0, %v4764
      %v4766 = vrot.slane %v4500, %v4765
      %v4767 = vlaneseq
      %v4768 = vshrl.u32 %v4767, 7
      %v4769 = vsub.s32 0, %v4768
      %v4770 = vrot.slane %v4501, %v4769
      %v4771 = vlaneseq
      %v4772 = vshrl.u32 %v4771, 7
      %v4773 = vsub.s32 0, %v4772
      %v4774 = vrot.slane %v4502, %v4773
      %v4775 = vlaneseq
      %v4776 = vshrl.u32 %v4775, 7
      %v4777 = vsub.s32 0, %v4776
      %v4778 = vrot.slane %v4503, %v4777
      %v4779 = vlaneseq
      %v4780 = vshrl.u32 %v4779, 7
      %v4781 = vsub.s32 0, %v4780
      %v4782 = vrot.slane %v4504, %v4781
      %v4783 = vlaneseq
      %v4784 = vshrl.u32 %v4783, 7
      %v4785 = vsub.s32 0, %v4784
      %v4786 = vrot.slane %v4505, %v4785
      %v4787 = vlaneseq
      %v4788 = vshrl.u32 %v4787, 7
      %v4789 = vsub.s32 0, %v4788
      %v4790 = vrot.slane %v4506, %v4789
      %v4791 = vlaneseq
      %v4792 = vshrl.u32 %v4791, 7
      %v4793 = vsub.s32 0, %v4792
      %v4794 = vrot.slane %v4507, %v4793
      %v4795 = vlaneseq
      %v4796 = vshrl.u32 %v4795, 7
      %v4797 = vsub.s32 0, %v4796
      %v4798 = vrot.slane %v4508, %v4797
      %v4799 = vlaneseq
      %v4800 = vshrl.u32 %v4799, 7
      %v4801 = vsub.s32 0, %v4800
      %v4802 = vrot.slane %v4509, %v4801
      %v4803 = vlaneseq
      %v4804 = vshrl.u32 %v4803, 7
      %v4805 = vsub.s32 0, %v4804
      %v4806 = vrot.slane %v4510, %v4805
      %v4807 = vlaneseq
      %v4808 = vshrl.u32 %v4807, 7
      %v4809 = vsub.s32 0, %v4808
      %v4810 = vrot.slane %v4511, %v4809
      %v4811 = vlaneseq
      %v4812 = vshrl.u32 %v4811, 7
      %v4813 = vsub.s32 0, %v4812
      %v4814 = vrot.slane %v4512, %v4813
      %v4815 = vlaneseq
      %v4816 = vshrl.u32 %v4815, 7
      %v4817 = vsub.s32 0, %v4816
      %v4818 = vrot.slane %v4513, %v4817
      %v4819 = vlaneseq
      %v4820 = vshrl.u32 %v4819, 7
      %v4821 = vsub.s32 0, %v4820
      %v4822 = vrot.slane %v4514, %v4821
      %v4823 = vlaneseq
      %v4824 = vshrl.u32 %v4823, 7
      %v4825 = vsub.s32 0, %v4824
      %v4826 = vrot.slane %v4515, %v4825
      %v4827 = vlaneseq
      %v4828 = vshrl.u32 %v4827, 7
      %v4829 = vsub.s32 0, %v4828
      %v4830 = vrot.slane %v4516, %v4829
      %v4831 = vlaneseq
      %v4832 = vshrl.u32 %v4831, 7
      %v4833 = vsub.s32 0, %v4832
      %v4834 = vrot.slane %v4517, %v4833
      %v4835 = vlaneseq
      %v4836 = vshrl.u32 %v4835, 7
      %v4837 = vsub.s32 0, %v4836
      %v4838 = vrot.slane %v4518, %v4837
      %vm4839 = vcmask 1041409
      %v4840 = vsel %vm4839, %v4590, %v4586
      %vm4841 = vcmask 1042434
      %v4842 = vsel %vm4841, %v4594, %v4840
      %vm4843 = vcmask 1043459
      %v4844 = vsel %vm4843, %v4598, %v4842
      %vm4845 = vcmask 1044484
      %v4846 = vsel %vm4845, %v4602, %v4844
      %vm4847 = vcmask 1045509
      %v4848 = vsel %vm4847, %v4606, %v4846
      %vm4849 = vcmask 1046534
      %v4850 = vsel %vm4849, %v4610, %v4848
      %vm4851 = vcmask 1047559
      %v4852 = vsel %vm4851, %v4614, %v4850
      %v4853 = vsel %vm4839, %v4622, %v4618
      %v4854 = vsel %vm4841, %v4626, %v4853
      %v4855 = vsel %vm4843, %v4630, %v4854
      %v4856 = vsel %vm4845, %v4634, %v4855
      %v4857 = vsel %vm4847, %v4638, %v4856
      %v4858 = vsel %vm4849, %v4642, %v4857
      %v4859 = vsel %vm4851, %v4646, %v4858
      %v4860 = vsel %vm4839, %v4654, %v4650
      %v4861 = vsel %vm4841, %v4658, %v4860
      %v4862 = vsel %vm4843, %v4662, %v4861
      %v4863 = vsel %vm4845, %v4666, %v4862
      %v4864 = vsel %vm4847, %v4670, %v4863
      %v4865 = vsel %vm4849, %v4674, %v4864
      %v4866 = vsel %vm4851, %v4678, %v4865
      %v4867 = vsel %vm4839, %v4686, %v4682
      %v4868 = vsel %vm4841, %v4690, %v4867
      %v4869 = vsel %vm4843, %v4694, %v4868
      %v4870 = vsel %vm4845, %v4698, %v4869
      %v4871 = vsel %vm4847, %v4702, %v4870
      %v4872 = vsel %vm4849, %v4706, %v4871
      %v4873 = vsel %vm4851, %v4710, %v4872
      %v4874 = vsel %vm4839, %v4718, %v4714
      %v4875 = vsel %vm4841, %v4722, %v4874
      %v4876 = vsel %vm4843, %v4726, %v4875
      %v4877 = vsel %vm4845, %v4730, %v4876
      %v4878 = vsel %vm4847, %v4734, %v4877
      %v4879 = vsel %vm4849, %v4738, %v4878
      %v4880 = vsel %vm4851, %v4742, %v4879
      %v4881 = vsel %vm4839, %v4750, %v4746
      %v4882 = vsel %vm4841, %v4754, %v4881
      %v4883 = vsel %vm4843, %v4758, %v4882
      %v4884 = vsel %vm4845, %v4762, %v4883
      %v4885 = vsel %vm4847, %v4766, %v4884
      %v4886 = vsel %vm4849, %v4770, %v4885
      %v4887 = vsel %vm4851, %v4774, %v4886
      %v4888 = vsel %vm4839, %v4782, %v4778
      %v4889 = vsel %vm4841, %v4786, %v4888
      %v4890 = vsel %vm4843, %v4790, %v4889
      %v4891 = vsel %vm4845, %v4794, %v4890
      %v4892 = vsel %vm4847, %v4798, %v4891
      %v4893 = vsel %vm4849, %v4802, %v4892
      %v4894 = vsel %vm4851, %v4806, %v4893
      %v4895 = vsel %vm4839, %v4814, %v4810
      %v4896 = vsel %vm4841, %v4818, %v4895
      %v4897 = vsel %vm4843, %v4822, %v4896
      %v4898 = vsel %vm4845, %v4826, %v4897
      %v4899 = vsel %vm4847, %v4830, %v4898
      %v4900 = vsel %vm4849, %v4834, %v4899
      %v4901 = vsel %vm4851, %v4838, %v4900
      %4910 = vst [vmem:[%s259] sm:$0xff] %v4852
      %4911 = vst [vmem:[%s259 + $0x8] sm:$0xff] %v4859
      %4912 = vst [vmem:[%s259 + $0x10] sm:$0xff] %v4866
      %4913 = vst [vmem:[%s259 + $0x18] sm:$0xff] %v4873
      %4914 = vst [vmem:[%s259 + $0x20] sm:$0xff] %v4880
      %4915 = vst [vmem:[%s259 + $0x28] sm:$0xff] %v4887
      %4916 = vst [vmem:[%s259 + $0x30] sm:$0xff] %v4894
      %4917 = vst [vmem:[%s259 + $0x38] sm:$0xff] %v4901
      %p4918 = scmp.lt.s32.totalorder %s18, 1
      %s4919 = scalar_select %p4918, %s18, 1
      %s4920 = smul.addr %s4919, 8
      %s4921 = smul.addr %s4920, 8
      %s4922 = scalar_lea.vmem %s5, %s4921
      %p4923 = scmp.lt.s32.totalorder %s18, 1
      %s4924 = scalar_select %p4923, %s18, 1
      %s4925 = smul.addr %s4924, 32
      %s4926 = smul.addr %s4925, 8
      %s4927 = scalar_lea.vmem %s6, %s4926
      // Predicated region
      $region41: #{down_conv.1} parent=39 // pred_check
        %p4928 = pneg %p146
      $region42: #{down_conv.1} parent=39 // pred_check_branch
        %4930 = sbr.rel (%p4928) target = $region44
      $region43: #{down_conv.1} parent=39 // pred_region
        _
      $region44: #{down_conv.1} parent=39 // pred_fallthru
        _
      // Predicated region
      $region45: #{down_conv.1} parent=39 // pred_check
        %p4931 = pneg %p172
      $region46: #{down_conv.1} parent=39 // pred_check_branch
        %4933 = sbr.rel (%p4931) target = $region48
      $region47: #{down_conv.1} parent=39 // pred_region
        _
      $region48: #{down_conv.1} parent=39 // pred_fallthru
        _
    $region40: #{down_conv.1} parent=5 // pred_fallthru
      _
    %p4934 = scmp.le.s32.totalorder 2, %s13
    // Predicated region
    $region49: #{down_conv.1} parent=5 // pred_check
      %p4935 = pneg %p4934
    $region50: #{down_conv.1} parent=5 // pred_check_branch
      %4937 = sbr.rel (%p4935) target = $region52
    $region51: #{down_conv.1} parent=5 // pred_region
      %s4938 = ssub.s32 %s13, 2
      // Predicated region
      $region53: #{down_conv.1} parent=51 // pred_check
        %p4939 = pneg %p152
      $region54: #{down_conv.1} parent=51 // pred_check_branch
        %4941 = sbr.rel (%p4939) target = $region56
      $region55: #{down_conv.1} parent=51 // pred_region
        %p4942 = scmp.lt.s32.totalorder %s19, 1
        %s4943 = scalar_select %p4942, %s19, 1
        %s4944 = smul.addr %s4943, 8
        %s4945 = smul.addr %s4944, 8
        %s4946 = scalar_lea.vmem %s5, %s4945
      $region56: #{down_conv.1} parent=51 // pred_fallthru
        _
      // Predicated region
      $region57: #{down_conv.1} parent=51 // pred_check
        %p4947 = pneg %p178
      $region58: #{down_conv.1} parent=51 // pred_check_branch
        %4949 = sbr.rel (%p4947) target = $region60
      $region59: #{down_conv.1} parent=51 // pred_region
        %p4950 = scmp.lt.s32.totalorder %s19, 1
        %s4951 = scalar_select %p4950, %s19, 1
        %s4952 = smul.addr %s4951, 32
        %s4953 = smul.addr %s4952, 8
        %s4954 = scalar_lea.vmem %s6, %s4953
      $region60: #{down_conv.1} parent=51 // pred_fallthru
        _
    $region52: #{down_conv.1} parent=5 // pred_fallthru
      _
  $region6: #{down_conv.1} parent=0 // loop_footer
    %s17 = sadd.s32 1, %s13
  $region7: #{down_conv.1} parent=0 // loop_footer_branch
    %12 = sbr.rel target = $region3
  $region8: #{down_conv.1} parent=0 // loop_exit
    _

</llo_original>
